<compile_context>
chip_gen: v7x
topology: tpu7x:2x2x1
jax: 0.10.0
libtpu: 0.0.40
codegen_flags: <defaults>
</compile_context>

<pallas_src>
import jax
import jax.numpy as jnp
from jax import lax
from jax.experimental import pallas as pl
from jax.experimental.pallas import tpu as pltpu


LANE = 128
SUBLANE = 8


def textnn_kernel(ids_ref, emb_ref, w1_ref, b1_ref, w2_ref, b2_ref,
                  out_ref, pooled_acc):
    v = pl.program_id(1)
    nv = pl.num_programs(1)

    @pl.when(v == 0)
    def _():
        pooled_acc[...] = jnp.zeros_like(pooled_acc)

    ids = ids_ref[...]                               # (TB, S) int32
    TB, S = ids.shape
    TV = emb_ref.shape[0]
    inv_s = 1.0 / float(S)

    # counts[b, t] = #{s : ids[b, s] == v*TV + t}   (built lane-dense in 2-D,
    # one (TB, TV) compare+add per sequence position; S is small & static ->
    # full unroll, iota hoisted out of the loop).
    lane_tok = lax.broadcasted_iota(jnp.int32, (TB, TV), 1) + v * TV
    counts = jnp.zeros((TB, TV), jnp.float32)
    for s in range(S):
        counts = counts + (ids[:, s:s + 1] == lane_tok).astype(jnp.float32)
    # Fold the 1/S mean scale once, then drop to bf16 for the MXU.
    counts = (counts * inv_s).astype(emb_ref.dtype)

    # pooled += counts_scaled @ emb[v_tile]  (MXU, bf16 operands, f32 accumulate)
    pooled_acc[...] += jnp.dot(counts, emb_ref[...],
                               preferred_element_type=jnp.float32)

    # After the last vocab tile: hidden = relu(pooled @ W1 + b1);
    #                            logits = hidden @ W2 + b2.
    @pl.when(v == nv - 1)
    def _():
        pooled = pooled_acc[...]
        hidden = jnp.dot(pooled.astype(w1_ref.dtype), w1_ref[...],
                         preferred_element_type=jnp.float32) + b1_ref[...]
        hidden = jnp.maximum(hidden, 0.0)
        logits = jnp.dot(hidden.astype(w2_ref.dtype), w2_ref[...],
                         preferred_element_type=jnp.float32) + b2_ref[...]
        out_ref[...] = logits


def _pad_rows(x, rows):
    return jnp.zeros((rows,) + x.shape[1:], x.dtype).at[:x.shape[0]].set(x)


def textnn_forward(ids, emb, w_hidden, b_hidden, w_fc, b_fc,
                   *, batch_tile=128, vocab_tile=None):
    """ids: (B,S) int32; emb: (V,E); w_hidden: (E,H); b_hidden: (1,H);
    w_fc: (H,C); b_fc: (1,C).  PyTorch Linear weights are pre-transposed to
    (in, out) so the kernel does plain x @ W."""
    B, S = ids.shape
    V, E = emb.shape
    H = w_hidden.shape[1]
    C = w_fc.shape[1]

    # Small vocab -> a single vocab step (no reduction loop); large vocab ->
    # stream 512-row embedding tiles.
    if vocab_tile is None:
        vocab_tile = min(512, pl.cdiv(V, LANE) * LANE)

    Bp = pl.cdiv(B, batch_tile) * batch_tile
    Vp = pl.cdiv(V, vocab_tile) * vocab_tile
    Cp = pl.cdiv(C, LANE) * LANE            # lane-dense output -> unmasked stores

    ids_p = _pad_rows(ids.astype(jnp.int32), Bp)       # pad rows use token 0 (sliced off)
    emb_p = _pad_rows(emb, Vp).astype(jnp.bfloat16)    # pad vocab rows are never counted
    w1 = w_hidden.astype(jnp.bfloat16)
    b1 = b_hidden.astype(jnp.float32)
    w2 = jnp.zeros((H, Cp), w_fc.dtype).at[:, :C].set(w_fc).astype(jnp.bfloat16)
    b2 = jnp.zeros((1, Cp), jnp.float32).at[:, :C].set(b_fc)

    grid = (Bp // batch_tile, Vp // vocab_tile)

    out_p = pl.pallas_call(
        textnn_kernel,
        out_shape=jax.ShapeDtypeStruct((Bp, Cp), jnp.float32),
        grid_spec=pltpu.PrefetchScalarGridSpec(
            num_scalar_prefetch=0,
            grid=grid,
            in_specs=[
                pl.BlockSpec((batch_tile, S), lambda i, v: (i, 0)),   # token ids
                pl.BlockSpec((vocab_tile, E), lambda i, v: (v, 0)),   # embedding tile (streams)
                pl.BlockSpec((E, H), lambda i, v: (0, 0)),            # W1 (VMEM-resident)
                pl.BlockSpec((1, H), lambda i, v: (0, 0)),            # b1 (resident)
                pl.BlockSpec((H, Cp), lambda i, v: (0, 0)),           # W2 (resident)
                pl.BlockSpec((1, Cp), lambda i, v: (0, 0)),           # b2 (resident)
            ],
            out_specs=pl.BlockSpec((batch_tile, Cp), lambda i, v: (i, 0)),
            scratch_shapes=[pltpu.VMEM((batch_tile, E), jnp.float32)],
        ),
        compiler_params=pltpu.CompilerParams(
            dimension_semantics=("parallel", "arbitrary"),
            vmem_limit_bytes=32 * 1024 * 1024,
        ),
    )(ids_p, emb_p, w1, b1, w2, b2)

    return out_p[:B, :C]


def reference_forward(ids, emb, w_hidden, b_hidden, w_fc, b_fc):
    embedded = emb[ids]                      # (B, S, E)
    pooled = jnp.mean(embedded, axis=1)      # (B, E)
    hidden = jnp.maximum(pooled @ w_hidden + b_hidden, 0.0)
    return hidden @ w_fc + b_fc


if __name__ == "__main__":
    # Small but tile-exercising shapes (module defaults embed_dim=hidden_size=128).
    vocab_size, num_classes = 500, 8
    embed_dim, hidden_size = 128, 128
    batch, seq = 200, 16

    key = jax.random.PRNGKey(0)
    k_ids, k_emb, k_w1, k_b1, k_w2, k_b2 = jax.random.split(key, 6)

    ids = jax.random.randint(k_ids, (batch, seq), 0, vocab_size, dtype=jnp.int32)
    emb = jax.random.normal(k_emb, (vocab_size, embed_dim), jnp.float32) * 0.1
    # PyTorch Linear stores weight as (out, in); keep the (in, out) transpose here.
    w_hidden = jax.random.normal(k_w1, (embed_dim, hidden_size), jnp.float32) * 0.05
    b_hidden = jax.random.normal(k_b1, (1, hidden_size), jnp.float32) * 0.05
    w_fc = jax.random.normal(k_w2, (hidden_size, num_classes), jnp.float32) * 0.05
    b_fc = jax.random.normal(k_b2, (1, num_classes), jnp.float32) * 0.05

    logits = textnn_forward(ids, emb, w_hidden, b_hidden, w_fc, b_fc)
    jax.block_until_ready(logits)

    ref = reference_forward(ids, emb, w_hidden, b_hidden, w_fc, b_fc)
    assert logits.shape == (batch, num_classes)
    # bf16 MXU operands (f32 accumulation) vs fp32 reference: tolerance covers
    # bf16 weight rounding only; counts/biases/accumulation are exact.
    assert jnp.allclose(logits, ref, rtol=2e-2, atol=2e-3), \
        float(jnp.max(jnp.abs(logits - ref)))

    print("KERNEL_OK")
</pallas_src>

<mosaic_0001>
module attributes {stable_mosaic.version = 11 : i64} {
  func.func @textnn_kernel(%arg0: i32, %arg1: i32, %arg2: memref<128x16xi32, #tpu.memory_space<vmem>>, %arg3: memref<512x128xbf16, #tpu.memory_space<vmem>>, %arg4: memref<128x128xbf16, #tpu.memory_space<vmem>>, %arg5: memref<1x128xf32, #tpu.memory_space<vmem>>, %arg6: memref<128x128xbf16, #tpu.memory_space<vmem>>, %arg7: memref<1x128xf32, #tpu.memory_space<vmem>>, %arg8: memref<128x128xf32, #tpu.memory_space<vmem>>, %arg9: memref<128x128xf32, #tpu.memory_space<vmem>>) attributes {dimension_semantics = [#tpu.dimension_semantics<parallel>, #tpu.dimension_semantics<arbitrary>], iteration_bounds = array<i64: 2, 1>, scalar_prefetch = 0 : i64, scratch_operands = 1 : i64, tpu.core_type = #tpu.core_type<tc>, window_params = [{transform_indices = @transform_0, window_bounds = array<i64: 128, 16>}, {transform_indices = @transform_1, window_bounds = array<i64: 512, 128>}, {pipeline_mode = #tpu.pipeline_mode<synchronous>, transform_indices = @transform_2, window_bounds = array<i64: 128, 128>}, {pipeline_mode = #tpu.pipeline_mode<synchronous>, transform_indices = @transform_3, window_bounds = array<i64: 1, 128>}, {pipeline_mode = #tpu.pipeline_mode<synchronous>, transform_indices = @transform_4, window_bounds = array<i64: 128, 128>}, {pipeline_mode = #tpu.pipeline_mode<synchronous>, transform_indices = @transform_5, window_bounds = array<i64: 1, 128>}, {transform_indices = @transform_6, window_bounds = array<i64: 128, 128>}]} {
    %c0_i32 = arith.constant 0 : i32
    %0 = arith.cmpi eq, %arg1, %c0_i32 : i32
    %1 = arith.extui %0 : i1 to i32
    %c0_i32_0 = arith.constant 0 : i32
    %2 = arith.cmpi ne, %1, %c0_i32_0 : i32
    scf.if %2 {
      %cst_12 = arith.constant 0.000000e+00 : f32
      %116 = vector.broadcast %cst_12 : f32 to vector<128x128xf32>
      %c0_13 = arith.constant 0 : index
      %c0_14 = arith.constant 0 : index
      %117 = vector.load %arg9[%c0_13, %c0_14] : memref<128x128xf32, #tpu.memory_space<vmem>>, vector<128x128xf32>
      tpu.vector_store %arg9[%c0_13, %c0_14], %116 {strides = array<i32>} : memref<128x128xf32, #tpu.memory_space<vmem>>, vector<128x128xf32>,
    } else {
    }
    %c0 = arith.constant 0 : index
    %c0_1 = arith.constant 0 : index
    %3 = vector.load %arg2[%c0, %c0_1] : memref<128x16xi32, #tpu.memory_space<vmem>>, vector<128x16xi32>
    %4 = tpu.iota {dimensions = array<i32: 1>} : vector<128x512xi32>
    %c512_i32 = arith.constant 512 : i32
    %5 = arith.muli %arg1, %c512_i32 : i32
    %6 = vector.broadcast %5 : i32 to vector<128x512xi32>
    %7 = arith.addi %4, %6 : vector<128x512xi32>
    %cst = arith.constant 0.000000e+00 : f32
    %8 = vector.broadcast %cst : f32 to vector<128x512xf32>
    %9 = vector.extract_strided_slice %3 {offsets = [0, 0], sizes = [128, 1], strides = [1, 1]} : vector<128x16xi32> to vector<128x1xi32>
    %10 = vector.broadcast %9 : vector<128x1xi32> to vector<128x512xi32>
    %11 = arith.cmpi eq, %10, %7 : vector<128x512xi32>
    %12 = arith.extui %11 : vector<128x512xi1> to vector<128x512xi32>
    %13 = arith.sitofp %12 : vector<128x512xi32> to vector<128x512xf32>
    %14 = arith.addf %8, %13 : vector<128x512xf32>
    %15 = vector.extract_strided_slice %3 {offsets = [0, 1], sizes = [128, 1], strides = [1, 1]} : vector<128x16xi32> to vector<128x1xi32>
    %16 = vector.broadcast %15 : vector<128x1xi32> to vector<128x512xi32>
    %17 = arith.cmpi eq, %16, %7 : vector<128x512xi32>
    %18 = arith.extui %17 : vector<128x512xi1> to vector<128x512xi32>
    %19 = arith.sitofp %18 : vector<128x512xi32> to vector<128x512xf32>
    %20 = arith.addf %14, %19 : vector<128x512xf32>
    %21 = vector.extract_strided_slice %3 {offsets = [0, 2], sizes = [128, 1], strides = [1, 1]} : vector<128x16xi32> to vector<128x1xi32>
    %22 = vector.broadcast %21 : vector<128x1xi32> to vector<128x512xi32>
    %23 = arith.cmpi eq, %22, %7 : vector<128x512xi32>
    %24 = arith.extui %23 : vector<128x512xi1> to vector<128x512xi32>
    %25 = arith.sitofp %24 : vector<128x512xi32> to vector<128x512xf32>
    %26 = arith.addf %20, %25 : vector<128x512xf32>
    %27 = vector.extract_strided_slice %3 {offsets = [0, 3], sizes = [128, 1], strides = [1, 1]} : vector<128x16xi32> to vector<128x1xi32>
    %28 = vector.broadcast %27 : vector<128x1xi32> to vector<128x512xi32>
    %29 = arith.cmpi eq, %28, %7 : vector<128x512xi32>
    %30 = arith.extui %29 : vector<128x512xi1> to vector<128x512xi32>
    %31 = arith.sitofp %30 : vector<128x512xi32> to vector<128x512xf32>
    %32 = arith.addf %26, %31 : vector<128x512xf32>
    %33 = vector.extract_strided_slice %3 {offsets = [0, 4], sizes = [128, 1], strides = [1, 1]} : vector<128x16xi32> to vector<128x1xi32>
    %34 = vector.broadcast %33 : vector<128x1xi32> to vector<128x512xi32>
    %35 = arith.cmpi eq, %34, %7 : vector<128x512xi32>
    %36 = arith.extui %35 : vector<128x512xi1> to vector<128x512xi32>
    %37 = arith.sitofp %36 : vector<128x512xi32> to vector<128x512xf32>
    %38 = arith.addf %32, %37 : vector<128x512xf32>
    %39 = vector.extract_strided_slice %3 {offsets = [0, 5], sizes = [128, 1], strides = [1, 1]} : vector<128x16xi32> to vector<128x1xi32>
    %40 = vector.broadcast %39 : vector<128x1xi32> to vector<128x512xi32>
    %41 = arith.cmpi eq, %40, %7 : vector<128x512xi32>
    %42 = arith.extui %41 : vector<128x512xi1> to vector<128x512xi32>
    %43 = arith.sitofp %42 : vector<128x512xi32> to vector<128x512xf32>
    %44 = arith.addf %38, %43 : vector<128x512xf32>
    %45 = vector.extract_strided_slice %3 {offsets = [0, 6], sizes = [128, 1], strides = [1, 1]} : vector<128x16xi32> to vector<128x1xi32>
    %46 = vector.broadcast %45 : vector<128x1xi32> to vector<128x512xi32>
    %47 = arith.cmpi eq, %46, %7 : vector<128x512xi32>
    %48 = arith.extui %47 : vector<128x512xi1> to vector<128x512xi32>
    %49 = arith.sitofp %48 : vector<128x512xi32> to vector<128x512xf32>
    %50 = arith.addf %44, %49 : vector<128x512xf32>
    %51 = vector.extract_strided_slice %3 {offsets = [0, 7], sizes = [128, 1], strides = [1, 1]} : vector<128x16xi32> to vector<128x1xi32>
    %52 = vector.broadcast %51 : vector<128x1xi32> to vector<128x512xi32>
    %53 = arith.cmpi eq, %52, %7 : vector<128x512xi32>
    %54 = arith.extui %53 : vector<128x512xi1> to vector<128x512xi32>
    %55 = arith.sitofp %54 : vector<128x512xi32> to vector<128x512xf32>
    %56 = arith.addf %50, %55 : vector<128x512xf32>
    %57 = vector.extract_strided_slice %3 {offsets = [0, 8], sizes = [128, 1], strides = [1, 1]} : vector<128x16xi32> to vector<128x1xi32>
    %58 = vector.broadcast %57 : vector<128x1xi32> to vector<128x512xi32>
    %59 = arith.cmpi eq, %58, %7 : vector<128x512xi32>
    %60 = arith.extui %59 : vector<128x512xi1> to vector<128x512xi32>
    %61 = arith.sitofp %60 : vector<128x512xi32> to vector<128x512xf32>
    %62 = arith.addf %56, %61 : vector<128x512xf32>
    %63 = vector.extract_strided_slice %3 {offsets = [0, 9], sizes = [128, 1], strides = [1, 1]} : vector<128x16xi32> to vector<128x1xi32>
    %64 = vector.broadcast %63 : vector<128x1xi32> to vector<128x512xi32>
    %65 = arith.cmpi eq, %64, %7 : vector<128x512xi32>
    %66 = arith.extui %65 : vector<128x512xi1> to vector<128x512xi32>
    %67 = arith.sitofp %66 : vector<128x512xi32> to vector<128x512xf32>
    %68 = arith.addf %62, %67 : vector<128x512xf32>
    %69 = vector.extract_strided_slice %3 {offsets = [0, 10], sizes = [128, 1], strides = [1, 1]} : vector<128x16xi32> to vector<128x1xi32>
    %70 = vector.broadcast %69 : vector<128x1xi32> to vector<128x512xi32>
    %71 = arith.cmpi eq, %70, %7 : vector<128x512xi32>
    %72 = arith.extui %71 : vector<128x512xi1> to vector<128x512xi32>
    %73 = arith.sitofp %72 : vector<128x512xi32> to vector<128x512xf32>
    %74 = arith.addf %68, %73 : vector<128x512xf32>
    %75 = vector.extract_strided_slice %3 {offsets = [0, 11], sizes = [128, 1], strides = [1, 1]} : vector<128x16xi32> to vector<128x1xi32>
    %76 = vector.broadcast %75 : vector<128x1xi32> to vector<128x512xi32>
    %77 = arith.cmpi eq, %76, %7 : vector<128x512xi32>
    %78 = arith.extui %77 : vector<128x512xi1> to vector<128x512xi32>
    %79 = arith.sitofp %78 : vector<128x512xi32> to vector<128x512xf32>
    %80 = arith.addf %74, %79 : vector<128x512xf32>
    %81 = vector.extract_strided_slice %3 {offsets = [0, 12], sizes = [128, 1], strides = [1, 1]} : vector<128x16xi32> to vector<128x1xi32>
    %82 = vector.broadcast %81 : vector<128x1xi32> to vector<128x512xi32>
    %83 = arith.cmpi eq, %82, %7 : vector<128x512xi32>
    %84 = arith.extui %83 : vector<128x512xi1> to vector<128x512xi32>
    %85 = arith.sitofp %84 : vector<128x512xi32> to vector<128x512xf32>
    %86 = arith.addf %80, %85 : vector<128x512xf32>
    %87 = vector.extract_strided_slice %3 {offsets = [0, 13], sizes = [128, 1], strides = [1, 1]} : vector<128x16xi32> to vector<128x1xi32>
    %88 = vector.broadcast %87 : vector<128x1xi32> to vector<128x512xi32>
    %89 = arith.cmpi eq, %88, %7 : vector<128x512xi32>
    %90 = arith.extui %89 : vector<128x512xi1> to vector<128x512xi32>
    %91 = arith.sitofp %90 : vector<128x512xi32> to vector<128x512xf32>
    %92 = arith.addf %86, %91 : vector<128x512xf32>
    %93 = vector.extract_strided_slice %3 {offsets = [0, 14], sizes = [128, 1], strides = [1, 1]} : vector<128x16xi32> to vector<128x1xi32>
    %94 = vector.broadcast %93 : vector<128x1xi32> to vector<128x512xi32>
    %95 = arith.cmpi eq, %94, %7 : vector<128x512xi32>
    %96 = arith.extui %95 : vector<128x512xi1> to vector<128x512xi32>
    %97 = arith.sitofp %96 : vector<128x512xi32> to vector<128x512xf32>
    %98 = arith.addf %92, %97 : vector<128x512xf32>
    %99 = vector.extract_strided_slice %3 {offsets = [0, 15], sizes = [128, 1], strides = [1, 1]} : vector<128x16xi32> to vector<128x1xi32>
    %100 = vector.broadcast %99 : vector<128x1xi32> to vector<128x512xi32>
    %101 = arith.cmpi eq, %100, %7 : vector<128x512xi32>
    %102 = arith.extui %101 : vector<128x512xi1> to vector<128x512xi32>
    %103 = arith.sitofp %102 : vector<128x512xi32> to vector<128x512xf32>
    %104 = arith.addf %98, %103 : vector<128x512xf32>
    %cst_2 = arith.constant 6.250000e-02 : f32
    %105 = vector.broadcast %cst_2 : f32 to vector<128x512xf32>
    %106 = arith.mulf %104, %105 : vector<128x512xf32>
    %107 = arith.truncf %106 : vector<128x512xf32> to vector<128x512xbf16>
    %c0_3 = arith.constant 0 : index
    %c0_4 = arith.constant 0 : index
    %108 = vector.load %arg9[%c0_3, %c0_4] : memref<128x128xf32, #tpu.memory_space<vmem>>, vector<128x128xf32>
    %c0_5 = arith.constant 0 : index
    %c0_6 = arith.constant 0 : index
    %109 = vector.load %arg3[%c0_5, %c0_6] : memref<512x128xbf16, #tpu.memory_space<vmem>>, vector<512x128xbf16>
    %cst_7 = arith.constant dense<0.000000e+00> : vector<128x128xf32>
    %110 = tpu.matmul %107, %109, %cst_7 {dimension_numbers = #tpu.dot_dimension_numbers<[1], [0], [0], [1], [0, 0, 1, 1], [], []>} : vector<128x512xbf16>, vector<512x128xbf16>, vector<128x128xf32> -> vector<128x128xf32>
    %111 = arith.addf %108, %110 : vector<128x128xf32>
    %c0_8 = arith.constant 0 : index
    %c0_9 = arith.constant 0 : index
    %112 = vector.load %arg9[%c0_8, %c0_9] : memref<128x128xf32, #tpu.memory_space<vmem>>, vector<128x128xf32>
    tpu.vector_store %arg9[%c0_8, %c0_9], %111 {strides = array<i32>} : memref<128x128xf32, #tpu.memory_space<vmem>>, vector<128x128xf32>,
    %c0_i32_10 = arith.constant 0 : i32
    %113 = arith.cmpi eq, %arg1, %c0_i32_10 : i32
    %114 = arith.extui %113 : i1 to i32
    %c0_i32_11 = arith.constant 0 : i32
    %115 = arith.cmpi ne, %114, %c0_i32_11 : i32
    scf.if %115 {
      %c0_12 = arith.constant 0 : index
      %c0_13 = arith.constant 0 : index
      %116 = vector.load %arg9[%c0_12, %c0_13] : memref<128x128xf32, #tpu.memory_space<vmem>>, vector<128x128xf32>
      %117 = arith.truncf %116 : vector<128x128xf32> to vector<128x128xbf16>
      %c0_14 = arith.constant 0 : index
      %c0_15 = arith.constant 0 : index
      %118 = vector.load %arg4[%c0_14, %c0_15] : memref<128x128xbf16, #tpu.memory_space<vmem>>, vector<128x128xbf16>
      %cst_16 = arith.constant dense<0.000000e+00> : vector<128x128xf32>
      %119 = tpu.matmul %117, %118, %cst_16 {dimension_numbers = #tpu.dot_dimension_numbers<[1], [0], [0], [1], [0, 0, 1, 1], [], []>} : vector<128x128xbf16>, vector<128x128xbf16>, vector<128x128xf32> -> vector<128x128xf32>
      %c0_17 = arith.constant 0 : index
      %c0_18 = arith.constant 0 : index
      %120 = vector.load %arg5[%c0_17, %c0_18] : memref<1x128xf32, #tpu.memory_space<vmem>>, vector<1x128xf32>
      %121 = vector.broadcast %120 : vector<1x128xf32> to vector<128x128xf32>
      %122 = arith.addf %119, %121 : vector<128x128xf32>
      %cst_19 = arith.constant 0.000000e+00 : f32
      %123 = vector.broadcast %cst_19 : f32 to vector<128x128xf32>
      %124 = arith.maximumf %122, %123 : vector<128x128xf32>
      %125 = arith.truncf %124 : vector<128x128xf32> to vector<128x128xbf16>
      %c0_20 = arith.constant 0 : index
      %c0_21 = arith.constant 0 : index
      %126 = vector.load %arg6[%c0_20, %c0_21] : memref<128x128xbf16, #tpu.memory_space<vmem>>, vector<128x128xbf16>
      %cst_22 = arith.constant dense<0.000000e+00> : vector<128x128xf32>
      %127 = tpu.matmul %125, %126, %cst_22 {dimension_numbers = #tpu.dot_dimension_numbers<[1], [0], [0], [1], [0, 0, 1, 1], [], []>} : vector<128x128xbf16>, vector<128x128xbf16>, vector<128x128xf32> -> vector<128x128xf32>
      %c0_23 = arith.constant 0 : index
      %c0_24 = arith.constant 0 : index
      %128 = vector.load %arg7[%c0_23, %c0_24] : memref<1x128xf32, #tpu.memory_space<vmem>>, vector<1x128xf32>
      %129 = vector.broadcast %128 : vector<1x128xf32> to vector<128x128xf32>
      %130 = arith.addf %127, %129 : vector<128x128xf32>
      %c0_25 = arith.constant 0 : index
      %c0_26 = arith.constant 0 : index
      %131 = vector.load %arg8[%c0_25, %c0_26] : memref<128x128xf32, #tpu.memory_space<vmem>>, vector<128x128xf32>
      tpu.vector_store %arg8[%c0_25, %c0_26], %130 {strides = array<i32>} : memref<128x128xf32, #tpu.memory_space<vmem>>, vector<128x128xf32>,
    } else {
    }
    return
  }
  func.func @transform_0(%arg0: i32, %arg1: i32) -> (i32, i32) {
    %c0_i32 = arith.constant 0 : i32
    %c0_i32_0 = arith.constant 0 : i32
    return %arg0, %c0_i32 : i32, i32
  }
  func.func @transform_1(%arg0: i32, %arg1: i32) -> (i32, i32) {
    %c0_i32 = arith.constant 0 : i32
    %c0_i32_0 = arith.constant 0 : i32
    return %arg1, %c0_i32 : i32, i32
  }
  func.func @transform_2(%arg0: i32, %arg1: i32) -> (i32, i32) {
    %c0_i32 = arith.constant 0 : i32
    %c0_i32_0 = arith.constant 0 : i32
    %c0_i32_1 = arith.constant 0 : i32
    return %c0_i32, %c0_i32_0 : i32, i32
  }
  func.func @transform_3(%arg0: i32, %arg1: i32) -> (i32, i32) {
    %c0_i32 = arith.constant 0 : i32
    %c0_i32_0 = arith.constant 0 : i32
    %c0_i32_1 = arith.constant 0 : i32
    return %c0_i32, %c0_i32_0 : i32, i32
  }
  func.func @transform_4(%arg0: i32, %arg1: i32) -> (i32, i32) {
    %c0_i32 = arith.constant 0 : i32
    %c0_i32_0 = arith.constant 0 : i32
    %c0_i32_1 = arith.constant 0 : i32
    return %c0_i32, %c0_i32_0 : i32, i32
  }
  func.func @transform_5(%arg0: i32, %arg1: i32) -> (i32, i32) {
    %c0_i32 = arith.constant 0 : i32
    %c0_i32_0 = arith.constant 0 : i32
    %c0_i32_1 = arith.constant 0 : i32
    return %c0_i32, %c0_i32_0 : i32, i32
  }
  func.func @transform_6(%arg0: i32, %arg1: i32) -> (i32, i32) {
    %c0_i32 = arith.constant 0 : i32
    %c0_i32_0 = arith.constant 0 : i32
    return %arg0, %c0_i32 : i32, i32
  }
}

</mosaic_0001>

<llo_original>
// kernel: tpu_custom_call.1
$region0: #{tpu_custom_call.1}
  #allocation0 [shape = 'u32[]', space=smem, size = 0x4, offset = 0x4, fixed_abs, tag = 'smem constant byte address 0x4 - core index']
  #allocation1 [shape = 'u32[144,128]{1,0:T(1,128)}', space=vmem, size = 0x12000, scoped, tag = 'internal scratch']
  #allocation2 [shape = 'f32[128,128]{1,0:T(8,128)}', space=vmem, size = 0x10000, scoped, tag = 'scratch operand']
  %s0 = inlined_call_operand.vmem [shape: s32[256,16], index: 0, kind: input, shape index: {}]
  %s1 = inlined_call_operand.vmem [shape: bf16[512,128], index: 1, kind: input, shape index: {}]
  %s2 = inlined_call_operand.hbm [shape: bf16[128,128], index: 2, kind: input, shape index: {}]
  %s3 = inlined_call_operand.vmem [shape: f32[1,128], index: 3, kind: input, shape index: {}]
  %s4 = inlined_call_operand.hbm [shape: bf16[128,128], index: 4, kind: input, shape index: {}]
  %s5 = inlined_call_operand.vmem [shape: f32[1,128], index: 5, kind: input, shape index: {}]
  %s6 = inlined_call_operand.hbm [shape: f32[256,128], index: 6, kind: output, shape index: {}]
  %s7 = sld [smem:[#allocation0]]
  $region73: #{tpu_custom_call.1} parent=0
    _
  %s9 = ssub.s32 1, %s7
  %s10 = scalar_select 0, %s9, %s7
  $region1: #{tpu_custom_call.1} parent=0
    #allocation3 [shape = 'u8[32768]{0}', space=vmem, size = 0x8000, scoped, tag = 'input window, operand 2, single buffered']
    #allocation4 [shape = 's32[2]{0}', space=sflag, size = 0x8, scoped, tag = 'scoped memory for tpu_custom_call.1']
    #allocation5 [shape = 's32[2]{0}', space=sflag, size = 0x8, scoped, tag = 'scoped memory for tpu_custom_call.1']
    #allocation6 [shape = 'u8[32768]{0}', space=vmem, size = 0x8000, scoped, tag = 'input window, operand 4, single buffered']
    #allocation7 [shape = 's32[1]{0}', space=sflag, size = 0x4, scoped, tag = 'scoped memory for tpu_custom_call.1']
    #allocation8 [shape = 'u8[131072]{0}', space=vmem, size = 0x20000, scoped, tag = 'output window, operand 0']
    %11 = vsyncpa [#allocation4], 0
    %12 = vsyncpa [#allocation7], 0
    %13 = vsyncpa [#allocation5], 0
    %s14 = scalar_lea.sflag [#allocation5], 1
    %15 = vsyncpa %s14, 0
    loop: start=0, step=1, limit=4
    $region2: #{tpu_custom_call.1} parent=1 // loop_pre_header
      _
    $region3: #{tpu_custom_call.1} parent=1 // loop_header
      %s17 = sphi 0, %s21
      %p18 = scmp.ge.s32.totalorder %s17, 4
      %s24 = sphi 0, %s36
      %s25 = sphi 0, %s32
      %s26 = sphi 0, %s24
      %s27 = sphi 0, %s25
      %s28 = sphi 0, %s26
      %s29 = sphi 0, %s27
      %s39 = sphi 0, %s41
      %s42 = sphi 0, %s39
      %s43 = sphi 0, %s42
      %s59 = sphi 0, %s43
      %s65 = sphi 0, %s67
      %s68 = sphi 0, %s65
      %s69 = sphi 0, %s68
      %s85 = sphi 0, %s69
      %s89 = sphi 0, %s89
      %s91 = sphi 0, %s89
      %s92 = sphi 0, %s91
      %s106 = sphi 0, %s92
      %s110 = sphi 0, %s110
      %s112 = sphi 0, %s110
      %s113 = sphi 0, %s112
      %s127 = sphi 0, %s113
      %s131 = sphi 0, %s131
      %s133 = sphi 0, %s131
      %s134 = sphi 0, %s133
      %s148 = sphi 0, %s134
      %s152 = sphi 0, %s152
      %s154 = sphi 0, %s152
      %s155 = sphi 0, %s154
      %s169 = sphi 0, %s155
      %s175 = sphi 0, %s177
      %s178 = sphi 0, %s175
      %s179 = sphi 0, %s178
      %s195 = sphi 0, %s179
    $region4: #{tpu_custom_call.1} parent=1 // loop_header_branch
      %20 = sbr.rel (%p18) target = $region8
    $region5: #{tpu_custom_call.1} parent=1 // loop_body
      %s22 = ssub.s32 %s17, 1
      %s23 = ssub.s32 %s17, 2
      %s30 = sadd.s32 1, %s25
      %p31 = scmp.ge.s32.totalorder %s30, 1
      %s32 = scalar_select %p31, 0, %s30
      %s33 = sadd.s32 1, %s24
      %s34 = scalar_select %p31, %s33, %s24
      %p35 = scmp.ge.s32.totalorder %s34, 2
      %s36 = scalar_select %p35, 0, %s34
      %s37 = ssub.s32 %s24, %s36
      %p38 = scmp.eq.s32.totalorder %s37, 0
      %s40 = sadd.s32 %s39, 1
      %s41 = scalar_select %p38, %s39, %s40
      %p44 = pneg %p38
      %p45 = scmp.eq.s32.totalorder %s17, 1
      %p46 = por %p44, %p45
      %p47 = scmp.ne.s32.totalorder %s39, %s42
      %p48 = scmp.eq.s32.totalorder %s17, 0
      %p49 = por %p47, %p48
      %p50 = scmp.ne.s32.totalorder %s39, %s42
      %p51 = scmp.eq.s32.totalorder %s22, 1
      %p52 = por %p50, %p51
      %p53 = scmp.ne.s32.totalorder %s42, %s43
      %p54 = scmp.eq.s32.totalorder %s22, 0
      %p55 = por %p53, %p54
      %p56 = scmp.ne.s32.totalorder %s42, %s43
      %p57 = scmp.eq.s32.totalorder %s23, 1
      %p58 = por %p56, %p57
      %p60 = scmp.ne.s32.totalorder %s43, %s59
      %p61 = scmp.eq.s32.totalorder %s23, 0
      %p62 = por %p60, %p61
      %s63 = ssub.s32 %s25, %s32
      %p64 = scmp.eq.s32.totalorder %s63, 0
      %s66 = sadd.s32 %s65, 1
      %s67 = scalar_select %p64, %s65, %s66
      %p70 = pneg %p64
      %p71 = scmp.eq.s32.totalorder %s17, 1
      %p72 = por %p70, %p71
      %p73 = scmp.ne.s32.totalorder %s65, %s68
      %p74 = scmp.eq.s32.totalorder %s17, 0
      %p75 = por %p73, %p74
      %p76 = scmp.ne.s32.totalorder %s65, %s68
      %p77 = scmp.eq.s32.totalorder %s22, 1
      %p78 = por %p76, %p77
      %p79 = scmp.ne.s32.totalorder %s68, %s69
      %p80 = scmp.eq.s32.totalorder %s22, 0
      %p81 = por %p79, %p80
      %p82 = scmp.ne.s32.totalorder %s68, %s69
      %p83 = scmp.eq.s32.totalorder %s23, 1
      %p84 = por %p82, %p83
      %p86 = scmp.ne.s32.totalorder %s69, %s85
      %p87 = scmp.eq.s32.totalorder %s23, 0
      %p88 = por %p86, %p87
      %s90 = sadd.s32 %s89, 1
      %p93 = scmp.eq.s32.totalorder %s17, 1
      %p94 = scmp.ne.s32.totalorder %s89, %s91
      %p95 = scmp.eq.s32.totalorder %s17, 0
      %p96 = por %p94, %p95
      %p97 = scmp.ne.s32.totalorder %s89, %s91
      %p98 = scmp.eq.s32.totalorder %s22, 1
      %p99 = por %p97, %p98
      %p100 = scmp.ne.s32.totalorder %s91, %s92
      %p101 = scmp.eq.s32.totalorder %s22, 0
      %p102 = por %p100, %p101
      %p103 = scmp.ne.s32.totalorder %s91, %s92
      %p104 = scmp.eq.s32.totalorder %s23, 1
      %p105 = por %p103, %p104
      %p107 = scmp.ne.s32.totalorder %s92, %s106
      %p108 = scmp.eq.s32.totalorder %s23, 0
      %p109 = por %p107, %p108
      %s111 = sadd.s32 %s110, 1
      %p114 = scmp.eq.s32.totalorder %s17, 1
      %p115 = scmp.ne.s32.totalorder %s110, %s112
      %p116 = scmp.eq.s32.totalorder %s17, 0
      %p117 = por %p115, %p116
      %p118 = scmp.ne.s32.totalorder %s110, %s112
      %p119 = scmp.eq.s32.totalorder %s22, 1
      %p120 = por %p118, %p119
      %p121 = scmp.ne.s32.totalorder %s112, %s113
      %p122 = scmp.eq.s32.totalorder %s22, 0
      %p123 = por %p121, %p122
      %p124 = scmp.ne.s32.totalorder %s112, %s113
      %p125 = scmp.eq.s32.totalorder %s23, 1
      %p126 = por %p124, %p125
      %p128 = scmp.ne.s32.totalorder %s113, %s127
      %p129 = scmp.eq.s32.totalorder %s23, 0
      %p130 = por %p128, %p129
      %s132 = sadd.s32 %s131, 1
      %p135 = scmp.eq.s32.totalorder %s17, 1
      %p136 = scmp.ne.s32.totalorder %s131, %s133
      %p137 = scmp.eq.s32.totalorder %s17, 0
      %p138 = por %p136, %p137
      %p139 = scmp.ne.s32.totalorder %s131, %s133
      %p140 = scmp.eq.s32.totalorder %s22, 1
      %p141 = por %p139, %p140
      %p142 = scmp.ne.s32.totalorder %s133, %s134
      %p143 = scmp.eq.s32.totalorder %s22, 0
      %p144 = por %p142, %p143
      %p145 = scmp.ne.s32.totalorder %s133, %s134
      %p146 = scmp.eq.s32.totalorder %s23, 1
      %p147 = por %p145, %p146
      %p149 = scmp.ne.s32.totalorder %s134, %s148
      %p150 = scmp.eq.s32.totalorder %s23, 0
      %p151 = por %p149, %p150
      %s153 = sadd.s32 %s152, 1
      %p156 = scmp.eq.s32.totalorder %s17, 1
      %p157 = scmp.ne.s32.totalorder %s152, %s154
      %p158 = scmp.eq.s32.totalorder %s17, 0
      %p159 = por %p157, %p158
      %p160 = scmp.ne.s32.totalorder %s152, %s154
      %p161 = scmp.eq.s32.totalorder %s22, 1
      %p162 = por %p160, %p161
      %p163 = scmp.ne.s32.totalorder %s154, %s155
      %p164 = scmp.eq.s32.totalorder %s22, 0
      %p165 = por %p163, %p164
      %p166 = scmp.ne.s32.totalorder %s154, %s155
      %p167 = scmp.eq.s32.totalorder %s23, 1
      %p168 = por %p166, %p167
      %p170 = scmp.ne.s32.totalorder %s155, %s169
      %p171 = scmp.eq.s32.totalorder %s23, 0
      %p172 = por %p170, %p171
      %s173 = ssub.s32 %s24, %s36
      %p174 = scmp.eq.s32.totalorder %s173, 0
      %s176 = sadd.s32 %s175, 1
      %s177 = scalar_select %p174, %s175, %s176
      %p180 = pneg %p174
      %p181 = scmp.eq.s32.totalorder %s17, 1
      %p182 = por %p180, %p181
      %p183 = scmp.ne.s32.totalorder %s175, %s178
      %p184 = scmp.eq.s32.totalorder %s17, 0
      %p185 = por %p183, %p184
      %p186 = scmp.ne.s32.totalorder %s175, %s178
      %p187 = scmp.eq.s32.totalorder %s22, 1
      %p188 = por %p186, %p187
      %p189 = scmp.ne.s32.totalorder %s178, %s179
      %p190 = scmp.eq.s32.totalorder %s22, 0
      %p191 = por %p189, %p190
      %p192 = scmp.ne.s32.totalorder %s178, %s179
      %p193 = scmp.eq.s32.totalorder %s23, 1
      %p194 = por %p192, %p193
      %p196 = scmp.ne.s32.totalorder %s179, %s195
      %p197 = scmp.eq.s32.totalorder %s23, 0
      %p198 = por %p196, %p197
      %p199 = scmp.le.s32.totalorder 1, %s17
      %p200 = scmp.lt.s32.totalorder %s17, 3
      %p201 = pnand %p199, %p200
      %p202 = pneg %p201
      // Predicated region
      $region9: #{tpu_custom_call.1} parent=5 // pred_check
        _
      $region10: #{tpu_custom_call.1} parent=5 // pred_check_branch
        %204 = sbr.rel (%p201) target = $region12
      $region11: #{tpu_custom_call.1} parent=5 // pred_region
        %s205 = ssub.s32 %s17, 1
        // Predicated region
        $region13: #{tpu_custom_call.1} parent=11 // pred_check
          %p206 = pneg %p81
        $region14: #{tpu_custom_call.1} parent=11 // pred_check_branch
          %208 = sbr.rel (%p206) target = $region16
        $region15: #{tpu_custom_call.1} parent=11 // pred_region
          %s209 = smul.u32 64, %s27
          %p210 = scmp.lt.s32.totalorder %s209, 63
          %s211 = scalar_select %p210, %s209, 63
          %s212 = smul.addr %s211, 4
          %s213 = scalar_lea.vmem %s1, %s212
          %s214 = smul.u32 64, %s27
        $region16: #{tpu_custom_call.1} parent=11 // pred_fallthru
          _
        // Predicated region
        $region17: #{tpu_custom_call.1} parent=11 // pred_check
          %p215 = pneg %p102
        $region18: #{tpu_custom_call.1} parent=11 // pred_check_branch
          %217 = sbr.rel (%p215) target = $region20
        $region19: #{tpu_custom_call.1} parent=11 // pred_region
          %s219 = ssub.s32 1024, 1024
          %220 = vsyncadd [#allocation4], %s219
          %s221 = sshll.u32 [#allocation3], 4
          %s222 = int_to_ptr.vmem [resolvable:$true] %s221
          %227 = dma.hbm_to_vmem [thread:$0]  %s2, 1024, %s222, [#allocation4], 64, 64, 4
        $region20: #{tpu_custom_call.1} parent=11 // pred_fallthru
          _
        // Predicated region
        $region21: #{tpu_custom_call.1} parent=11 // pred_check
          %p228 = pneg %p123
        $region22: #{tpu_custom_call.1} parent=11 // pred_check_branch
          %230 = sbr.rel (%p228) target = $region24
        $region23: #{tpu_custom_call.1} parent=11 // pred_region
          _
        $region24: #{tpu_custom_call.1} parent=11 // pred_fallthru
          _
        // Predicated region
        $region25: #{tpu_custom_call.1} parent=11 // pred_check
          %p231 = pneg %p144
        $region26: #{tpu_custom_call.1} parent=11 // pred_check_branch
          %233 = sbr.rel (%p231) target = $region28
        $region27: #{tpu_custom_call.1} parent=11 // pred_region
          %s235 = ssub.s32 1024, 1024
          %236 = vsyncadd [#allocation7], %s235
          %s237 = sshll.u32 [#allocation6], 4
          %s238 = int_to_ptr.vmem [resolvable:$true] %s237
          %243 = dma.hbm_to_vmem [thread:$0]  %s4, 1024, %s238, [#allocation7], 64, 64, 4
        $region28: #{tpu_custom_call.1} parent=11 // pred_fallthru
          _
        // Predicated region
        $region29: #{tpu_custom_call.1} parent=11 // pred_check
          %p244 = pneg %p165
        $region30: #{tpu_custom_call.1} parent=11 // pred_check_branch
          %246 = sbr.rel (%p244) target = $region32
        $region31: #{tpu_custom_call.1} parent=11 // pred_region
          _
        $region32: #{tpu_custom_call.1} parent=11 // pred_fallthru
          _
      $region12: #{tpu_custom_call.1} parent=5 // pred_fallthru
        _
      %p247 = scmp.lt.s32.totalorder %s17, 2
      // Predicated region
      $region33: #{tpu_custom_call.1} parent=5 // pred_check
        %p248 = pneg %p247
      $region34: #{tpu_custom_call.1} parent=5 // pred_check_branch
        %250 = sbr.rel (%p248) target = $region36
      $region35: #{tpu_custom_call.1} parent=5 // pred_region
        // Predicated region
        $region37: #{tpu_custom_call.1} parent=35 // pred_check
          %p251 = pneg %p49
        $region38: #{tpu_custom_call.1} parent=35 // pred_check_branch
          %253 = sbr.rel (%p251) target = $region40
        $region39: #{tpu_custom_call.1} parent=35 // pred_region
          %s254 = smul.u32 16, %s24
          %p255 = scmp.lt.s32.totalorder %s254, 31
          %s256 = scalar_select %p255, %s254, 31
          %s257 = smul.addr %s256, 8
          %s258 = scalar_lea.vmem %s0, %s257
          %s259 = smul.u32 16, %s24
        $region40: #{tpu_custom_call.1} parent=35 // pred_fallthru
          _
      $region36: #{tpu_custom_call.1} parent=5 // pred_fallthru
        _
      %p260 = scmp.le.s32.totalorder 1, %s17
      %p261 = scmp.lt.s32.totalorder %s17, 3
      %p262 = pnand %p260, %p261
      %p263 = pneg %p262
      // Predicated region
      $region41: #{tpu_custom_call.1} parent=5 // pred_check
        _
      $region42: #{tpu_custom_call.1} parent=5 // pred_check_branch
        %265 = sbr.rel (%p262) target = $region44
      $region43: #{tpu_custom_call.1} parent=5 // pred_region
        %s266 = ssub.s32 %s17, 1
        // Predicated region
        $region45: #{tpu_custom_call.1} parent=43 // pred_check
          %p267 = pneg %p102
        $region46: #{tpu_custom_call.1} parent=43 // pred_check_branch
          %269 = sbr.rel (%p267) target = $region48
        $region47: #{tpu_custom_call.1} parent=43 // pred_region
          %270 = dma.done [#allocation4], 1024
        $region48: #{tpu_custom_call.1} parent=43 // pred_fallthru
          _
        // Predicated region
        $region49: #{tpu_custom_call.1} parent=43 // pred_check
          %p271 = pneg %p144
        $region50: #{tpu_custom_call.1} parent=43 // pred_check_branch
          %273 = sbr.rel (%p271) target = $region52
        $region51: #{tpu_custom_call.1} parent=43 // pred_region
          %274 = dma.done [#allocation7], 1024
        $region52: #{tpu_custom_call.1} parent=43 // pred_fallthru
          _
        %s275 = smul.u32 16, %s26
        %p276 = scmp.lt.s32.totalorder %s275, 31
        %s277 = scalar_select %p276, %s275, 31
        %s278 = smul.addr %s277, 8
        %s279 = scalar_lea.vmem %s0, %s278
        %p280 = pneg %p55
        %p281 = pneg %p52
        %s282 = smul.u32 64, %s27
        %p283 = scmp.lt.s32.totalorder %s282, 63
        %s284 = scalar_select %p283, %s282, 63
        %s285 = smul.addr %s284, 4
        %s286 = scalar_lea.vmem %s1, %s285
        %p287 = pneg %p81
        %p288 = pneg %p78
        %p289 = pneg %p102
        %p290 = pneg %p99
        %p291 = pneg %p123
        %p292 = pneg %p120
        %p293 = pneg %p144
        %p294 = pneg %p141
        %p295 = pneg %p165
        %p296 = pneg %p162
        %p297 = pneg %p191
        %p298 = pneg %p188
        %s299 = sand.u32 %s178, 1
        %s300 = scalar_lea.sflag [#allocation5], %s299
        %s301 = sand.u32 %s178, 1
        %s302 = smul.addr %s301, 128
        %s303 = scalar_lea.vmem [#allocation8], %s302
        %s304 = smul.u32 16, %s26
        %p305 = scmp.lt.s32.totalorder %s304, 31
        %s306 = scalar_select %p305, %s304, 31
        %s307 = smul.addr %s306, 8
        %s308 = scalar_lea.vmem %s0, %s307
        %s309 = smul.u32 16, %s26
        %s310 = smul.u32 64, %s27
        %p311 = scmp.lt.s32.totalorder %s310, 63
        %s312 = scalar_select %p311, %s310, 63
        %s313 = smul.addr %s312, 4
        %s314 = scalar_lea.vmem %s1, %s313
        %s315 = smul.u32 64, %s27
        %s316 = smul.u32 16, %s26
        %p318 = scmp.eq.s32.totalorder %s27, 0
        // Predicated region
        $region53: #{tpu_custom_call.1} parent=43 // pred_check
          %p319 = pneg %p318
        $region54: #{tpu_custom_call.1} parent=43 // pred_check_branch
          %321 = sbr.rel (%p319) target = $region56
        $region55: #{tpu_custom_call.1} parent=43 // pred_region
          %322 = vst [vmem:[#allocation2] sm:$0xff] 0.0
          %323 = vst [vmem:[#allocation2 + $0x8] sm:$0xff] 0.0
          %324 = vst [vmem:[#allocation2 + $0x10] sm:$0xff] 0.0
          %325 = vst [vmem:[#allocation2 + $0x18] sm:$0xff] 0.0
          %326 = vst [vmem:[#allocation2 + $0x20] sm:$0xff] 0.0
          %327 = vst [vmem:[#allocation2 + $0x28] sm:$0xff] 0.0
          %328 = vst [vmem:[#allocation2 + $0x30] sm:$0xff] 0.0
          %329 = vst [vmem:[#allocation2 + $0x38] sm:$0xff] 0.0
          %330 = vst [vmem:[#allocation2 + $0x40] sm:$0xff] 0.0
          %331 = vst [vmem:[#allocation2 + $0x48] sm:$0xff] 0.0
          %332 = vst [vmem:[#allocation2 + $0x50] sm:$0xff] 0.0
          %333 = vst [vmem:[#allocation2 + $0x58] sm:$0xff] 0.0
          %334 = vst [vmem:[#allocation2 + $0x60] sm:$0xff] 0.0
          %335 = vst [vmem:[#allocation2 + $0x68] sm:$0xff] 0.0
          %336 = vst [vmem:[#allocation2 + $0x70] sm:$0xff] 0.0
          %337 = vst [vmem:[#allocation2 + $0x78] sm:$0xff] 0.0
        $region56: #{tpu_custom_call.1} parent=43 // pred_fallthru
          _
        %v338 = vld [vmem:[%s308] sm:$0xff]
        %v339 = vld [vmem:[%s308 + $0x8] sm:$0xff]
        %v340 = vld [vmem:[%s308 + $0x10] sm:$0xff]
        %v341 = vld [vmem:[%s308 + $0x18] sm:$0xff]
        %v342 = vld [vmem:[%s308 + $0x20] sm:$0xff]
        %v343 = vld [vmem:[%s308 + $0x28] sm:$0xff]
        %v344 = vld [vmem:[%s308 + $0x30] sm:$0xff]
        %v345 = vld [vmem:[%s308 + $0x38] sm:$0xff]
        %v346 = vld [vmem:[%s308 + $0x40] sm:$0xff]
        %v347 = vld [vmem:[%s308 + $0x48] sm:$0xff]
        %v348 = vld [vmem:[%s308 + $0x50] sm:$0xff]
        %v349 = vld [vmem:[%s308 + $0x58] sm:$0xff]
        %v350 = vld [vmem:[%s308 + $0x60] sm:$0xff]
        %v351 = vld [vmem:[%s308 + $0x68] sm:$0xff]
        %v352 = vld [vmem:[%s308 + $0x70] sm:$0xff]
        %v353 = vld [vmem:[%s308 + $0x78] sm:$0xff]
        %v354 = vlaneseq
        %v355 = vand.u32 %v354, 127
        %v356 = vadd.s32 %v355, 128
        %v357 = vadd.s32 %v355, 256
        %v358 = vadd.s32 %v355, 384
        %s359 = smul.u32 %s27, 512
        %v360 = vstv %s359
        %v361 = vadd.s32 %v355, %v360
        %v362 = vadd.s32 %v356, %v360
        %v363 = vadd.s32 %v357, %v360
        %v364 = vadd.s32 %v358, %v360
        %365 = vset.pattern.permute.xlu0 0
        %366 = vperm.xlu0 %365, %v338
        %v367 = vpop.permute.xlu0 %366
        %368 = vset.pattern.permute.xlu0 0
        %369 = vperm.xlu0 %368, %v339
        %v370 = vpop.permute.xlu0 %369
        %371 = vset.pattern.permute.xlu0 0
        %372 = vperm.xlu0 %371, %v340
        %v373 = vpop.permute.xlu0 %372
        %374 = vset.pattern.permute.xlu0 0
        %375 = vperm.xlu0 %374, %v341
        %v376 = vpop.permute.xlu0 %375
        %377 = vset.pattern.permute.xlu0 0
        %378 = vperm.xlu0 %377, %v342
        %v379 = vpop.permute.xlu0 %378
        %380 = vset.pattern.permute.xlu0 0
        %381 = vperm.xlu0 %380, %v343
        %v382 = vpop.permute.xlu0 %381
        %383 = vset.pattern.permute.xlu0 0
        %384 = vperm.xlu0 %383, %v344
        %v385 = vpop.permute.xlu0 %384
        %386 = vset.pattern.permute.xlu0 0
        %387 = vperm.xlu0 %386, %v345
        %v388 = vpop.permute.xlu0 %387
        %389 = vset.pattern.permute.xlu0 0
        %390 = vperm.xlu0 %389, %v346
        %v391 = vpop.permute.xlu0 %390
        %392 = vset.pattern.permute.xlu0 0
        %393 = vperm.xlu0 %392, %v347
        %v394 = vpop.permute.xlu0 %393
        %395 = vset.pattern.permute.xlu0 0
        %396 = vperm.xlu0 %395, %v348
        %v397 = vpop.permute.xlu0 %396
        %398 = vset.pattern.permute.xlu0 0
        %399 = vperm.xlu0 %398, %v349
        %v400 = vpop.permute.xlu0 %399
        %401 = vset.pattern.permute.xlu0 0
        %402 = vperm.xlu0 %401, %v350
        %v403 = vpop.permute.xlu0 %402
        %404 = vset.pattern.permute.xlu0 0
        %405 = vperm.xlu0 %404, %v351
        %v406 = vpop.permute.xlu0 %405
        %407 = vset.pattern.permute.xlu0 0
        %408 = vperm.xlu0 %407, %v352
        %v409 = vpop.permute.xlu0 %408
        %410 = vset.pattern.permute.xlu0 0
        %411 = vperm.xlu0 %410, %v353
        %v412 = vpop.permute.xlu0 %411
        %vm413 = vcmp.eq.s32.totalorder %v367, %v361
        %vm414 = vcmp.eq.s32.totalorder %v367, %v362
        %vm415 = vcmp.eq.s32.totalorder %v367, %v363
        %vm416 = vcmp.eq.s32.totalorder %v367, %v364
        %vm417 = vcmp.eq.s32.totalorder %v370, %v361
        %vm418 = vcmp.eq.s32.totalorder %v370, %v362
        %vm419 = vcmp.eq.s32.totalorder %v370, %v363
        %vm420 = vcmp.eq.s32.totalorder %v370, %v364
        %vm421 = vcmp.eq.s32.totalorder %v373, %v361
        %vm422 = vcmp.eq.s32.totalorder %v373, %v362
        %vm423 = vcmp.eq.s32.totalorder %v373, %v363
        %vm424 = vcmp.eq.s32.totalorder %v373, %v364
        %vm425 = vcmp.eq.s32.totalorder %v376, %v361
        %vm426 = vcmp.eq.s32.totalorder %v376, %v362
        %vm427 = vcmp.eq.s32.totalorder %v376, %v363
        %vm428 = vcmp.eq.s32.totalorder %v376, %v364
        %vm429 = vcmp.eq.s32.totalorder %v379, %v361
        %vm430 = vcmp.eq.s32.totalorder %v379, %v362
        %vm431 = vcmp.eq.s32.totalorder %v379, %v363
        %vm432 = vcmp.eq.s32.totalorder %v379, %v364
        %vm433 = vcmp.eq.s32.totalorder %v382, %v361
        %vm434 = vcmp.eq.s32.totalorder %v382, %v362
        %vm435 = vcmp.eq.s32.totalorder %v382, %v363
        %vm436 = vcmp.eq.s32.totalorder %v382, %v364
        %vm437 = vcmp.eq.s32.totalorder %v385, %v361
        %vm438 = vcmp.eq.s32.totalorder %v385, %v362
        %vm439 = vcmp.eq.s32.totalorder %v385, %v363
        %vm440 = vcmp.eq.s32.totalorder %v385, %v364
        %vm441 = vcmp.eq.s32.totalorder %v388, %v361
        %vm442 = vcmp.eq.s32.totalorder %v388, %v362
        %vm443 = vcmp.eq.s32.totalorder %v388, %v363
        %vm444 = vcmp.eq.s32.totalorder %v388, %v364
        %vm445 = vcmp.eq.s32.totalorder %v391, %v361
        %vm446 = vcmp.eq.s32.totalorder %v391, %v362
        %vm447 = vcmp.eq.s32.totalorder %v391, %v363
        %vm448 = vcmp.eq.s32.totalorder %v391, %v364
        %vm449 = vcmp.eq.s32.totalorder %v394, %v361
        %vm450 = vcmp.eq.s32.totalorder %v394, %v362
        %vm451 = vcmp.eq.s32.totalorder %v394, %v363
        %vm452 = vcmp.eq.s32.totalorder %v394, %v364
        %vm453 = vcmp.eq.s32.totalorder %v397, %v361
        %vm454 = vcmp.eq.s32.totalorder %v397, %v362
        %vm455 = vcmp.eq.s32.totalorder %v397, %v363
        %vm456 = vcmp.eq.s32.totalorder %v397, %v364
        %vm457 = vcmp.eq.s32.totalorder %v400, %v361
        %vm458 = vcmp.eq.s32.totalorder %v400, %v362
        %vm459 = vcmp.eq.s32.totalorder %v400, %v363
        %vm460 = vcmp.eq.s32.totalorder %v400, %v364
        %vm461 = vcmp.eq.s32.totalorder %v403, %v361
        %vm462 = vcmp.eq.s32.totalorder %v403, %v362
        %vm463 = vcmp.eq.s32.totalorder %v403, %v363
        %vm464 = vcmp.eq.s32.totalorder %v403, %v364
        %vm465 = vcmp.eq.s32.totalorder %v406, %v361
        %vm466 = vcmp.eq.s32.totalorder %v406, %v362
        %vm467 = vcmp.eq.s32.totalorder %v406, %v363
        %vm468 = vcmp.eq.s32.totalorder %v406, %v364
        %vm469 = vcmp.eq.s32.totalorder %v409, %v361
        %vm470 = vcmp.eq.s32.totalorder %v409, %v362
        %vm471 = vcmp.eq.s32.totalorder %v409, %v363
        %vm472 = vcmp.eq.s32.totalorder %v409, %v364
        %vm473 = vcmp.eq.s32.totalorder %v412, %v361
        %vm474 = vcmp.eq.s32.totalorder %v412, %v362
        %vm475 = vcmp.eq.s32.totalorder %v412, %v363
        %vm476 = vcmp.eq.s32.totalorder %v412, %v364
        %v477 = vsel %vm413, 1, 0
        %v478 = vsel %vm414, 1, 0
        %v479 = vsel %vm415, 1, 0
        %v480 = vsel %vm416, 1, 0
        %v481 = vsel %vm417, 1, 0
        %v482 = vsel %vm418, 1, 0
        %v483 = vsel %vm419, 1, 0
        %v484 = vsel %vm420, 1, 0
        %v485 = vsel %vm421, 1, 0
        %v486 = vsel %vm422, 1, 0
        %v487 = vsel %vm423, 1, 0
        %v488 = vsel %vm424, 1, 0
        %v489 = vsel %vm425, 1, 0
        %v490 = vsel %vm426, 1, 0
        %v491 = vsel %vm427, 1, 0
        %v492 = vsel %vm428, 1, 0
        %v493 = vsel %vm429, 1, 0
        %v494 = vsel %vm430, 1, 0
        %v495 = vsel %vm431, 1, 0
        %v496 = vsel %vm432, 1, 0
        %v497 = vsel %vm433, 1, 0
        %v498 = vsel %vm434, 1, 0
        %v499 = vsel %vm435, 1, 0
        %v500 = vsel %vm436, 1, 0
        %v501 = vsel %vm437, 1, 0
        %v502 = vsel %vm438, 1, 0
        %v503 = vsel %vm439, 1, 0
        %v504 = vsel %vm440, 1, 0
        %v505 = vsel %vm441, 1, 0
        %v506 = vsel %vm442, 1, 0
        %v507 = vsel %vm443, 1, 0
        %v508 = vsel %vm444, 1, 0
        %v509 = vsel %vm445, 1, 0
        %v510 = vsel %vm446, 1, 0
        %v511 = vsel %vm447, 1, 0
        %v512 = vsel %vm448, 1, 0
        %v513 = vsel %vm449, 1, 0
        %v514 = vsel %vm450, 1, 0
        %v515 = vsel %vm451, 1, 0
        %v516 = vsel %vm452, 1, 0
        %v517 = vsel %vm453, 1, 0
        %v518 = vsel %vm454, 1, 0
        %v519 = vsel %vm455, 1, 0
        %v520 = vsel %vm456, 1, 0
        %v521 = vsel %vm457, 1, 0
        %v522 = vsel %vm458, 1, 0
        %v523 = vsel %vm459, 1, 0
        %v524 = vsel %vm460, 1, 0
        %v525 = vsel %vm461, 1, 0
        %v526 = vsel %vm462, 1, 0
        %v527 = vsel %vm463, 1, 0
        %v528 = vsel %vm464, 1, 0
        %v529 = vsel %vm465, 1, 0
        %v530 = vsel %vm466, 1, 0
        %v531 = vsel %vm467, 1, 0
        %v532 = vsel %vm468, 1, 0
        %v533 = vsel %vm469, 1, 0
        %v534 = vsel %vm470, 1, 0
        %v535 = vsel %vm471, 1, 0
        %v536 = vsel %vm472, 1, 0
        %v537 = vsel %vm473, 1, 0
        %v538 = vsel %vm474, 1, 0
        %v539 = vsel %vm475, 1, 0
        %v540 = vsel %vm476, 1, 0
        %v541 = vcvt.s32.f32 %v477
        %v542 = vcvt.s32.f32 %v478
        %v543 = vcvt.s32.f32 %v479
        %v544 = vcvt.s32.f32 %v480
        %v545 = vcvt.s32.f32 %v481
        %v546 = vcvt.s32.f32 %v482
        %v547 = vcvt.s32.f32 %v483
        %v548 = vcvt.s32.f32 %v484
        %v549 = vcvt.s32.f32 %v485
        %v550 = vcvt.s32.f32 %v486
        %v551 = vcvt.s32.f32 %v487
        %v552 = vcvt.s32.f32 %v488
        %v553 = vcvt.s32.f32 %v489
        %v554 = vcvt.s32.f32 %v490
        %v555 = vcvt.s32.f32 %v491
        %v556 = vcvt.s32.f32 %v492
        %v557 = vcvt.s32.f32 %v493
        %v558 = vcvt.s32.f32 %v494
        %v559 = vcvt.s32.f32 %v495
        %v560 = vcvt.s32.f32 %v496
        %v561 = vcvt.s32.f32 %v497
        %v562 = vcvt.s32.f32 %v498
        %v563 = vcvt.s32.f32 %v499
        %v564 = vcvt.s32.f32 %v500
        %v565 = vcvt.s32.f32 %v501
        %v566 = vcvt.s32.f32 %v502
        %v567 = vcvt.s32.f32 %v503
        %v568 = vcvt.s32.f32 %v504
        %v569 = vcvt.s32.f32 %v505
        %v570 = vcvt.s32.f32 %v506
        %v571 = vcvt.s32.f32 %v507
        %v572 = vcvt.s32.f32 %v508
        %v573 = vcvt.s32.f32 %v509
        %v574 = vcvt.s32.f32 %v510
        %v575 = vcvt.s32.f32 %v511
        %v576 = vcvt.s32.f32 %v512
        %v577 = vcvt.s32.f32 %v513
        %v578 = vcvt.s32.f32 %v514
        %v579 = vcvt.s32.f32 %v515
        %v580 = vcvt.s32.f32 %v516
        %v581 = vcvt.s32.f32 %v517
        %v582 = vcvt.s32.f32 %v518
        %v583 = vcvt.s32.f32 %v519
        %v584 = vcvt.s32.f32 %v520
        %v585 = vcvt.s32.f32 %v521
        %v586 = vcvt.s32.f32 %v522
        %v587 = vcvt.s32.f32 %v523
        %v588 = vcvt.s32.f32 %v524
        %v589 = vcvt.s32.f32 %v525
        %v590 = vcvt.s32.f32 %v526
        %v591 = vcvt.s32.f32 %v527
        %v592 = vcvt.s32.f32 %v528
        %v593 = vcvt.s32.f32 %v529
        %v594 = vcvt.s32.f32 %v530
        %v595 = vcvt.s32.f32 %v531
        %v596 = vcvt.s32.f32 %v532
        %v597 = vcvt.s32.f32 %v533
        %v598 = vcvt.s32.f32 %v534
        %v599 = vcvt.s32.f32 %v535
        %v600 = vcvt.s32.f32 %v536
        %v601 = vcvt.s32.f32 %v537
        %v602 = vcvt.s32.f32 %v538
        %v603 = vcvt.s32.f32 %v539
        %v604 = vcvt.s32.f32 %v540
        %v605 = vadd.f32 %v541, 0.0
        %v606 = vadd.f32 %v542, 0.0
        %v607 = vadd.f32 %v543, 0.0
        %v608 = vadd.f32 %v544, 0.0
        %v609 = vadd.f32 %v545, 0.0
        %v610 = vadd.f32 %v546, 0.0
        %v611 = vadd.f32 %v547, 0.0
        %v612 = vadd.f32 %v548, 0.0
        %v613 = vadd.f32 %v549, 0.0
        %v614 = vadd.f32 %v550, 0.0
        %v615 = vadd.f32 %v551, 0.0
        %v616 = vadd.f32 %v552, 0.0
        %v617 = vadd.f32 %v553, 0.0
        %v618 = vadd.f32 %v554, 0.0
        %v619 = vadd.f32 %v555, 0.0
        %v620 = vadd.f32 %v556, 0.0
        %v621 = vadd.f32 %v557, 0.0
        %v622 = vadd.f32 %v558, 0.0
        %v623 = vadd.f32 %v559, 0.0
        %v624 = vadd.f32 %v560, 0.0
        %v625 = vadd.f32 %v561, 0.0
        %v626 = vadd.f32 %v562, 0.0
        %v627 = vadd.f32 %v563, 0.0
        %v628 = vadd.f32 %v564, 0.0
        %v629 = vadd.f32 %v565, 0.0
        %v630 = vadd.f32 %v566, 0.0
        %v631 = vadd.f32 %v567, 0.0
        %v632 = vadd.f32 %v568, 0.0
        %v633 = vadd.f32 %v569, 0.0
        %v634 = vadd.f32 %v570, 0.0
        %v635 = vadd.f32 %v571, 0.0
        %v636 = vadd.f32 %v572, 0.0
        %v637 = vadd.f32 %v573, 0.0
        %v638 = vadd.f32 %v574, 0.0
        %v639 = vadd.f32 %v575, 0.0
        %v640 = vadd.f32 %v576, 0.0
        %v641 = vadd.f32 %v577, 0.0
        %v642 = vadd.f32 %v578, 0.0
        %v643 = vadd.f32 %v579, 0.0
        %v644 = vadd.f32 %v580, 0.0
        %v645 = vadd.f32 %v581, 0.0
        %v646 = vadd.f32 %v582, 0.0
        %v647 = vadd.f32 %v583, 0.0
        %v648 = vadd.f32 %v584, 0.0
        %v649 = vadd.f32 %v585, 0.0
        %v650 = vadd.f32 %v586, 0.0
        %v651 = vadd.f32 %v587, 0.0
        %v652 = vadd.f32 %v588, 0.0
        %v653 = vadd.f32 %v589, 0.0
        %v654 = vadd.f32 %v590, 0.0
        %v655 = vadd.f32 %v591, 0.0
        %v656 = vadd.f32 %v592, 0.0
        %v657 = vadd.f32 %v593, 0.0
        %v658 = vadd.f32 %v594, 0.0
        %v659 = vadd.f32 %v595, 0.0
        %v660 = vadd.f32 %v596, 0.0
        %v661 = vadd.f32 %v597, 0.0
        %v662 = vadd.f32 %v598, 0.0
        %v663 = vadd.f32 %v599, 0.0
        %v664 = vadd.f32 %v600, 0.0
        %v665 = vadd.f32 %v601, 0.0
        %v666 = vadd.f32 %v602, 0.0
        %v667 = vadd.f32 %v603, 0.0
        %v668 = vadd.f32 %v604, 0.0
        %669 = vset.pattern.permute.xlu0 1
        %670 = vperm.xlu0 %669, %v338
        %v671 = vpop.permute.xlu0 %670
        %672 = vset.pattern.permute.xlu0 1
        %673 = vperm.xlu0 %672, %v339
        %v674 = vpop.permute.xlu0 %673
        %675 = vset.pattern.permute.xlu0 1
        %676 = vperm.xlu0 %675, %v340
        %v677 = vpop.permute.xlu0 %676
        %678 = vset.pattern.permute.xlu0 1
        %679 = vperm.xlu0 %678, %v341
        %v680 = vpop.permute.xlu0 %679
        %681 = vset.pattern.permute.xlu0 1
        %682 = vperm.xlu0 %681, %v342
        %v683 = vpop.permute.xlu0 %682
        %684 = vset.pattern.permute.xlu0 1
        %685 = vperm.xlu0 %684, %v343
        %v686 = vpop.permute.xlu0 %685
        %687 = vset.pattern.permute.xlu0 1
        %688 = vperm.xlu0 %687, %v344
        %v689 = vpop.permute.xlu0 %688
        %690 = vset.pattern.permute.xlu0 1
        %691 = vperm.xlu0 %690, %v345
        %v692 = vpop.permute.xlu0 %691
        %693 = vset.pattern.permute.xlu0 1
        %694 = vperm.xlu0 %693, %v346
        %v695 = vpop.permute.xlu0 %694
        %696 = vset.pattern.permute.xlu0 1
        %697 = vperm.xlu0 %696, %v347
        %v698 = vpop.permute.xlu0 %697
        %699 = vset.pattern.permute.xlu0 1
        %700 = vperm.xlu0 %699, %v348
        %v701 = vpop.permute.xlu0 %700
        %702 = vset.pattern.permute.xlu0 1
        %703 = vperm.xlu0 %702, %v349
        %v704 = vpop.permute.xlu0 %703
        %705 = vset.pattern.permute.xlu0 1
        %706 = vperm.xlu0 %705, %v350
        %v707 = vpop.permute.xlu0 %706
        %708 = vset.pattern.permute.xlu0 1
        %709 = vperm.xlu0 %708, %v351
        %v710 = vpop.permute.xlu0 %709
        %711 = vset.pattern.permute.xlu0 1
        %712 = vperm.xlu0 %711, %v352
        %v713 = vpop.permute.xlu0 %712
        %714 = vset.pattern.permute.xlu0 1
        %715 = vperm.xlu0 %714, %v353
        %v716 = vpop.permute.xlu0 %715
        %vm717 = vcmp.eq.s32.totalorder %v671, %v361
        %vm718 = vcmp.eq.s32.totalorder %v671, %v362
        %vm719 = vcmp.eq.s32.totalorder %v671, %v363
        %vm720 = vcmp.eq.s32.totalorder %v671, %v364
        %vm721 = vcmp.eq.s32.totalorder %v674, %v361
        %vm722 = vcmp.eq.s32.totalorder %v674, %v362
        %vm723 = vcmp.eq.s32.totalorder %v674, %v363
        %vm724 = vcmp.eq.s32.totalorder %v674, %v364
        %vm725 = vcmp.eq.s32.totalorder %v677, %v361
        %vm726 = vcmp.eq.s32.totalorder %v677, %v362
        %vm727 = vcmp.eq.s32.totalorder %v677, %v363
        %vm728 = vcmp.eq.s32.totalorder %v677, %v364
        %vm729 = vcmp.eq.s32.totalorder %v680, %v361
        %vm730 = vcmp.eq.s32.totalorder %v680, %v362
        %vm731 = vcmp.eq.s32.totalorder %v680, %v363
        %vm732 = vcmp.eq.s32.totalorder %v680, %v364
        %vm733 = vcmp.eq.s32.totalorder %v683, %v361
        %vm734 = vcmp.eq.s32.totalorder %v683, %v362
        %vm735 = vcmp.eq.s32.totalorder %v683, %v363
        %vm736 = vcmp.eq.s32.totalorder %v683, %v364
        %vm737 = vcmp.eq.s32.totalorder %v686, %v361
        %vm738 = vcmp.eq.s32.totalorder %v686, %v362
        %vm739 = vcmp.eq.s32.totalorder %v686, %v363
        %vm740 = vcmp.eq.s32.totalorder %v686, %v364
        %vm741 = vcmp.eq.s32.totalorder %v689, %v361
        %vm742 = vcmp.eq.s32.totalorder %v689, %v362
        %vm743 = vcmp.eq.s32.totalorder %v689, %v363
        %vm744 = vcmp.eq.s32.totalorder %v689, %v364
        %vm745 = vcmp.eq.s32.totalorder %v692, %v361
        %vm746 = vcmp.eq.s32.totalorder %v692, %v362
        %vm747 = vcmp.eq.s32.totalorder %v692, %v363
        %vm748 = vcmp.eq.s32.totalorder %v692, %v364
        %vm749 = vcmp.eq.s32.totalorder %v695, %v361
        %vm750 = vcmp.eq.s32.totalorder %v695, %v362
        %vm751 = vcmp.eq.s32.totalorder %v695, %v363
        %vm752 = vcmp.eq.s32.totalorder %v695, %v364
        %vm753 = vcmp.eq.s32.totalorder %v698, %v361
        %vm754 = vcmp.eq.s32.totalorder %v698, %v362
        %vm755 = vcmp.eq.s32.totalorder %v698, %v363
        %vm756 = vcmp.eq.s32.totalorder %v698, %v364
        %vm757 = vcmp.eq.s32.totalorder %v701, %v361
        %vm758 = vcmp.eq.s32.totalorder %v701, %v362
        %vm759 = vcmp.eq.s32.totalorder %v701, %v363
        %vm760 = vcmp.eq.s32.totalorder %v701, %v364
        %vm761 = vcmp.eq.s32.totalorder %v704, %v361
        %vm762 = vcmp.eq.s32.totalorder %v704, %v362
        %vm763 = vcmp.eq.s32.totalorder %v704, %v363
        %vm764 = vcmp.eq.s32.totalorder %v704, %v364
        %vm765 = vcmp.eq.s32.totalorder %v707, %v361
        %vm766 = vcmp.eq.s32.totalorder %v707, %v362
        %vm767 = vcmp.eq.s32.totalorder %v707, %v363
        %vm768 = vcmp.eq.s32.totalorder %v707, %v364
        %vm769 = vcmp.eq.s32.totalorder %v710, %v361
        %vm770 = vcmp.eq.s32.totalorder %v710, %v362
        %vm771 = vcmp.eq.s32.totalorder %v710, %v363
        %vm772 = vcmp.eq.s32.totalorder %v710, %v364
        %vm773 = vcmp.eq.s32.totalorder %v713, %v361
        %vm774 = vcmp.eq.s32.totalorder %v713, %v362
        %vm775 = vcmp.eq.s32.totalorder %v713, %v363
        %vm776 = vcmp.eq.s32.totalorder %v713, %v364
        %vm777 = vcmp.eq.s32.totalorder %v716, %v361
        %vm778 = vcmp.eq.s32.totalorder %v716, %v362
        %vm779 = vcmp.eq.s32.totalorder %v716, %v363
        %vm780 = vcmp.eq.s32.totalorder %v716, %v364
        %v781 = vsel %vm717, 1, 0
        %v782 = vsel %vm718, 1, 0
        %v783 = vsel %vm719, 1, 0
        %v784 = vsel %vm720, 1, 0
        %v785 = vsel %vm721, 1, 0
        %v786 = vsel %vm722, 1, 0
        %v787 = vsel %vm723, 1, 0
        %v788 = vsel %vm724, 1, 0
        %v789 = vsel %vm725, 1, 0
        %v790 = vsel %vm726, 1, 0
        %v791 = vsel %vm727, 1, 0
        %v792 = vsel %vm728, 1, 0
        %v793 = vsel %vm729, 1, 0
        %v794 = vsel %vm730, 1, 0
        %v795 = vsel %vm731, 1, 0
        %v796 = vsel %vm732, 1, 0
        %v797 = vsel %vm733, 1, 0
        %v798 = vsel %vm734, 1, 0
        %v799 = vsel %vm735, 1, 0
        %v800 = vsel %vm736, 1, 0
        %v801 = vsel %vm737, 1, 0
        %v802 = vsel %vm738, 1, 0
        %v803 = vsel %vm739, 1, 0
        %v804 = vsel %vm740, 1, 0
        %v805 = vsel %vm741, 1, 0
        %v806 = vsel %vm742, 1, 0
        %v807 = vsel %vm743, 1, 0
        %v808 = vsel %vm744, 1, 0
        %v809 = vsel %vm745, 1, 0
        %v810 = vsel %vm746, 1, 0
        %v811 = vsel %vm747, 1, 0
        %v812 = vsel %vm748, 1, 0
        %v813 = vsel %vm749, 1, 0
        %v814 = vsel %vm750, 1, 0
        %v815 = vsel %vm751, 1, 0
        %v816 = vsel %vm752, 1, 0
        %v817 = vsel %vm753, 1, 0
        %v818 = vsel %vm754, 1, 0
        %v819 = vsel %vm755, 1, 0
        %v820 = vsel %vm756, 1, 0
        %v821 = vsel %vm757, 1, 0
        %v822 = vsel %vm758, 1, 0
        %v823 = vsel %vm759, 1, 0
        %v824 = vsel %vm760, 1, 0
        %v825 = vsel %vm761, 1, 0
        %v826 = vsel %vm762, 1, 0
        %v827 = vsel %vm763, 1, 0
        %v828 = vsel %vm764, 1, 0
        %v829 = vsel %vm765, 1, 0
        %v830 = vsel %vm766, 1, 0
        %v831 = vsel %vm767, 1, 0
        %v832 = vsel %vm768, 1, 0
        %v833 = vsel %vm769, 1, 0
        %v834 = vsel %vm770, 1, 0
        %v835 = vsel %vm771, 1, 0
        %v836 = vsel %vm772, 1, 0
        %v837 = vsel %vm773, 1, 0
        %v838 = vsel %vm774, 1, 0
        %v839 = vsel %vm775, 1, 0
        %v840 = vsel %vm776, 1, 0
        %v841 = vsel %vm777, 1, 0
        %v842 = vsel %vm778, 1, 0
        %v843 = vsel %vm779, 1, 0
        %v844 = vsel %vm780, 1, 0
        %v845 = vcvt.s32.f32 %v781
        %v846 = vcvt.s32.f32 %v782
        %v847 = vcvt.s32.f32 %v783
        %v848 = vcvt.s32.f32 %v784
        %v849 = vcvt.s32.f32 %v785
        %v850 = vcvt.s32.f32 %v786
        %v851 = vcvt.s32.f32 %v787
        %v852 = vcvt.s32.f32 %v788
        %v853 = vcvt.s32.f32 %v789
        %v854 = vcvt.s32.f32 %v790
        %v855 = vcvt.s32.f32 %v791
        %v856 = vcvt.s32.f32 %v792
        %v857 = vcvt.s32.f32 %v793
        %v858 = vcvt.s32.f32 %v794
        %v859 = vcvt.s32.f32 %v795
        %v860 = vcvt.s32.f32 %v796
        %v861 = vcvt.s32.f32 %v797
        %v862 = vcvt.s32.f32 %v798
        %v863 = vcvt.s32.f32 %v799
        %v864 = vcvt.s32.f32 %v800
        %v865 = vcvt.s32.f32 %v801
        %v866 = vcvt.s32.f32 %v802
        %v867 = vcvt.s32.f32 %v803
        %v868 = vcvt.s32.f32 %v804
        %v869 = vcvt.s32.f32 %v805
        %v870 = vcvt.s32.f32 %v806
        %v871 = vcvt.s32.f32 %v807
        %v872 = vcvt.s32.f32 %v808
        %v873 = vcvt.s32.f32 %v809
        %v874 = vcvt.s32.f32 %v810
        %v875 = vcvt.s32.f32 %v811
        %v876 = vcvt.s32.f32 %v812
        %v877 = vcvt.s32.f32 %v813
        %v878 = vcvt.s32.f32 %v814
        %v879 = vcvt.s32.f32 %v815
        %v880 = vcvt.s32.f32 %v816
        %v881 = vcvt.s32.f32 %v817
        %v882 = vcvt.s32.f32 %v818
        %v883 = vcvt.s32.f32 %v819
        %v884 = vcvt.s32.f32 %v820
        %v885 = vcvt.s32.f32 %v821
        %v886 = vcvt.s32.f32 %v822
        %v887 = vcvt.s32.f32 %v823
        %v888 = vcvt.s32.f32 %v824
        %v889 = vcvt.s32.f32 %v825
        %v890 = vcvt.s32.f32 %v826
        %v891 = vcvt.s32.f32 %v827
        %v892 = vcvt.s32.f32 %v828
        %v893 = vcvt.s32.f32 %v829
        %v894 = vcvt.s32.f32 %v830
        %v895 = vcvt.s32.f32 %v831
        %v896 = vcvt.s32.f32 %v832
        %v897 = vcvt.s32.f32 %v833
        %v898 = vcvt.s32.f32 %v834
        %v899 = vcvt.s32.f32 %v835
        %v900 = vcvt.s32.f32 %v836
        %v901 = vcvt.s32.f32 %v837
        %v902 = vcvt.s32.f32 %v838
        %v903 = vcvt.s32.f32 %v839
        %v904 = vcvt.s32.f32 %v840
        %v905 = vcvt.s32.f32 %v841
        %v906 = vcvt.s32.f32 %v842
        %v907 = vcvt.s32.f32 %v843
        %v908 = vcvt.s32.f32 %v844
        %v909 = vadd.f32 %v605, %v845
        %v910 = vadd.f32 %v606, %v846
        %v911 = vadd.f32 %v607, %v847
        %v912 = vadd.f32 %v608, %v848
        %v913 = vadd.f32 %v609, %v849
        %v914 = vadd.f32 %v610, %v850
        %v915 = vadd.f32 %v611, %v851
        %v916 = vadd.f32 %v612, %v852
        %v917 = vadd.f32 %v613, %v853
        %v918 = vadd.f32 %v614, %v854
        %v919 = vadd.f32 %v615, %v855
        %v920 = vadd.f32 %v616, %v856
        %v921 = vadd.f32 %v617, %v857
        %v922 = vadd.f32 %v618, %v858
        %v923 = vadd.f32 %v619, %v859
        %v924 = vadd.f32 %v620, %v860
        %v925 = vadd.f32 %v621, %v861
        %v926 = vadd.f32 %v622, %v862
        %v927 = vadd.f32 %v623, %v863
        %v928 = vadd.f32 %v624, %v864
        %v929 = vadd.f32 %v625, %v865
        %v930 = vadd.f32 %v626, %v866
        %v931 = vadd.f32 %v627, %v867
        %v932 = vadd.f32 %v628, %v868
        %v933 = vadd.f32 %v629, %v869
        %v934 = vadd.f32 %v630, %v870
        %v935 = vadd.f32 %v631, %v871
        %v936 = vadd.f32 %v632, %v872
        %v937 = vadd.f32 %v633, %v873
        %v938 = vadd.f32 %v634, %v874
        %v939 = vadd.f32 %v635, %v875
        %v940 = vadd.f32 %v636, %v876
        %v941 = vadd.f32 %v637, %v877
        %v942 = vadd.f32 %v638, %v878
        %v943 = vadd.f32 %v639, %v879
        %v944 = vadd.f32 %v640, %v880
        %v945 = vadd.f32 %v641, %v881
        %v946 = vadd.f32 %v642, %v882
        %v947 = vadd.f32 %v643, %v883
        %v948 = vadd.f32 %v644, %v884
        %v949 = vadd.f32 %v645, %v885
        %v950 = vadd.f32 %v646, %v886
        %v951 = vadd.f32 %v647, %v887
        %v952 = vadd.f32 %v648, %v888
        %v953 = vadd.f32 %v649, %v889
        %v954 = vadd.f32 %v650, %v890
        %v955 = vadd.f32 %v651, %v891
        %v956 = vadd.f32 %v652, %v892
        %v957 = vadd.f32 %v653, %v893
        %v958 = vadd.f32 %v654, %v894
        %v959 = vadd.f32 %v655, %v895
        %v960 = vadd.f32 %v656, %v896
        %v961 = vadd.f32 %v657, %v897
        %v962 = vadd.f32 %v658, %v898
        %v963 = vadd.f32 %v659, %v899
        %v964 = vadd.f32 %v660, %v900
        %v965 = vadd.f32 %v661, %v901
        %v966 = vadd.f32 %v662, %v902
        %v967 = vadd.f32 %v663, %v903
        %v968 = vadd.f32 %v664, %v904
        %v969 = vadd.f32 %v665, %v905
        %v970 = vadd.f32 %v666, %v906
        %v971 = vadd.f32 %v667, %v907
        %v972 = vadd.f32 %v668, %v908
        %973 = vset.pattern.permute.xlu0 2
        %974 = vperm.xlu0 %973, %v338
        %v975 = vpop.permute.xlu0 %974
        %976 = vset.pattern.permute.xlu0 2
        %977 = vperm.xlu0 %976, %v339
        %v978 = vpop.permute.xlu0 %977
        %979 = vset.pattern.permute.xlu0 2
        %980 = vperm.xlu0 %979, %v340
        %v981 = vpop.permute.xlu0 %980
        %982 = vset.pattern.permute.xlu0 2
        %983 = vperm.xlu0 %982, %v341
        %v984 = vpop.permute.xlu0 %983
        %985 = vset.pattern.permute.xlu0 2
        %986 = vperm.xlu0 %985, %v342
        %v987 = vpop.permute.xlu0 %986
        %988 = vset.pattern.permute.xlu0 2
        %989 = vperm.xlu0 %988, %v343
        %v990 = vpop.permute.xlu0 %989
        %991 = vset.pattern.permute.xlu0 2
        %992 = vperm.xlu0 %991, %v344
        %v993 = vpop.permute.xlu0 %992
        %994 = vset.pattern.permute.xlu0 2
        %995 = vperm.xlu0 %994, %v345
        %v996 = vpop.permute.xlu0 %995
        %997 = vset.pattern.permute.xlu0 2
        %998 = vperm.xlu0 %997, %v346
        %v999 = vpop.permute.xlu0 %998
        %1000 = vset.pattern.permute.xlu0 2
        %1001 = vperm.xlu0 %1000, %v347
        %v1002 = vpop.permute.xlu0 %1001
        %1003 = vset.pattern.permute.xlu0 2
        %1004 = vperm.xlu0 %1003, %v348
        %v1005 = vpop.permute.xlu0 %1004
        %1006 = vset.pattern.permute.xlu0 2
        %1007 = vperm.xlu0 %1006, %v349
        %v1008 = vpop.permute.xlu0 %1007
        %1009 = vset.pattern.permute.xlu0 2
        %1010 = vperm.xlu0 %1009, %v350
        %v1011 = vpop.permute.xlu0 %1010
        %1012 = vset.pattern.permute.xlu0 2
        %1013 = vperm.xlu0 %1012, %v351
        %v1014 = vpop.permute.xlu0 %1013
        %1015 = vset.pattern.permute.xlu0 2
        %1016 = vperm.xlu0 %1015, %v352
        %v1017 = vpop.permute.xlu0 %1016
        %1018 = vset.pattern.permute.xlu0 2
        %1019 = vperm.xlu0 %1018, %v353
        %v1020 = vpop.permute.xlu0 %1019
        %vm1021 = vcmp.eq.s32.totalorder %v975, %v361
        %vm1022 = vcmp.eq.s32.totalorder %v975, %v362
        %vm1023 = vcmp.eq.s32.totalorder %v975, %v363
        %vm1024 = vcmp.eq.s32.totalorder %v975, %v364
        %vm1025 = vcmp.eq.s32.totalorder %v978, %v361
        %vm1026 = vcmp.eq.s32.totalorder %v978, %v362
        %vm1027 = vcmp.eq.s32.totalorder %v978, %v363
        %vm1028 = vcmp.eq.s32.totalorder %v978, %v364
        %vm1029 = vcmp.eq.s32.totalorder %v981, %v361
        %vm1030 = vcmp.eq.s32.totalorder %v981, %v362
        %vm1031 = vcmp.eq.s32.totalorder %v981, %v363
        %vm1032 = vcmp.eq.s32.totalorder %v981, %v364
        %vm1033 = vcmp.eq.s32.totalorder %v984, %v361
        %vm1034 = vcmp.eq.s32.totalorder %v984, %v362
        %vm1035 = vcmp.eq.s32.totalorder %v984, %v363
        %vm1036 = vcmp.eq.s32.totalorder %v984, %v364
        %vm1037 = vcmp.eq.s32.totalorder %v987, %v361
        %vm1038 = vcmp.eq.s32.totalorder %v987, %v362
        %vm1039 = vcmp.eq.s32.totalorder %v987, %v363
        %vm1040 = vcmp.eq.s32.totalorder %v987, %v364
        %vm1041 = vcmp.eq.s32.totalorder %v990, %v361
        %vm1042 = vcmp.eq.s32.totalorder %v990, %v362
        %vm1043 = vcmp.eq.s32.totalorder %v990, %v363
        %vm1044 = vcmp.eq.s32.totalorder %v990, %v364
        %vm1045 = vcmp.eq.s32.totalorder %v993, %v361
        %vm1046 = vcmp.eq.s32.totalorder %v993, %v362
        %vm1047 = vcmp.eq.s32.totalorder %v993, %v363
        %vm1048 = vcmp.eq.s32.totalorder %v993, %v364
        %vm1049 = vcmp.eq.s32.totalorder %v996, %v361
        %vm1050 = vcmp.eq.s32.totalorder %v996, %v362
        %vm1051 = vcmp.eq.s32.totalorder %v996, %v363
        %vm1052 = vcmp.eq.s32.totalorder %v996, %v364
        %vm1053 = vcmp.eq.s32.totalorder %v999, %v361
        %vm1054 = vcmp.eq.s32.totalorder %v999, %v362
        %vm1055 = vcmp.eq.s32.totalorder %v999, %v363
        %vm1056 = vcmp.eq.s32.totalorder %v999, %v364
        %vm1057 = vcmp.eq.s32.totalorder %v1002, %v361
        %vm1058 = vcmp.eq.s32.totalorder %v1002, %v362
        %vm1059 = vcmp.eq.s32.totalorder %v1002, %v363
        %vm1060 = vcmp.eq.s32.totalorder %v1002, %v364
        %vm1061 = vcmp.eq.s32.totalorder %v1005, %v361
        %vm1062 = vcmp.eq.s32.totalorder %v1005, %v362
        %vm1063 = vcmp.eq.s32.totalorder %v1005, %v363
        %vm1064 = vcmp.eq.s32.totalorder %v1005, %v364
        %vm1065 = vcmp.eq.s32.totalorder %v1008, %v361
        %vm1066 = vcmp.eq.s32.totalorder %v1008, %v362
        %vm1067 = vcmp.eq.s32.totalorder %v1008, %v363
        %vm1068 = vcmp.eq.s32.totalorder %v1008, %v364
        %vm1069 = vcmp.eq.s32.totalorder %v1011, %v361
        %vm1070 = vcmp.eq.s32.totalorder %v1011, %v362
        %vm1071 = vcmp.eq.s32.totalorder %v1011, %v363
        %vm1072 = vcmp.eq.s32.totalorder %v1011, %v364
        %vm1073 = vcmp.eq.s32.totalorder %v1014, %v361
        %vm1074 = vcmp.eq.s32.totalorder %v1014, %v362
        %vm1075 = vcmp.eq.s32.totalorder %v1014, %v363
        %vm1076 = vcmp.eq.s32.totalorder %v1014, %v364
        %vm1077 = vcmp.eq.s32.totalorder %v1017, %v361
        %vm1078 = vcmp.eq.s32.totalorder %v1017, %v362
        %vm1079 = vcmp.eq.s32.totalorder %v1017, %v363
        %vm1080 = vcmp.eq.s32.totalorder %v1017, %v364
        %vm1081 = vcmp.eq.s32.totalorder %v1020, %v361
        %vm1082 = vcmp.eq.s32.totalorder %v1020, %v362
        %vm1083 = vcmp.eq.s32.totalorder %v1020, %v363
        %vm1084 = vcmp.eq.s32.totalorder %v1020, %v364
        %v1085 = vsel %vm1021, 1, 0
        %v1086 = vsel %vm1022, 1, 0
        %v1087 = vsel %vm1023, 1, 0
        %v1088 = vsel %vm1024, 1, 0
        %v1089 = vsel %vm1025, 1, 0
        %v1090 = vsel %vm1026, 1, 0
        %v1091 = vsel %vm1027, 1, 0
        %v1092 = vsel %vm1028, 1, 0
        %v1093 = vsel %vm1029, 1, 0
        %v1094 = vsel %vm1030, 1, 0
        %v1095 = vsel %vm1031, 1, 0
        %v1096 = vsel %vm1032, 1, 0
        %v1097 = vsel %vm1033, 1, 0
        %v1098 = vsel %vm1034, 1, 0
        %v1099 = vsel %vm1035, 1, 0
        %v1100 = vsel %vm1036, 1, 0
        %v1101 = vsel %vm1037, 1, 0
        %v1102 = vsel %vm1038, 1, 0
        %v1103 = vsel %vm1039, 1, 0
        %v1104 = vsel %vm1040, 1, 0
        %v1105 = vsel %vm1041, 1, 0
        %v1106 = vsel %vm1042, 1, 0
        %v1107 = vsel %vm1043, 1, 0
        %v1108 = vsel %vm1044, 1, 0
        %v1109 = vsel %vm1045, 1, 0
        %v1110 = vsel %vm1046, 1, 0
        %v1111 = vsel %vm1047, 1, 0
        %v1112 = vsel %vm1048, 1, 0
        %v1113 = vsel %vm1049, 1, 0
        %v1114 = vsel %vm1050, 1, 0
        %v1115 = vsel %vm1051, 1, 0
        %v1116 = vsel %vm1052, 1, 0
        %v1117 = vsel %vm1053, 1, 0
        %v1118 = vsel %vm1054, 1, 0
        %v1119 = vsel %vm1055, 1, 0
        %v1120 = vsel %vm1056, 1, 0
        %v1121 = vsel %vm1057, 1, 0
        %v1122 = vsel %vm1058, 1, 0
        %v1123 = vsel %vm1059, 1, 0
        %v1124 = vsel %vm1060, 1, 0
        %v1125 = vsel %vm1061, 1, 0
        %v1126 = vsel %vm1062, 1, 0
        %v1127 = vsel %vm1063, 1, 0
        %v1128 = vsel %vm1064, 1, 0
        %v1129 = vsel %vm1065, 1, 0
        %v1130 = vsel %vm1066, 1, 0
        %v1131 = vsel %vm1067, 1, 0
        %v1132 = vsel %vm1068, 1, 0
        %v1133 = vsel %vm1069, 1, 0
        %v1134 = vsel %vm1070, 1, 0
        %v1135 = vsel %vm1071, 1, 0
        %v1136 = vsel %vm1072, 1, 0
        %v1137 = vsel %vm1073, 1, 0
        %v1138 = vsel %vm1074, 1, 0
        %v1139 = vsel %vm1075, 1, 0
        %v1140 = vsel %vm1076, 1, 0
        %v1141 = vsel %vm1077, 1, 0
        %v1142 = vsel %vm1078, 1, 0
        %v1143 = vsel %vm1079, 1, 0
        %v1144 = vsel %vm1080, 1, 0
        %v1145 = vsel %vm1081, 1, 0
        %v1146 = vsel %vm1082, 1, 0
        %v1147 = vsel %vm1083, 1, 0
        %v1148 = vsel %vm1084, 1, 0
        %v1149 = vcvt.s32.f32 %v1085
        %v1150 = vcvt.s32.f32 %v1086
        %v1151 = vcvt.s32.f32 %v1087
        %v1152 = vcvt.s32.f32 %v1088
        %v1153 = vcvt.s32.f32 %v1089
        %v1154 = vcvt.s32.f32 %v1090
        %v1155 = vcvt.s32.f32 %v1091
        %v1156 = vcvt.s32.f32 %v1092
        %v1157 = vcvt.s32.f32 %v1093
        %v1158 = vcvt.s32.f32 %v1094
        %v1159 = vcvt.s32.f32 %v1095
        %v1160 = vcvt.s32.f32 %v1096
        %v1161 = vcvt.s32.f32 %v1097
        %v1162 = vcvt.s32.f32 %v1098
        %v1163 = vcvt.s32.f32 %v1099
        %v1164 = vcvt.s32.f32 %v1100
        %v1165 = vcvt.s32.f32 %v1101
        %v1166 = vcvt.s32.f32 %v1102
        %v1167 = vcvt.s32.f32 %v1103
        %v1168 = vcvt.s32.f32 %v1104
        %v1169 = vcvt.s32.f32 %v1105
        %v1170 = vcvt.s32.f32 %v1106
        %v1171 = vcvt.s32.f32 %v1107
        %v1172 = vcvt.s32.f32 %v1108
        %v1173 = vcvt.s32.f32 %v1109
        %v1174 = vcvt.s32.f32 %v1110
        %v1175 = vcvt.s32.f32 %v1111
        %v1176 = vcvt.s32.f32 %v1112
        %v1177 = vcvt.s32.f32 %v1113
        %v1178 = vcvt.s32.f32 %v1114
        %v1179 = vcvt.s32.f32 %v1115
        %v1180 = vcvt.s32.f32 %v1116
        %v1181 = vcvt.s32.f32 %v1117
        %v1182 = vcvt.s32.f32 %v1118
        %v1183 = vcvt.s32.f32 %v1119
        %v1184 = vcvt.s32.f32 %v1120
        %v1185 = vcvt.s32.f32 %v1121
        %v1186 = vcvt.s32.f32 %v1122
        %v1187 = vcvt.s32.f32 %v1123
        %v1188 = vcvt.s32.f32 %v1124
        %v1189 = vcvt.s32.f32 %v1125
        %v1190 = vcvt.s32.f32 %v1126
        %v1191 = vcvt.s32.f32 %v1127
        %v1192 = vcvt.s32.f32 %v1128
        %v1193 = vcvt.s32.f32 %v1129
        %v1194 = vcvt.s32.f32 %v1130
        %v1195 = vcvt.s32.f32 %v1131
        %v1196 = vcvt.s32.f32 %v1132
        %v1197 = vcvt.s32.f32 %v1133
        %v1198 = vcvt.s32.f32 %v1134
        %v1199 = vcvt.s32.f32 %v1135
        %v1200 = vcvt.s32.f32 %v1136
        %v1201 = vcvt.s32.f32 %v1137
        %v1202 = vcvt.s32.f32 %v1138
        %v1203 = vcvt.s32.f32 %v1139
        %v1204 = vcvt.s32.f32 %v1140
        %v1205 = vcvt.s32.f32 %v1141
        %v1206 = vcvt.s32.f32 %v1142
        %v1207 = vcvt.s32.f32 %v1143
        %v1208 = vcvt.s32.f32 %v1144
        %v1209 = vcvt.s32.f32 %v1145
        %v1210 = vcvt.s32.f32 %v1146
        %v1211 = vcvt.s32.f32 %v1147
        %v1212 = vcvt.s32.f32 %v1148
        %v1213 = vadd.f32 %v909, %v1149
        %v1214 = vadd.f32 %v910, %v1150
        %v1215 = vadd.f32 %v911, %v1151
        %v1216 = vadd.f32 %v912, %v1152
        %v1217 = vadd.f32 %v913, %v1153
        %v1218 = vadd.f32 %v914, %v1154
        %v1219 = vadd.f32 %v915, %v1155
        %v1220 = vadd.f32 %v916, %v1156
        %v1221 = vadd.f32 %v917, %v1157
        %v1222 = vadd.f32 %v918, %v1158
        %v1223 = vadd.f32 %v919, %v1159
        %v1224 = vadd.f32 %v920, %v1160
        %v1225 = vadd.f32 %v921, %v1161
        %v1226 = vadd.f32 %v922, %v1162
        %v1227 = vadd.f32 %v923, %v1163
        %v1228 = vadd.f32 %v924, %v1164
        %v1229 = vadd.f32 %v925, %v1165
        %v1230 = vadd.f32 %v926, %v1166
        %v1231 = vadd.f32 %v927, %v1167
        %v1232 = vadd.f32 %v928, %v1168
        %v1233 = vadd.f32 %v929, %v1169
        %v1234 = vadd.f32 %v930, %v1170
        %v1235 = vadd.f32 %v931, %v1171
        %v1236 = vadd.f32 %v932, %v1172
        %v1237 = vadd.f32 %v933, %v1173
        %v1238 = vadd.f32 %v934, %v1174
        %v1239 = vadd.f32 %v935, %v1175
        %v1240 = vadd.f32 %v936, %v1176
        %v1241 = vadd.f32 %v937, %v1177
        %v1242 = vadd.f32 %v938, %v1178
        %v1243 = vadd.f32 %v939, %v1179
        %v1244 = vadd.f32 %v940, %v1180
        %v1245 = vadd.f32 %v941, %v1181
        %v1246 = vadd.f32 %v942, %v1182
        %v1247 = vadd.f32 %v943, %v1183
        %v1248 = vadd.f32 %v944, %v1184
        %v1249 = vadd.f32 %v945, %v1185
        %v1250 = vadd.f32 %v946, %v1186
        %v1251 = vadd.f32 %v947, %v1187
        %v1252 = vadd.f32 %v948, %v1188
        %v1253 = vadd.f32 %v949, %v1189
        %v1254 = vadd.f32 %v950, %v1190
        %v1255 = vadd.f32 %v951, %v1191
        %v1256 = vadd.f32 %v952, %v1192
        %v1257 = vadd.f32 %v953, %v1193
        %v1258 = vadd.f32 %v954, %v1194
        %v1259 = vadd.f32 %v955, %v1195
        %v1260 = vadd.f32 %v956, %v1196
        %v1261 = vadd.f32 %v957, %v1197
        %v1262 = vadd.f32 %v958, %v1198
        %v1263 = vadd.f32 %v959, %v1199
        %v1264 = vadd.f32 %v960, %v1200
        %v1265 = vadd.f32 %v961, %v1201
        %v1266 = vadd.f32 %v962, %v1202
        %v1267 = vadd.f32 %v963, %v1203
        %v1268 = vadd.f32 %v964, %v1204
        %v1269 = vadd.f32 %v965, %v1205
        %v1270 = vadd.f32 %v966, %v1206
        %v1271 = vadd.f32 %v967, %v1207
        %v1272 = vadd.f32 %v968, %v1208
        %v1273 = vadd.f32 %v969, %v1209
        %v1274 = vadd.f32 %v970, %v1210
        %v1275 = vadd.f32 %v971, %v1211
        %v1276 = vadd.f32 %v972, %v1212
        %1277 = vset.pattern.permute.xlu0 3
        %1278 = vperm.xlu0 %1277, %v338
        %v1279 = vpop.permute.xlu0 %1278
        %1280 = vset.pattern.permute.xlu0 3
        %1281 = vperm.xlu0 %1280, %v339
        %v1282 = vpop.permute.xlu0 %1281
        %1283 = vset.pattern.permute.xlu0 3
        %1284 = vperm.xlu0 %1283, %v340
        %v1285 = vpop.permute.xlu0 %1284
        %1286 = vset.pattern.permute.xlu0 3
        %1287 = vperm.xlu0 %1286, %v341
        %v1288 = vpop.permute.xlu0 %1287
        %1289 = vset.pattern.permute.xlu0 3
        %1290 = vperm.xlu0 %1289, %v342
        %v1291 = vpop.permute.xlu0 %1290
        %1292 = vset.pattern.permute.xlu0 3
        %1293 = vperm.xlu0 %1292, %v343
        %v1294 = vpop.permute.xlu0 %1293
        %1295 = vset.pattern.permute.xlu0 3
        %1296 = vperm.xlu0 %1295, %v344
        %v1297 = vpop.permute.xlu0 %1296
        %1298 = vset.pattern.permute.xlu0 3
        %1299 = vperm.xlu0 %1298, %v345
        %v1300 = vpop.permute.xlu0 %1299
        %1301 = vset.pattern.permute.xlu0 3
        %1302 = vperm.xlu0 %1301, %v346
        %v1303 = vpop.permute.xlu0 %1302
        %1304 = vset.pattern.permute.xlu0 3
        %1305 = vperm.xlu0 %1304, %v347
        %v1306 = vpop.permute.xlu0 %1305
        %1307 = vset.pattern.permute.xlu0 3
        %1308 = vperm.xlu0 %1307, %v348
        %v1309 = vpop.permute.xlu0 %1308
        %1310 = vset.pattern.permute.xlu0 3
        %1311 = vperm.xlu0 %1310, %v349
        %v1312 = vpop.permute.xlu0 %1311
        %1313 = vset.pattern.permute.xlu0 3
        %1314 = vperm.xlu0 %1313, %v350
        %v1315 = vpop.permute.xlu0 %1314
        %1316 = vset.pattern.permute.xlu0 3
        %1317 = vperm.xlu0 %1316, %v351
        %v1318 = vpop.permute.xlu0 %1317
        %1319 = vset.pattern.permute.xlu0 3
        %1320 = vperm.xlu0 %1319, %v352
        %v1321 = vpop.permute.xlu0 %1320
        %1322 = vset.pattern.permute.xlu0 3
        %1323 = vperm.xlu0 %1322, %v353
        %v1324 = vpop.permute.xlu0 %1323
        %vm1325 = vcmp.eq.s32.totalorder %v1279, %v361
        %vm1326 = vcmp.eq.s32.totalorder %v1279, %v362
        %vm1327 = vcmp.eq.s32.totalorder %v1279, %v363
        %vm1328 = vcmp.eq.s32.totalorder %v1279, %v364
        %vm1329 = vcmp.eq.s32.totalorder %v1282, %v361
        %vm1330 = vcmp.eq.s32.totalorder %v1282, %v362
        %vm1331 = vcmp.eq.s32.totalorder %v1282, %v363
        %vm1332 = vcmp.eq.s32.totalorder %v1282, %v364
        %vm1333 = vcmp.eq.s32.totalorder %v1285, %v361
        %vm1334 = vcmp.eq.s32.totalorder %v1285, %v362
        %vm1335 = vcmp.eq.s32.totalorder %v1285, %v363
        %vm1336 = vcmp.eq.s32.totalorder %v1285, %v364
        %vm1337 = vcmp.eq.s32.totalorder %v1288, %v361
        %vm1338 = vcmp.eq.s32.totalorder %v1288, %v362
        %vm1339 = vcmp.eq.s32.totalorder %v1288, %v363
        %vm1340 = vcmp.eq.s32.totalorder %v1288, %v364
        %vm1341 = vcmp.eq.s32.totalorder %v1291, %v361
        %vm1342 = vcmp.eq.s32.totalorder %v1291, %v362
        %vm1343 = vcmp.eq.s32.totalorder %v1291, %v363
        %vm1344 = vcmp.eq.s32.totalorder %v1291, %v364
        %vm1345 = vcmp.eq.s32.totalorder %v1294, %v361
        %vm1346 = vcmp.eq.s32.totalorder %v1294, %v362
        %vm1347 = vcmp.eq.s32.totalorder %v1294, %v363
        %vm1348 = vcmp.eq.s32.totalorder %v1294, %v364
        %vm1349 = vcmp.eq.s32.totalorder %v1297, %v361
        %vm1350 = vcmp.eq.s32.totalorder %v1297, %v362
        %vm1351 = vcmp.eq.s32.totalorder %v1297, %v363
        %vm1352 = vcmp.eq.s32.totalorder %v1297, %v364
        %vm1353 = vcmp.eq.s32.totalorder %v1300, %v361
        %vm1354 = vcmp.eq.s32.totalorder %v1300, %v362
        %vm1355 = vcmp.eq.s32.totalorder %v1300, %v363
        %vm1356 = vcmp.eq.s32.totalorder %v1300, %v364
        %vm1357 = vcmp.eq.s32.totalorder %v1303, %v361
        %vm1358 = vcmp.eq.s32.totalorder %v1303, %v362
        %vm1359 = vcmp.eq.s32.totalorder %v1303, %v363
        %vm1360 = vcmp.eq.s32.totalorder %v1303, %v364
        %vm1361 = vcmp.eq.s32.totalorder %v1306, %v361
        %vm1362 = vcmp.eq.s32.totalorder %v1306, %v362
        %vm1363 = vcmp.eq.s32.totalorder %v1306, %v363
        %vm1364 = vcmp.eq.s32.totalorder %v1306, %v364
        %vm1365 = vcmp.eq.s32.totalorder %v1309, %v361
        %vm1366 = vcmp.eq.s32.totalorder %v1309, %v362
        %vm1367 = vcmp.eq.s32.totalorder %v1309, %v363
        %vm1368 = vcmp.eq.s32.totalorder %v1309, %v364
        %vm1369 = vcmp.eq.s32.totalorder %v1312, %v361
        %vm1370 = vcmp.eq.s32.totalorder %v1312, %v362
        %vm1371 = vcmp.eq.s32.totalorder %v1312, %v363
        %vm1372 = vcmp.eq.s32.totalorder %v1312, %v364
        %vm1373 = vcmp.eq.s32.totalorder %v1315, %v361
        %vm1374 = vcmp.eq.s32.totalorder %v1315, %v362
        %vm1375 = vcmp.eq.s32.totalorder %v1315, %v363
        %vm1376 = vcmp.eq.s32.totalorder %v1315, %v364
        %vm1377 = vcmp.eq.s32.totalorder %v1318, %v361
        %vm1378 = vcmp.eq.s32.totalorder %v1318, %v362
        %vm1379 = vcmp.eq.s32.totalorder %v1318, %v363
        %vm1380 = vcmp.eq.s32.totalorder %v1318, %v364
        %vm1381 = vcmp.eq.s32.totalorder %v1321, %v361
        %vm1382 = vcmp.eq.s32.totalorder %v1321, %v362
        %vm1383 = vcmp.eq.s32.totalorder %v1321, %v363
        %vm1384 = vcmp.eq.s32.totalorder %v1321, %v364
        %vm1385 = vcmp.eq.s32.totalorder %v1324, %v361
        %vm1386 = vcmp.eq.s32.totalorder %v1324, %v362
        %vm1387 = vcmp.eq.s32.totalorder %v1324, %v363
        %vm1388 = vcmp.eq.s32.totalorder %v1324, %v364
        %v1389 = vsel %vm1325, 1, 0
        %v1390 = vsel %vm1326, 1, 0
        %v1391 = vsel %vm1327, 1, 0
        %v1392 = vsel %vm1328, 1, 0
        %v1393 = vsel %vm1329, 1, 0
        %v1394 = vsel %vm1330, 1, 0
        %v1395 = vsel %vm1331, 1, 0
        %v1396 = vsel %vm1332, 1, 0
        %v1397 = vsel %vm1333, 1, 0
        %v1398 = vsel %vm1334, 1, 0
        %v1399 = vsel %vm1335, 1, 0
        %v1400 = vsel %vm1336, 1, 0
        %v1401 = vsel %vm1337, 1, 0
        %v1402 = vsel %vm1338, 1, 0
        %v1403 = vsel %vm1339, 1, 0
        %v1404 = vsel %vm1340, 1, 0
        %v1405 = vsel %vm1341, 1, 0
        %v1406 = vsel %vm1342, 1, 0
        %v1407 = vsel %vm1343, 1, 0
        %v1408 = vsel %vm1344, 1, 0
        %v1409 = vsel %vm1345, 1, 0
        %v1410 = vsel %vm1346, 1, 0
        %v1411 = vsel %vm1347, 1, 0
        %v1412 = vsel %vm1348, 1, 0
        %v1413 = vsel %vm1349, 1, 0
        %v1414 = vsel %vm1350, 1, 0
        %v1415 = vsel %vm1351, 1, 0
        %v1416 = vsel %vm1352, 1, 0
        %v1417 = vsel %vm1353, 1, 0
        %v1418 = vsel %vm1354, 1, 0
        %v1419 = vsel %vm1355, 1, 0
        %v1420 = vsel %vm1356, 1, 0
        %v1421 = vsel %vm1357, 1, 0
        %v1422 = vsel %vm1358, 1, 0
        %v1423 = vsel %vm1359, 1, 0
        %v1424 = vsel %vm1360, 1, 0
        %v1425 = vsel %vm1361, 1, 0
        %v1426 = vsel %vm1362, 1, 0
        %v1427 = vsel %vm1363, 1, 0
        %v1428 = vsel %vm1364, 1, 0
        %v1429 = vsel %vm1365, 1, 0
        %v1430 = vsel %vm1366, 1, 0
        %v1431 = vsel %vm1367, 1, 0
        %v1432 = vsel %vm1368, 1, 0
        %v1433 = vsel %vm1369, 1, 0
        %v1434 = vsel %vm1370, 1, 0
        %v1435 = vsel %vm1371, 1, 0
        %v1436 = vsel %vm1372, 1, 0
        %v1437 = vsel %vm1373, 1, 0
        %v1438 = vsel %vm1374, 1, 0
        %v1439 = vsel %vm1375, 1, 0
        %v1440 = vsel %vm1376, 1, 0
        %v1441 = vsel %vm1377, 1, 0
        %v1442 = vsel %vm1378, 1, 0
        %v1443 = vsel %vm1379, 1, 0
        %v1444 = vsel %vm1380, 1, 0
        %v1445 = vsel %vm1381, 1, 0
        %v1446 = vsel %vm1382, 1, 0
        %v1447 = vsel %vm1383, 1, 0
        %v1448 = vsel %vm1384, 1, 0
        %v1449 = vsel %vm1385, 1, 0
        %v1450 = vsel %vm1386, 1, 0
        %v1451 = vsel %vm1387, 1, 0
        %v1452 = vsel %vm1388, 1, 0
        %v1453 = vcvt.s32.f32 %v1389
        %v1454 = vcvt.s32.f32 %v1390
        %v1455 = vcvt.s32.f32 %v1391
        %v1456 = vcvt.s32.f32 %v1392
        %v1457 = vcvt.s32.f32 %v1393
        %v1458 = vcvt.s32.f32 %v1394
        %v1459 = vcvt.s32.f32 %v1395
        %v1460 = vcvt.s32.f32 %v1396
        %v1461 = vcvt.s32.f32 %v1397
        %v1462 = vcvt.s32.f32 %v1398
        %v1463 = vcvt.s32.f32 %v1399
        %v1464 = vcvt.s32.f32 %v1400
        %v1465 = vcvt.s32.f32 %v1401
        %v1466 = vcvt.s32.f32 %v1402
        %v1467 = vcvt.s32.f32 %v1403
        %v1468 = vcvt.s32.f32 %v1404
        %v1469 = vcvt.s32.f32 %v1405
        %v1470 = vcvt.s32.f32 %v1406
        %v1471 = vcvt.s32.f32 %v1407
        %v1472 = vcvt.s32.f32 %v1408
        %v1473 = vcvt.s32.f32 %v1409
        %v1474 = vcvt.s32.f32 %v1410
        %v1475 = vcvt.s32.f32 %v1411
        %v1476 = vcvt.s32.f32 %v1412
        %v1477 = vcvt.s32.f32 %v1413
        %v1478 = vcvt.s32.f32 %v1414
        %v1479 = vcvt.s32.f32 %v1415
        %v1480 = vcvt.s32.f32 %v1416
        %v1481 = vcvt.s32.f32 %v1417
        %v1482 = vcvt.s32.f32 %v1418
        %v1483 = vcvt.s32.f32 %v1419
        %v1484 = vcvt.s32.f32 %v1420
        %v1485 = vcvt.s32.f32 %v1421
        %v1486 = vcvt.s32.f32 %v1422
        %v1487 = vcvt.s32.f32 %v1423
        %v1488 = vcvt.s32.f32 %v1424
        %v1489 = vcvt.s32.f32 %v1425
        %v1490 = vcvt.s32.f32 %v1426
        %v1491 = vcvt.s32.f32 %v1427
        %v1492 = vcvt.s32.f32 %v1428
        %v1493 = vcvt.s32.f32 %v1429
        %v1494 = vcvt.s32.f32 %v1430
        %v1495 = vcvt.s32.f32 %v1431
        %v1496 = vcvt.s32.f32 %v1432
        %v1497 = vcvt.s32.f32 %v1433
        %v1498 = vcvt.s32.f32 %v1434
        %v1499 = vcvt.s32.f32 %v1435
        %v1500 = vcvt.s32.f32 %v1436
        %v1501 = vcvt.s32.f32 %v1437
        %v1502 = vcvt.s32.f32 %v1438
        %v1503 = vcvt.s32.f32 %v1439
        %v1504 = vcvt.s32.f32 %v1440
        %v1505 = vcvt.s32.f32 %v1441
        %v1506 = vcvt.s32.f32 %v1442
        %v1507 = vcvt.s32.f32 %v1443
        %v1508 = vcvt.s32.f32 %v1444
        %v1509 = vcvt.s32.f32 %v1445
        %v1510 = vcvt.s32.f32 %v1446
        %v1511 = vcvt.s32.f32 %v1447
        %v1512 = vcvt.s32.f32 %v1448
        %v1513 = vcvt.s32.f32 %v1449
        %v1514 = vcvt.s32.f32 %v1450
        %v1515 = vcvt.s32.f32 %v1451
        %v1516 = vcvt.s32.f32 %v1452
        %v1517 = vadd.f32 %v1213, %v1453
        %v1518 = vadd.f32 %v1214, %v1454
        %v1519 = vadd.f32 %v1215, %v1455
        %v1520 = vadd.f32 %v1216, %v1456
        %v1521 = vadd.f32 %v1217, %v1457
        %v1522 = vadd.f32 %v1218, %v1458
        %v1523 = vadd.f32 %v1219, %v1459
        %v1524 = vadd.f32 %v1220, %v1460
        %v1525 = vadd.f32 %v1221, %v1461
        %v1526 = vadd.f32 %v1222, %v1462
        %v1527 = vadd.f32 %v1223, %v1463
        %v1528 = vadd.f32 %v1224, %v1464
        %v1529 = vadd.f32 %v1225, %v1465
        %v1530 = vadd.f32 %v1226, %v1466
        %v1531 = vadd.f32 %v1227, %v1467
        %v1532 = vadd.f32 %v1228, %v1468
        %v1533 = vadd.f32 %v1229, %v1469
        %v1534 = vadd.f32 %v1230, %v1470
        %v1535 = vadd.f32 %v1231, %v1471
        %v1536 = vadd.f32 %v1232, %v1472
        %v1537 = vadd.f32 %v1233, %v1473
        %v1538 = vadd.f32 %v1234, %v1474
        %v1539 = vadd.f32 %v1235, %v1475
        %v1540 = vadd.f32 %v1236, %v1476
        %v1541 = vadd.f32 %v1237, %v1477
        %v1542 = vadd.f32 %v1238, %v1478
        %v1543 = vadd.f32 %v1239, %v1479
        %v1544 = vadd.f32 %v1240, %v1480
        %v1545 = vadd.f32 %v1241, %v1481
        %v1546 = vadd.f32 %v1242, %v1482
        %v1547 = vadd.f32 %v1243, %v1483
        %v1548 = vadd.f32 %v1244, %v1484
        %v1549 = vadd.f32 %v1245, %v1485
        %v1550 = vadd.f32 %v1246, %v1486
        %v1551 = vadd.f32 %v1247, %v1487
        %v1552 = vadd.f32 %v1248, %v1488
        %v1553 = vadd.f32 %v1249, %v1489
        %v1554 = vadd.f32 %v1250, %v1490
        %v1555 = vadd.f32 %v1251, %v1491
        %v1556 = vadd.f32 %v1252, %v1492
        %v1557 = vadd.f32 %v1253, %v1493
        %v1558 = vadd.f32 %v1254, %v1494
        %v1559 = vadd.f32 %v1255, %v1495
        %v1560 = vadd.f32 %v1256, %v1496
        %v1561 = vadd.f32 %v1257, %v1497
        %v1562 = vadd.f32 %v1258, %v1498
        %v1563 = vadd.f32 %v1259, %v1499
        %v1564 = vadd.f32 %v1260, %v1500
        %v1565 = vadd.f32 %v1261, %v1501
        %v1566 = vadd.f32 %v1262, %v1502
        %v1567 = vadd.f32 %v1263, %v1503
        %v1568 = vadd.f32 %v1264, %v1504
        %v1569 = vadd.f32 %v1265, %v1505
        %v1570 = vadd.f32 %v1266, %v1506
        %v1571 = vadd.f32 %v1267, %v1507
        %v1572 = vadd.f32 %v1268, %v1508
        %v1573 = vadd.f32 %v1269, %v1509
        %v1574 = vadd.f32 %v1270, %v1510
        %v1575 = vadd.f32 %v1271, %v1511
        %v1576 = vadd.f32 %v1272, %v1512
        %v1577 = vadd.f32 %v1273, %v1513
        %v1578 = vadd.f32 %v1274, %v1514
        %v1579 = vadd.f32 %v1275, %v1515
        %v1580 = vadd.f32 %v1276, %v1516
        %1581 = vset.pattern.permute.xlu0 4
        %1582 = vperm.xlu0 %1581, %v338
        %v1583 = vpop.permute.xlu0 %1582
        %1584 = vset.pattern.permute.xlu0 4
        %1585 = vperm.xlu0 %1584, %v339
        %v1586 = vpop.permute.xlu0 %1585
        %1587 = vset.pattern.permute.xlu0 4
        %1588 = vperm.xlu0 %1587, %v340
        %v1589 = vpop.permute.xlu0 %1588
        %1590 = vset.pattern.permute.xlu0 4
        %1591 = vperm.xlu0 %1590, %v341
        %v1592 = vpop.permute.xlu0 %1591
        %1593 = vset.pattern.permute.xlu0 4
        %1594 = vperm.xlu0 %1593, %v342
        %v1595 = vpop.permute.xlu0 %1594
        %1596 = vset.pattern.permute.xlu0 4
        %1597 = vperm.xlu0 %1596, %v343
        %v1598 = vpop.permute.xlu0 %1597
        %1599 = vset.pattern.permute.xlu0 4
        %1600 = vperm.xlu0 %1599, %v344
        %v1601 = vpop.permute.xlu0 %1600
        %1602 = vset.pattern.permute.xlu0 4
        %1603 = vperm.xlu0 %1602, %v345
        %v1604 = vpop.permute.xlu0 %1603
        %1605 = vset.pattern.permute.xlu0 4
        %1606 = vperm.xlu0 %1605, %v346
        %v1607 = vpop.permute.xlu0 %1606
        %1608 = vset.pattern.permute.xlu0 4
        %1609 = vperm.xlu0 %1608, %v347
        %v1610 = vpop.permute.xlu0 %1609
        %1611 = vset.pattern.permute.xlu0 4
        %1612 = vperm.xlu0 %1611, %v348
        %v1613 = vpop.permute.xlu0 %1612
        %1614 = vset.pattern.permute.xlu0 4
        %1615 = vperm.xlu0 %1614, %v349
        %v1616 = vpop.permute.xlu0 %1615
        %1617 = vset.pattern.permute.xlu0 4
        %1618 = vperm.xlu0 %1617, %v350
        %v1619 = vpop.permute.xlu0 %1618
        %1620 = vset.pattern.permute.xlu0 4
        %1621 = vperm.xlu0 %1620, %v351
        %v1622 = vpop.permute.xlu0 %1621
        %1623 = vset.pattern.permute.xlu0 4
        %1624 = vperm.xlu0 %1623, %v352
        %v1625 = vpop.permute.xlu0 %1624
        %1626 = vset.pattern.permute.xlu0 4
        %1627 = vperm.xlu0 %1626, %v353
        %v1628 = vpop.permute.xlu0 %1627
        %vm1629 = vcmp.eq.s32.totalorder %v1583, %v361
        %vm1630 = vcmp.eq.s32.totalorder %v1583, %v362
        %vm1631 = vcmp.eq.s32.totalorder %v1583, %v363
        %vm1632 = vcmp.eq.s32.totalorder %v1583, %v364
        %vm1633 = vcmp.eq.s32.totalorder %v1586, %v361
        %vm1634 = vcmp.eq.s32.totalorder %v1586, %v362
        %vm1635 = vcmp.eq.s32.totalorder %v1586, %v363
        %vm1636 = vcmp.eq.s32.totalorder %v1586, %v364
        %vm1637 = vcmp.eq.s32.totalorder %v1589, %v361
        %vm1638 = vcmp.eq.s32.totalorder %v1589, %v362
        %vm1639 = vcmp.eq.s32.totalorder %v1589, %v363
        %vm1640 = vcmp.eq.s32.totalorder %v1589, %v364
        %vm1641 = vcmp.eq.s32.totalorder %v1592, %v361
        %vm1642 = vcmp.eq.s32.totalorder %v1592, %v362
        %vm1643 = vcmp.eq.s32.totalorder %v1592, %v363
        %vm1644 = vcmp.eq.s32.totalorder %v1592, %v364
        %vm1645 = vcmp.eq.s32.totalorder %v1595, %v361
        %vm1646 = vcmp.eq.s32.totalorder %v1595, %v362
        %vm1647 = vcmp.eq.s32.totalorder %v1595, %v363
        %vm1648 = vcmp.eq.s32.totalorder %v1595, %v364
        %vm1649 = vcmp.eq.s32.totalorder %v1598, %v361
        %vm1650 = vcmp.eq.s32.totalorder %v1598, %v362
        %vm1651 = vcmp.eq.s32.totalorder %v1598, %v363
        %vm1652 = vcmp.eq.s32.totalorder %v1598, %v364
        %vm1653 = vcmp.eq.s32.totalorder %v1601, %v361
        %vm1654 = vcmp.eq.s32.totalorder %v1601, %v362
        %vm1655 = vcmp.eq.s32.totalorder %v1601, %v363
        %vm1656 = vcmp.eq.s32.totalorder %v1601, %v364
        %vm1657 = vcmp.eq.s32.totalorder %v1604, %v361
        %vm1658 = vcmp.eq.s32.totalorder %v1604, %v362
        %vm1659 = vcmp.eq.s32.totalorder %v1604, %v363
        %vm1660 = vcmp.eq.s32.totalorder %v1604, %v364
        %vm1661 = vcmp.eq.s32.totalorder %v1607, %v361
        %vm1662 = vcmp.eq.s32.totalorder %v1607, %v362
        %vm1663 = vcmp.eq.s32.totalorder %v1607, %v363
        %vm1664 = vcmp.eq.s32.totalorder %v1607, %v364
        %vm1665 = vcmp.eq.s32.totalorder %v1610, %v361
        %vm1666 = vcmp.eq.s32.totalorder %v1610, %v362
        %vm1667 = vcmp.eq.s32.totalorder %v1610, %v363
        %vm1668 = vcmp.eq.s32.totalorder %v1610, %v364
        %vm1669 = vcmp.eq.s32.totalorder %v1613, %v361
        %vm1670 = vcmp.eq.s32.totalorder %v1613, %v362
        %vm1671 = vcmp.eq.s32.totalorder %v1613, %v363
        %vm1672 = vcmp.eq.s32.totalorder %v1613, %v364
        %vm1673 = vcmp.eq.s32.totalorder %v1616, %v361
        %vm1674 = vcmp.eq.s32.totalorder %v1616, %v362
        %vm1675 = vcmp.eq.s32.totalorder %v1616, %v363
        %vm1676 = vcmp.eq.s32.totalorder %v1616, %v364
        %vm1677 = vcmp.eq.s32.totalorder %v1619, %v361
        %vm1678 = vcmp.eq.s32.totalorder %v1619, %v362
        %vm1679 = vcmp.eq.s32.totalorder %v1619, %v363
        %vm1680 = vcmp.eq.s32.totalorder %v1619, %v364
        %vm1681 = vcmp.eq.s32.totalorder %v1622, %v361
        %vm1682 = vcmp.eq.s32.totalorder %v1622, %v362
        %vm1683 = vcmp.eq.s32.totalorder %v1622, %v363
        %vm1684 = vcmp.eq.s32.totalorder %v1622, %v364
        %vm1685 = vcmp.eq.s32.totalorder %v1625, %v361
        %vm1686 = vcmp.eq.s32.totalorder %v1625, %v362
        %vm1687 = vcmp.eq.s32.totalorder %v1625, %v363
        %vm1688 = vcmp.eq.s32.totalorder %v1625, %v364
        %vm1689 = vcmp.eq.s32.totalorder %v1628, %v361
        %vm1690 = vcmp.eq.s32.totalorder %v1628, %v362
        %vm1691 = vcmp.eq.s32.totalorder %v1628, %v363
        %vm1692 = vcmp.eq.s32.totalorder %v1628, %v364
        %v1693 = vsel %vm1629, 1, 0
        %v1694 = vsel %vm1630, 1, 0
        %v1695 = vsel %vm1631, 1, 0
        %v1696 = vsel %vm1632, 1, 0
        %v1697 = vsel %vm1633, 1, 0
        %v1698 = vsel %vm1634, 1, 0
        %v1699 = vsel %vm1635, 1, 0
        %v1700 = vsel %vm1636, 1, 0
        %v1701 = vsel %vm1637, 1, 0
        %v1702 = vsel %vm1638, 1, 0
        %v1703 = vsel %vm1639, 1, 0
        %v1704 = vsel %vm1640, 1, 0
        %v1705 = vsel %vm1641, 1, 0
        %v1706 = vsel %vm1642, 1, 0
        %v1707 = vsel %vm1643, 1, 0
        %v1708 = vsel %vm1644, 1, 0
        %v1709 = vsel %vm1645, 1, 0
        %v1710 = vsel %vm1646, 1, 0
        %v1711 = vsel %vm1647, 1, 0
        %v1712 = vsel %vm1648, 1, 0
        %v1713 = vsel %vm1649, 1, 0
        %v1714 = vsel %vm1650, 1, 0
        %v1715 = vsel %vm1651, 1, 0
        %v1716 = vsel %vm1652, 1, 0
        %v1717 = vsel %vm1653, 1, 0
        %v1718 = vsel %vm1654, 1, 0
        %v1719 = vsel %vm1655, 1, 0
        %v1720 = vsel %vm1656, 1, 0
        %v1721 = vsel %vm1657, 1, 0
        %v1722 = vsel %vm1658, 1, 0
        %v1723 = vsel %vm1659, 1, 0
        %v1724 = vsel %vm1660, 1, 0
        %v1725 = vsel %vm1661, 1, 0
        %v1726 = vsel %vm1662, 1, 0
        %v1727 = vsel %vm1663, 1, 0
        %v1728 = vsel %vm1664, 1, 0
        %v1729 = vsel %vm1665, 1, 0
        %v1730 = vsel %vm1666, 1, 0
        %v1731 = vsel %vm1667, 1, 0
        %v1732 = vsel %vm1668, 1, 0
        %v1733 = vsel %vm1669, 1, 0
        %v1734 = vsel %vm1670, 1, 0
        %v1735 = vsel %vm1671, 1, 0
        %v1736 = vsel %vm1672, 1, 0
        %v1737 = vsel %vm1673, 1, 0
        %v1738 = vsel %vm1674, 1, 0
        %v1739 = vsel %vm1675, 1, 0
        %v1740 = vsel %vm1676, 1, 0
        %v1741 = vsel %vm1677, 1, 0
        %v1742 = vsel %vm1678, 1, 0
        %v1743 = vsel %vm1679, 1, 0
        %v1744 = vsel %vm1680, 1, 0
        %v1745 = vsel %vm1681, 1, 0
        %v1746 = vsel %vm1682, 1, 0
        %v1747 = vsel %vm1683, 1, 0
        %v1748 = vsel %vm1684, 1, 0
        %v1749 = vsel %vm1685, 1, 0
        %v1750 = vsel %vm1686, 1, 0
        %v1751 = vsel %vm1687, 1, 0
        %v1752 = vsel %vm1688, 1, 0
        %v1753 = vsel %vm1689, 1, 0
        %v1754 = vsel %vm1690, 1, 0
        %v1755 = vsel %vm1691, 1, 0
        %v1756 = vsel %vm1692, 1, 0
        %v1757 = vcvt.s32.f32 %v1693
        %v1758 = vcvt.s32.f32 %v1694
        %v1759 = vcvt.s32.f32 %v1695
        %v1760 = vcvt.s32.f32 %v1696
        %v1761 = vcvt.s32.f32 %v1697
        %v1762 = vcvt.s32.f32 %v1698
        %v1763 = vcvt.s32.f32 %v1699
        %v1764 = vcvt.s32.f32 %v1700
        %v1765 = vcvt.s32.f32 %v1701
        %v1766 = vcvt.s32.f32 %v1702
        %v1767 = vcvt.s32.f32 %v1703
        %v1768 = vcvt.s32.f32 %v1704
        %v1769 = vcvt.s32.f32 %v1705
        %v1770 = vcvt.s32.f32 %v1706
        %v1771 = vcvt.s32.f32 %v1707
        %v1772 = vcvt.s32.f32 %v1708
        %v1773 = vcvt.s32.f32 %v1709
        %v1774 = vcvt.s32.f32 %v1710
        %v1775 = vcvt.s32.f32 %v1711
        %v1776 = vcvt.s32.f32 %v1712
        %v1777 = vcvt.s32.f32 %v1713
        %v1778 = vcvt.s32.f32 %v1714
        %v1779 = vcvt.s32.f32 %v1715
        %v1780 = vcvt.s32.f32 %v1716
        %v1781 = vcvt.s32.f32 %v1717
        %v1782 = vcvt.s32.f32 %v1718
        %v1783 = vcvt.s32.f32 %v1719
        %v1784 = vcvt.s32.f32 %v1720
        %v1785 = vcvt.s32.f32 %v1721
        %v1786 = vcvt.s32.f32 %v1722
        %v1787 = vcvt.s32.f32 %v1723
        %v1788 = vcvt.s32.f32 %v1724
        %v1789 = vcvt.s32.f32 %v1725
        %v1790 = vcvt.s32.f32 %v1726
        %v1791 = vcvt.s32.f32 %v1727
        %v1792 = vcvt.s32.f32 %v1728
        %v1793 = vcvt.s32.f32 %v1729
        %v1794 = vcvt.s32.f32 %v1730
        %v1795 = vcvt.s32.f32 %v1731
        %v1796 = vcvt.s32.f32 %v1732
        %v1797 = vcvt.s32.f32 %v1733
        %v1798 = vcvt.s32.f32 %v1734
        %v1799 = vcvt.s32.f32 %v1735
        %v1800 = vcvt.s32.f32 %v1736
        %v1801 = vcvt.s32.f32 %v1737
        %v1802 = vcvt.s32.f32 %v1738
        %v1803 = vcvt.s32.f32 %v1739
        %v1804 = vcvt.s32.f32 %v1740
        %v1805 = vcvt.s32.f32 %v1741
        %v1806 = vcvt.s32.f32 %v1742
        %v1807 = vcvt.s32.f32 %v1743
        %v1808 = vcvt.s32.f32 %v1744
        %v1809 = vcvt.s32.f32 %v1745
        %v1810 = vcvt.s32.f32 %v1746
        %v1811 = vcvt.s32.f32 %v1747
        %v1812 = vcvt.s32.f32 %v1748
        %v1813 = vcvt.s32.f32 %v1749
        %v1814 = vcvt.s32.f32 %v1750
        %v1815 = vcvt.s32.f32 %v1751
        %v1816 = vcvt.s32.f32 %v1752
        %v1817 = vcvt.s32.f32 %v1753
        %v1818 = vcvt.s32.f32 %v1754
        %v1819 = vcvt.s32.f32 %v1755
        %v1820 = vcvt.s32.f32 %v1756
        %v1821 = vadd.f32 %v1517, %v1757
        %v1822 = vadd.f32 %v1518, %v1758
        %v1823 = vadd.f32 %v1519, %v1759
        %v1824 = vadd.f32 %v1520, %v1760
        %v1825 = vadd.f32 %v1521, %v1761
        %v1826 = vadd.f32 %v1522, %v1762
        %v1827 = vadd.f32 %v1523, %v1763
        %v1828 = vadd.f32 %v1524, %v1764
        %v1829 = vadd.f32 %v1525, %v1765
        %v1830 = vadd.f32 %v1526, %v1766
        %v1831 = vadd.f32 %v1527, %v1767
        %v1832 = vadd.f32 %v1528, %v1768
        %v1833 = vadd.f32 %v1529, %v1769
        %v1834 = vadd.f32 %v1530, %v1770
        %v1835 = vadd.f32 %v1531, %v1771
        %v1836 = vadd.f32 %v1532, %v1772
        %v1837 = vadd.f32 %v1533, %v1773
        %v1838 = vadd.f32 %v1534, %v1774
        %v1839 = vadd.f32 %v1535, %v1775
        %v1840 = vadd.f32 %v1536, %v1776
        %v1841 = vadd.f32 %v1537, %v1777
        %v1842 = vadd.f32 %v1538, %v1778
        %v1843 = vadd.f32 %v1539, %v1779
        %v1844 = vadd.f32 %v1540, %v1780
        %v1845 = vadd.f32 %v1541, %v1781
        %v1846 = vadd.f32 %v1542, %v1782
        %v1847 = vadd.f32 %v1543, %v1783
        %v1848 = vadd.f32 %v1544, %v1784
        %v1849 = vadd.f32 %v1545, %v1785
        %v1850 = vadd.f32 %v1546, %v1786
        %v1851 = vadd.f32 %v1547, %v1787
        %v1852 = vadd.f32 %v1548, %v1788
        %v1853 = vadd.f32 %v1549, %v1789
        %v1854 = vadd.f32 %v1550, %v1790
        %v1855 = vadd.f32 %v1551, %v1791
        %v1856 = vadd.f32 %v1552, %v1792
        %v1857 = vadd.f32 %v1553, %v1793
        %v1858 = vadd.f32 %v1554, %v1794
        %v1859 = vadd.f32 %v1555, %v1795
        %v1860 = vadd.f32 %v1556, %v1796
        %v1861 = vadd.f32 %v1557, %v1797
        %v1862 = vadd.f32 %v1558, %v1798
        %v1863 = vadd.f32 %v1559, %v1799
        %v1864 = vadd.f32 %v1560, %v1800
        %v1865 = vadd.f32 %v1561, %v1801
        %v1866 = vadd.f32 %v1562, %v1802
        %v1867 = vadd.f32 %v1563, %v1803
        %v1868 = vadd.f32 %v1564, %v1804
        %v1869 = vadd.f32 %v1565, %v1805
        %v1870 = vadd.f32 %v1566, %v1806
        %v1871 = vadd.f32 %v1567, %v1807
        %v1872 = vadd.f32 %v1568, %v1808
        %v1873 = vadd.f32 %v1569, %v1809
        %v1874 = vadd.f32 %v1570, %v1810
        %v1875 = vadd.f32 %v1571, %v1811
        %v1876 = vadd.f32 %v1572, %v1812
        %v1877 = vadd.f32 %v1573, %v1813
        %v1878 = vadd.f32 %v1574, %v1814
        %v1879 = vadd.f32 %v1575, %v1815
        %v1880 = vadd.f32 %v1576, %v1816
        %v1881 = vadd.f32 %v1577, %v1817
        %v1882 = vadd.f32 %v1578, %v1818
        %v1883 = vadd.f32 %v1579, %v1819
        %v1884 = vadd.f32 %v1580, %v1820
        %1885 = vset.pattern.permute.xlu0 5
        %1886 = vperm.xlu0 %1885, %v338
        %v1887 = vpop.permute.xlu0 %1886
        %1888 = vset.pattern.permute.xlu0 5
        %1889 = vperm.xlu0 %1888, %v339
        %v1890 = vpop.permute.xlu0 %1889
        %1891 = vset.pattern.permute.xlu0 5
        %1892 = vperm.xlu0 %1891, %v340
        %v1893 = vpop.permute.xlu0 %1892
        %1894 = vset.pattern.permute.xlu0 5
        %1895 = vperm.xlu0 %1894, %v341
        %v1896 = vpop.permute.xlu0 %1895
        %1897 = vset.pattern.permute.xlu0 5
        %1898 = vperm.xlu0 %1897, %v342
        %v1899 = vpop.permute.xlu0 %1898
        %1900 = vset.pattern.permute.xlu0 5
        %1901 = vperm.xlu0 %1900, %v343
        %v1902 = vpop.permute.xlu0 %1901
        %1903 = vset.pattern.permute.xlu0 5
        %1904 = vperm.xlu0 %1903, %v344
        %v1905 = vpop.permute.xlu0 %1904
        %1906 = vset.pattern.permute.xlu0 5
        %1907 = vperm.xlu0 %1906, %v345
        %v1908 = vpop.permute.xlu0 %1907
        %1909 = vset.pattern.permute.xlu0 5
        %1910 = vperm.xlu0 %1909, %v346
        %v1911 = vpop.permute.xlu0 %1910
        %1912 = vset.pattern.permute.xlu0 5
        %1913 = vperm.xlu0 %1912, %v347
        %v1914 = vpop.permute.xlu0 %1913
        %1915 = vset.pattern.permute.xlu0 5
        %1916 = vperm.xlu0 %1915, %v348
        %v1917 = vpop.permute.xlu0 %1916
        %1918 = vset.pattern.permute.xlu0 5
        %1919 = vperm.xlu0 %1918, %v349
        %v1920 = vpop.permute.xlu0 %1919
        %1921 = vset.pattern.permute.xlu0 5
        %1922 = vperm.xlu0 %1921, %v350
        %v1923 = vpop.permute.xlu0 %1922
        %1924 = vset.pattern.permute.xlu0 5
        %1925 = vperm.xlu0 %1924, %v351
        %v1926 = vpop.permute.xlu0 %1925
        %1927 = vset.pattern.permute.xlu0 5
        %1928 = vperm.xlu0 %1927, %v352
        %v1929 = vpop.permute.xlu0 %1928
        %1930 = vset.pattern.permute.xlu0 5
        %1931 = vperm.xlu0 %1930, %v353
        %v1932 = vpop.permute.xlu0 %1931
        %vm1933 = vcmp.eq.s32.totalorder %v1887, %v361
        %vm1934 = vcmp.eq.s32.totalorder %v1887, %v362
        %vm1935 = vcmp.eq.s32.totalorder %v1887, %v363
        %vm1936 = vcmp.eq.s32.totalorder %v1887, %v364
        %vm1937 = vcmp.eq.s32.totalorder %v1890, %v361
        %vm1938 = vcmp.eq.s32.totalorder %v1890, %v362
        %vm1939 = vcmp.eq.s32.totalorder %v1890, %v363
        %vm1940 = vcmp.eq.s32.totalorder %v1890, %v364
        %vm1941 = vcmp.eq.s32.totalorder %v1893, %v361
        %vm1942 = vcmp.eq.s32.totalorder %v1893, %v362
        %vm1943 = vcmp.eq.s32.totalorder %v1893, %v363
        %vm1944 = vcmp.eq.s32.totalorder %v1893, %v364
        %vm1945 = vcmp.eq.s32.totalorder %v1896, %v361
        %vm1946 = vcmp.eq.s32.totalorder %v1896, %v362
        %vm1947 = vcmp.eq.s32.totalorder %v1896, %v363
        %vm1948 = vcmp.eq.s32.totalorder %v1896, %v364
        %vm1949 = vcmp.eq.s32.totalorder %v1899, %v361
        %vm1950 = vcmp.eq.s32.totalorder %v1899, %v362
        %vm1951 = vcmp.eq.s32.totalorder %v1899, %v363
        %vm1952 = vcmp.eq.s32.totalorder %v1899, %v364
        %vm1953 = vcmp.eq.s32.totalorder %v1902, %v361
        %vm1954 = vcmp.eq.s32.totalorder %v1902, %v362
        %vm1955 = vcmp.eq.s32.totalorder %v1902, %v363
        %vm1956 = vcmp.eq.s32.totalorder %v1902, %v364
        %vm1957 = vcmp.eq.s32.totalorder %v1905, %v361
        %vm1958 = vcmp.eq.s32.totalorder %v1905, %v362
        %vm1959 = vcmp.eq.s32.totalorder %v1905, %v363
        %vm1960 = vcmp.eq.s32.totalorder %v1905, %v364
        %vm1961 = vcmp.eq.s32.totalorder %v1908, %v361
        %vm1962 = vcmp.eq.s32.totalorder %v1908, %v362
        %vm1963 = vcmp.eq.s32.totalorder %v1908, %v363
        %vm1964 = vcmp.eq.s32.totalorder %v1908, %v364
        %vm1965 = vcmp.eq.s32.totalorder %v1911, %v361
        %vm1966 = vcmp.eq.s32.totalorder %v1911, %v362
        %vm1967 = vcmp.eq.s32.totalorder %v1911, %v363
        %vm1968 = vcmp.eq.s32.totalorder %v1911, %v364
        %vm1969 = vcmp.eq.s32.totalorder %v1914, %v361
        %vm1970 = vcmp.eq.s32.totalorder %v1914, %v362
        %vm1971 = vcmp.eq.s32.totalorder %v1914, %v363
        %vm1972 = vcmp.eq.s32.totalorder %v1914, %v364
        %vm1973 = vcmp.eq.s32.totalorder %v1917, %v361
        %vm1974 = vcmp.eq.s32.totalorder %v1917, %v362
        %vm1975 = vcmp.eq.s32.totalorder %v1917, %v363
        %vm1976 = vcmp.eq.s32.totalorder %v1917, %v364
        %vm1977 = vcmp.eq.s32.totalorder %v1920, %v361
        %vm1978 = vcmp.eq.s32.totalorder %v1920, %v362
        %vm1979 = vcmp.eq.s32.totalorder %v1920, %v363
        %vm1980 = vcmp.eq.s32.totalorder %v1920, %v364
        %vm1981 = vcmp.eq.s32.totalorder %v1923, %v361
        %vm1982 = vcmp.eq.s32.totalorder %v1923, %v362
        %vm1983 = vcmp.eq.s32.totalorder %v1923, %v363
        %vm1984 = vcmp.eq.s32.totalorder %v1923, %v364
        %vm1985 = vcmp.eq.s32.totalorder %v1926, %v361
        %vm1986 = vcmp.eq.s32.totalorder %v1926, %v362
        %vm1987 = vcmp.eq.s32.totalorder %v1926, %v363
        %vm1988 = vcmp.eq.s32.totalorder %v1926, %v364
        %vm1989 = vcmp.eq.s32.totalorder %v1929, %v361
        %vm1990 = vcmp.eq.s32.totalorder %v1929, %v362
        %vm1991 = vcmp.eq.s32.totalorder %v1929, %v363
        %vm1992 = vcmp.eq.s32.totalorder %v1929, %v364
        %vm1993 = vcmp.eq.s32.totalorder %v1932, %v361
        %vm1994 = vcmp.eq.s32.totalorder %v1932, %v362
        %vm1995 = vcmp.eq.s32.totalorder %v1932, %v363
        %vm1996 = vcmp.eq.s32.totalorder %v1932, %v364
        %v1997 = vsel %vm1933, 1, 0
        %v1998 = vsel %vm1934, 1, 0
        %v1999 = vsel %vm1935, 1, 0
        %v2000 = vsel %vm1936, 1, 0
        %v2001 = vsel %vm1937, 1, 0
        %v2002 = vsel %vm1938, 1, 0
        %v2003 = vsel %vm1939, 1, 0
        %v2004 = vsel %vm1940, 1, 0
        %v2005 = vsel %vm1941, 1, 0
        %v2006 = vsel %vm1942, 1, 0
        %v2007 = vsel %vm1943, 1, 0
        %v2008 = vsel %vm1944, 1, 0
        %v2009 = vsel %vm1945, 1, 0
        %v2010 = vsel %vm1946, 1, 0
        %v2011 = vsel %vm1947, 1, 0
        %v2012 = vsel %vm1948, 1, 0
        %v2013 = vsel %vm1949, 1, 0
        %v2014 = vsel %vm1950, 1, 0
        %v2015 = vsel %vm1951, 1, 0
        %v2016 = vsel %vm1952, 1, 0
        %v2017 = vsel %vm1953, 1, 0
        %v2018 = vsel %vm1954, 1, 0
        %v2019 = vsel %vm1955, 1, 0
        %v2020 = vsel %vm1956, 1, 0
        %v2021 = vsel %vm1957, 1, 0
        %v2022 = vsel %vm1958, 1, 0
        %v2023 = vsel %vm1959, 1, 0
        %v2024 = vsel %vm1960, 1, 0
        %v2025 = vsel %vm1961, 1, 0
        %v2026 = vsel %vm1962, 1, 0
        %v2027 = vsel %vm1963, 1, 0
        %v2028 = vsel %vm1964, 1, 0
        %v2029 = vsel %vm1965, 1, 0
        %v2030 = vsel %vm1966, 1, 0
        %v2031 = vsel %vm1967, 1, 0
        %v2032 = vsel %vm1968, 1, 0
        %v2033 = vsel %vm1969, 1, 0
        %v2034 = vsel %vm1970, 1, 0
        %v2035 = vsel %vm1971, 1, 0
        %v2036 = vsel %vm1972, 1, 0
        %v2037 = vsel %vm1973, 1, 0
        %v2038 = vsel %vm1974, 1, 0
        %v2039 = vsel %vm1975, 1, 0
        %v2040 = vsel %vm1976, 1, 0
        %v2041 = vsel %vm1977, 1, 0
        %v2042 = vsel %vm1978, 1, 0
        %v2043 = vsel %vm1979, 1, 0
        %v2044 = vsel %vm1980, 1, 0
        %v2045 = vsel %vm1981, 1, 0
        %v2046 = vsel %vm1982, 1, 0
        %v2047 = vsel %vm1983, 1, 0
        %v2048 = vsel %vm1984, 1, 0
        %v2049 = vsel %vm1985, 1, 0
        %v2050 = vsel %vm1986, 1, 0
        %v2051 = vsel %vm1987, 1, 0
        %v2052 = vsel %vm1988, 1, 0
        %v2053 = vsel %vm1989, 1, 0
        %v2054 = vsel %vm1990, 1, 0
        %v2055 = vsel %vm1991, 1, 0
        %v2056 = vsel %vm1992, 1, 0
        %v2057 = vsel %vm1993, 1, 0
        %v2058 = vsel %vm1994, 1, 0
        %v2059 = vsel %vm1995, 1, 0
        %v2060 = vsel %vm1996, 1, 0
        %v2061 = vcvt.s32.f32 %v1997
        %v2062 = vcvt.s32.f32 %v1998
        %v2063 = vcvt.s32.f32 %v1999
        %v2064 = vcvt.s32.f32 %v2000
        %v2065 = vcvt.s32.f32 %v2001
        %v2066 = vcvt.s32.f32 %v2002
        %v2067 = vcvt.s32.f32 %v2003
        %v2068 = vcvt.s32.f32 %v2004
        %v2069 = vcvt.s32.f32 %v2005
        %v2070 = vcvt.s32.f32 %v2006
        %v2071 = vcvt.s32.f32 %v2007
        %v2072 = vcvt.s32.f32 %v2008
        %v2073 = vcvt.s32.f32 %v2009
        %v2074 = vcvt.s32.f32 %v2010
        %v2075 = vcvt.s32.f32 %v2011
        %v2076 = vcvt.s32.f32 %v2012
        %v2077 = vcvt.s32.f32 %v2013
        %v2078 = vcvt.s32.f32 %v2014
        %v2079 = vcvt.s32.f32 %v2015
        %v2080 = vcvt.s32.f32 %v2016
        %v2081 = vcvt.s32.f32 %v2017
        %v2082 = vcvt.s32.f32 %v2018
        %v2083 = vcvt.s32.f32 %v2019
        %v2084 = vcvt.s32.f32 %v2020
        %v2085 = vcvt.s32.f32 %v2021
        %v2086 = vcvt.s32.f32 %v2022
        %v2087 = vcvt.s32.f32 %v2023
        %v2088 = vcvt.s32.f32 %v2024
        %v2089 = vcvt.s32.f32 %v2025
        %v2090 = vcvt.s32.f32 %v2026
        %v2091 = vcvt.s32.f32 %v2027
        %v2092 = vcvt.s32.f32 %v2028
        %v2093 = vcvt.s32.f32 %v2029
        %v2094 = vcvt.s32.f32 %v2030
        %v2095 = vcvt.s32.f32 %v2031
        %v2096 = vcvt.s32.f32 %v2032
        %v2097 = vcvt.s32.f32 %v2033
        %v2098 = vcvt.s32.f32 %v2034
        %v2099 = vcvt.s32.f32 %v2035
        %v2100 = vcvt.s32.f32 %v2036
        %v2101 = vcvt.s32.f32 %v2037
        %v2102 = vcvt.s32.f32 %v2038
        %v2103 = vcvt.s32.f32 %v2039
        %v2104 = vcvt.s32.f32 %v2040
        %v2105 = vcvt.s32.f32 %v2041
        %v2106 = vcvt.s32.f32 %v2042
        %v2107 = vcvt.s32.f32 %v2043
        %v2108 = vcvt.s32.f32 %v2044
        %v2109 = vcvt.s32.f32 %v2045
        %v2110 = vcvt.s32.f32 %v2046
        %v2111 = vcvt.s32.f32 %v2047
        %v2112 = vcvt.s32.f32 %v2048
        %v2113 = vcvt.s32.f32 %v2049
        %v2114 = vcvt.s32.f32 %v2050
        %v2115 = vcvt.s32.f32 %v2051
        %v2116 = vcvt.s32.f32 %v2052
        %v2117 = vcvt.s32.f32 %v2053
        %v2118 = vcvt.s32.f32 %v2054
        %v2119 = vcvt.s32.f32 %v2055
        %v2120 = vcvt.s32.f32 %v2056
        %v2121 = vcvt.s32.f32 %v2057
        %v2122 = vcvt.s32.f32 %v2058
        %v2123 = vcvt.s32.f32 %v2059
        %v2124 = vcvt.s32.f32 %v2060
        %v2125 = vadd.f32 %v1821, %v2061
        %v2126 = vadd.f32 %v1822, %v2062
        %v2127 = vadd.f32 %v1823, %v2063
        %v2128 = vadd.f32 %v1824, %v2064
        %v2129 = vadd.f32 %v1825, %v2065
        %v2130 = vadd.f32 %v1826, %v2066
        %v2131 = vadd.f32 %v1827, %v2067
        %v2132 = vadd.f32 %v1828, %v2068
        %v2133 = vadd.f32 %v1829, %v2069
        %v2134 = vadd.f32 %v1830, %v2070
        %v2135 = vadd.f32 %v1831, %v2071
        %v2136 = vadd.f32 %v1832, %v2072
        %v2137 = vadd.f32 %v1833, %v2073
        %v2138 = vadd.f32 %v1834, %v2074
        %v2139 = vadd.f32 %v1835, %v2075
        %v2140 = vadd.f32 %v1836, %v2076
        %v2141 = vadd.f32 %v1837, %v2077
        %v2142 = vadd.f32 %v1838, %v2078
        %v2143 = vadd.f32 %v1839, %v2079
        %v2144 = vadd.f32 %v1840, %v2080
        %v2145 = vadd.f32 %v1841, %v2081
        %v2146 = vadd.f32 %v1842, %v2082
        %v2147 = vadd.f32 %v1843, %v2083
        %v2148 = vadd.f32 %v1844, %v2084
        %v2149 = vadd.f32 %v1845, %v2085
        %v2150 = vadd.f32 %v1846, %v2086
        %v2151 = vadd.f32 %v1847, %v2087
        %v2152 = vadd.f32 %v1848, %v2088
        %v2153 = vadd.f32 %v1849, %v2089
        %v2154 = vadd.f32 %v1850, %v2090
        %v2155 = vadd.f32 %v1851, %v2091
        %v2156 = vadd.f32 %v1852, %v2092
        %v2157 = vadd.f32 %v1853, %v2093
        %v2158 = vadd.f32 %v1854, %v2094
        %v2159 = vadd.f32 %v1855, %v2095
        %v2160 = vadd.f32 %v1856, %v2096
        %v2161 = vadd.f32 %v1857, %v2097
        %v2162 = vadd.f32 %v1858, %v2098
        %v2163 = vadd.f32 %v1859, %v2099
        %v2164 = vadd.f32 %v1860, %v2100
        %v2165 = vadd.f32 %v1861, %v2101
        %v2166 = vadd.f32 %v1862, %v2102
        %v2167 = vadd.f32 %v1863, %v2103
        %v2168 = vadd.f32 %v1864, %v2104
        %v2169 = vadd.f32 %v1865, %v2105
        %v2170 = vadd.f32 %v1866, %v2106
        %v2171 = vadd.f32 %v1867, %v2107
        %v2172 = vadd.f32 %v1868, %v2108
        %v2173 = vadd.f32 %v1869, %v2109
        %v2174 = vadd.f32 %v1870, %v2110
        %v2175 = vadd.f32 %v1871, %v2111
        %v2176 = vadd.f32 %v1872, %v2112
        %v2177 = vadd.f32 %v1873, %v2113
        %v2178 = vadd.f32 %v1874, %v2114
        %v2179 = vadd.f32 %v1875, %v2115
        %v2180 = vadd.f32 %v1876, %v2116
        %v2181 = vadd.f32 %v1877, %v2117
        %v2182 = vadd.f32 %v1878, %v2118
        %v2183 = vadd.f32 %v1879, %v2119
        %v2184 = vadd.f32 %v1880, %v2120
        %v2185 = vadd.f32 %v1881, %v2121
        %v2186 = vadd.f32 %v1882, %v2122
        %v2187 = vadd.f32 %v1883, %v2123
        %v2188 = vadd.f32 %v1884, %v2124
        %2189 = vset.pattern.permute.xlu0 6
        %2190 = vperm.xlu0 %2189, %v338
        %v2191 = vpop.permute.xlu0 %2190
        %2192 = vset.pattern.permute.xlu0 6
        %2193 = vperm.xlu0 %2192, %v339
        %v2194 = vpop.permute.xlu0 %2193
        %2195 = vset.pattern.permute.xlu0 6
        %2196 = vperm.xlu0 %2195, %v340
        %v2197 = vpop.permute.xlu0 %2196
        %2198 = vset.pattern.permute.xlu0 6
        %2199 = vperm.xlu0 %2198, %v341
        %v2200 = vpop.permute.xlu0 %2199
        %2201 = vset.pattern.permute.xlu0 6
        %2202 = vperm.xlu0 %2201, %v342
        %v2203 = vpop.permute.xlu0 %2202
        %2204 = vset.pattern.permute.xlu0 6
        %2205 = vperm.xlu0 %2204, %v343
        %v2206 = vpop.permute.xlu0 %2205
        %2207 = vset.pattern.permute.xlu0 6
        %2208 = vperm.xlu0 %2207, %v344
        %v2209 = vpop.permute.xlu0 %2208
        %2210 = vset.pattern.permute.xlu0 6
        %2211 = vperm.xlu0 %2210, %v345
        %v2212 = vpop.permute.xlu0 %2211
        %2213 = vset.pattern.permute.xlu0 6
        %2214 = vperm.xlu0 %2213, %v346
        %v2215 = vpop.permute.xlu0 %2214
        %2216 = vset.pattern.permute.xlu0 6
        %2217 = vperm.xlu0 %2216, %v347
        %v2218 = vpop.permute.xlu0 %2217
        %2219 = vset.pattern.permute.xlu0 6
        %2220 = vperm.xlu0 %2219, %v348
        %v2221 = vpop.permute.xlu0 %2220
        %2222 = vset.pattern.permute.xlu0 6
        %2223 = vperm.xlu0 %2222, %v349
        %v2224 = vpop.permute.xlu0 %2223
        %2225 = vset.pattern.permute.xlu0 6
        %2226 = vperm.xlu0 %2225, %v350
        %v2227 = vpop.permute.xlu0 %2226
        %2228 = vset.pattern.permute.xlu0 6
        %2229 = vperm.xlu0 %2228, %v351
        %v2230 = vpop.permute.xlu0 %2229
        %2231 = vset.pattern.permute.xlu0 6
        %2232 = vperm.xlu0 %2231, %v352
        %v2233 = vpop.permute.xlu0 %2232
        %2234 = vset.pattern.permute.xlu0 6
        %2235 = vperm.xlu0 %2234, %v353
        %v2236 = vpop.permute.xlu0 %2235
        %vm2237 = vcmp.eq.s32.totalorder %v2191, %v361
        %vm2238 = vcmp.eq.s32.totalorder %v2191, %v362
        %vm2239 = vcmp.eq.s32.totalorder %v2191, %v363
        %vm2240 = vcmp.eq.s32.totalorder %v2191, %v364
        %vm2241 = vcmp.eq.s32.totalorder %v2194, %v361
        %vm2242 = vcmp.eq.s32.totalorder %v2194, %v362
        %vm2243 = vcmp.eq.s32.totalorder %v2194, %v363
        %vm2244 = vcmp.eq.s32.totalorder %v2194, %v364
        %vm2245 = vcmp.eq.s32.totalorder %v2197, %v361
        %vm2246 = vcmp.eq.s32.totalorder %v2197, %v362
        %vm2247 = vcmp.eq.s32.totalorder %v2197, %v363
        %vm2248 = vcmp.eq.s32.totalorder %v2197, %v364
        %vm2249 = vcmp.eq.s32.totalorder %v2200, %v361
        %vm2250 = vcmp.eq.s32.totalorder %v2200, %v362
        %vm2251 = vcmp.eq.s32.totalorder %v2200, %v363
        %vm2252 = vcmp.eq.s32.totalorder %v2200, %v364
        %vm2253 = vcmp.eq.s32.totalorder %v2203, %v361
        %vm2254 = vcmp.eq.s32.totalorder %v2203, %v362
        %vm2255 = vcmp.eq.s32.totalorder %v2203, %v363
        %vm2256 = vcmp.eq.s32.totalorder %v2203, %v364
        %vm2257 = vcmp.eq.s32.totalorder %v2206, %v361
        %vm2258 = vcmp.eq.s32.totalorder %v2206, %v362
        %vm2259 = vcmp.eq.s32.totalorder %v2206, %v363
        %vm2260 = vcmp.eq.s32.totalorder %v2206, %v364
        %vm2261 = vcmp.eq.s32.totalorder %v2209, %v361
        %vm2262 = vcmp.eq.s32.totalorder %v2209, %v362
        %vm2263 = vcmp.eq.s32.totalorder %v2209, %v363
        %vm2264 = vcmp.eq.s32.totalorder %v2209, %v364
        %vm2265 = vcmp.eq.s32.totalorder %v2212, %v361
        %vm2266 = vcmp.eq.s32.totalorder %v2212, %v362
        %vm2267 = vcmp.eq.s32.totalorder %v2212, %v363
        %vm2268 = vcmp.eq.s32.totalorder %v2212, %v364
        %vm2269 = vcmp.eq.s32.totalorder %v2215, %v361
        %vm2270 = vcmp.eq.s32.totalorder %v2215, %v362
        %vm2271 = vcmp.eq.s32.totalorder %v2215, %v363
        %vm2272 = vcmp.eq.s32.totalorder %v2215, %v364
        %vm2273 = vcmp.eq.s32.totalorder %v2218, %v361
        %vm2274 = vcmp.eq.s32.totalorder %v2218, %v362
        %vm2275 = vcmp.eq.s32.totalorder %v2218, %v363
        %vm2276 = vcmp.eq.s32.totalorder %v2218, %v364
        %vm2277 = vcmp.eq.s32.totalorder %v2221, %v361
        %vm2278 = vcmp.eq.s32.totalorder %v2221, %v362
        %vm2279 = vcmp.eq.s32.totalorder %v2221, %v363
        %vm2280 = vcmp.eq.s32.totalorder %v2221, %v364
        %vm2281 = vcmp.eq.s32.totalorder %v2224, %v361
        %vm2282 = vcmp.eq.s32.totalorder %v2224, %v362
        %vm2283 = vcmp.eq.s32.totalorder %v2224, %v363
        %vm2284 = vcmp.eq.s32.totalorder %v2224, %v364
        %vm2285 = vcmp.eq.s32.totalorder %v2227, %v361
        %vm2286 = vcmp.eq.s32.totalorder %v2227, %v362
        %vm2287 = vcmp.eq.s32.totalorder %v2227, %v363
        %vm2288 = vcmp.eq.s32.totalorder %v2227, %v364
        %vm2289 = vcmp.eq.s32.totalorder %v2230, %v361
        %vm2290 = vcmp.eq.s32.totalorder %v2230, %v362
        %vm2291 = vcmp.eq.s32.totalorder %v2230, %v363
        %vm2292 = vcmp.eq.s32.totalorder %v2230, %v364
        %vm2293 = vcmp.eq.s32.totalorder %v2233, %v361
        %vm2294 = vcmp.eq.s32.totalorder %v2233, %v362
        %vm2295 = vcmp.eq.s32.totalorder %v2233, %v363
        %vm2296 = vcmp.eq.s32.totalorder %v2233, %v364
        %vm2297 = vcmp.eq.s32.totalorder %v2236, %v361
        %vm2298 = vcmp.eq.s32.totalorder %v2236, %v362
        %vm2299 = vcmp.eq.s32.totalorder %v2236, %v363
        %vm2300 = vcmp.eq.s32.totalorder %v2236, %v364
        %v2301 = vsel %vm2237, 1, 0
        %v2302 = vsel %vm2238, 1, 0
        %v2303 = vsel %vm2239, 1, 0
        %v2304 = vsel %vm2240, 1, 0
        %v2305 = vsel %vm2241, 1, 0
        %v2306 = vsel %vm2242, 1, 0
        %v2307 = vsel %vm2243, 1, 0
        %v2308 = vsel %vm2244, 1, 0
        %v2309 = vsel %vm2245, 1, 0
        %v2310 = vsel %vm2246, 1, 0
        %v2311 = vsel %vm2247, 1, 0
        %v2312 = vsel %vm2248, 1, 0
        %v2313 = vsel %vm2249, 1, 0
        %v2314 = vsel %vm2250, 1, 0
        %v2315 = vsel %vm2251, 1, 0
        %v2316 = vsel %vm2252, 1, 0
        %v2317 = vsel %vm2253, 1, 0
        %v2318 = vsel %vm2254, 1, 0
        %v2319 = vsel %vm2255, 1, 0
        %v2320 = vsel %vm2256, 1, 0
        %v2321 = vsel %vm2257, 1, 0
        %v2322 = vsel %vm2258, 1, 0
        %v2323 = vsel %vm2259, 1, 0
        %v2324 = vsel %vm2260, 1, 0
        %v2325 = vsel %vm2261, 1, 0
        %v2326 = vsel %vm2262, 1, 0
        %v2327 = vsel %vm2263, 1, 0
        %v2328 = vsel %vm2264, 1, 0
        %v2329 = vsel %vm2265, 1, 0
        %v2330 = vsel %vm2266, 1, 0
        %v2331 = vsel %vm2267, 1, 0
        %v2332 = vsel %vm2268, 1, 0
        %v2333 = vsel %vm2269, 1, 0
        %v2334 = vsel %vm2270, 1, 0
        %v2335 = vsel %vm2271, 1, 0
        %v2336 = vsel %vm2272, 1, 0
        %v2337 = vsel %vm2273, 1, 0
        %v2338 = vsel %vm2274, 1, 0
        %v2339 = vsel %vm2275, 1, 0
        %v2340 = vsel %vm2276, 1, 0
        %v2341 = vsel %vm2277, 1, 0
        %v2342 = vsel %vm2278, 1, 0
        %v2343 = vsel %vm2279, 1, 0
        %v2344 = vsel %vm2280, 1, 0
        %v2345 = vsel %vm2281, 1, 0
        %v2346 = vsel %vm2282, 1, 0
        %v2347 = vsel %vm2283, 1, 0
        %v2348 = vsel %vm2284, 1, 0
        %v2349 = vsel %vm2285, 1, 0
        %v2350 = vsel %vm2286, 1, 0
        %v2351 = vsel %vm2287, 1, 0
        %v2352 = vsel %vm2288, 1, 0
        %v2353 = vsel %vm2289, 1, 0
        %v2354 = vsel %vm2290, 1, 0
        %v2355 = vsel %vm2291, 1, 0
        %v2356 = vsel %vm2292, 1, 0
        %v2357 = vsel %vm2293, 1, 0
        %v2358 = vsel %vm2294, 1, 0
        %v2359 = vsel %vm2295, 1, 0
        %v2360 = vsel %vm2296, 1, 0
        %v2361 = vsel %vm2297, 1, 0
        %v2362 = vsel %vm2298, 1, 0
        %v2363 = vsel %vm2299, 1, 0
        %v2364 = vsel %vm2300, 1, 0
        %v2365 = vcvt.s32.f32 %v2301
        %v2366 = vcvt.s32.f32 %v2302
        %v2367 = vcvt.s32.f32 %v2303
        %v2368 = vcvt.s32.f32 %v2304
        %v2369 = vcvt.s32.f32 %v2305
        %v2370 = vcvt.s32.f32 %v2306
        %v2371 = vcvt.s32.f32 %v2307
        %v2372 = vcvt.s32.f32 %v2308
        %v2373 = vcvt.s32.f32 %v2309
        %v2374 = vcvt.s32.f32 %v2310
        %v2375 = vcvt.s32.f32 %v2311
        %v2376 = vcvt.s32.f32 %v2312
        %v2377 = vcvt.s32.f32 %v2313
        %v2378 = vcvt.s32.f32 %v2314
        %v2379 = vcvt.s32.f32 %v2315
        %v2380 = vcvt.s32.f32 %v2316
        %v2381 = vcvt.s32.f32 %v2317
        %v2382 = vcvt.s32.f32 %v2318
        %v2383 = vcvt.s32.f32 %v2319
        %v2384 = vcvt.s32.f32 %v2320
        %v2385 = vcvt.s32.f32 %v2321
        %v2386 = vcvt.s32.f32 %v2322
        %v2387 = vcvt.s32.f32 %v2323
        %v2388 = vcvt.s32.f32 %v2324
        %v2389 = vcvt.s32.f32 %v2325
        %v2390 = vcvt.s32.f32 %v2326
        %v2391 = vcvt.s32.f32 %v2327
        %v2392 = vcvt.s32.f32 %v2328
        %v2393 = vcvt.s32.f32 %v2329
        %v2394 = vcvt.s32.f32 %v2330
        %v2395 = vcvt.s32.f32 %v2331
        %v2396 = vcvt.s32.f32 %v2332
        %v2397 = vcvt.s32.f32 %v2333
        %v2398 = vcvt.s32.f32 %v2334
        %v2399 = vcvt.s32.f32 %v2335
        %v2400 = vcvt.s32.f32 %v2336
        %v2401 = vcvt.s32.f32 %v2337
        %v2402 = vcvt.s32.f32 %v2338
        %v2403 = vcvt.s32.f32 %v2339
        %v2404 = vcvt.s32.f32 %v2340
        %v2405 = vcvt.s32.f32 %v2341
        %v2406 = vcvt.s32.f32 %v2342
        %v2407 = vcvt.s32.f32 %v2343
        %v2408 = vcvt.s32.f32 %v2344
        %v2409 = vcvt.s32.f32 %v2345
        %v2410 = vcvt.s32.f32 %v2346
        %v2411 = vcvt.s32.f32 %v2347
        %v2412 = vcvt.s32.f32 %v2348
        %v2413 = vcvt.s32.f32 %v2349
        %v2414 = vcvt.s32.f32 %v2350
        %v2415 = vcvt.s32.f32 %v2351
        %v2416 = vcvt.s32.f32 %v2352
        %v2417 = vcvt.s32.f32 %v2353
        %v2418 = vcvt.s32.f32 %v2354
        %v2419 = vcvt.s32.f32 %v2355
        %v2420 = vcvt.s32.f32 %v2356
        %v2421 = vcvt.s32.f32 %v2357
        %v2422 = vcvt.s32.f32 %v2358
        %v2423 = vcvt.s32.f32 %v2359
        %v2424 = vcvt.s32.f32 %v2360
        %v2425 = vcvt.s32.f32 %v2361
        %v2426 = vcvt.s32.f32 %v2362
        %v2427 = vcvt.s32.f32 %v2363
        %v2428 = vcvt.s32.f32 %v2364
        %v2429 = vadd.f32 %v2125, %v2365
        %v2430 = vadd.f32 %v2126, %v2366
        %v2431 = vadd.f32 %v2127, %v2367
        %v2432 = vadd.f32 %v2128, %v2368
        %v2433 = vadd.f32 %v2129, %v2369
        %v2434 = vadd.f32 %v2130, %v2370
        %v2435 = vadd.f32 %v2131, %v2371
        %v2436 = vadd.f32 %v2132, %v2372
        %v2437 = vadd.f32 %v2133, %v2373
        %v2438 = vadd.f32 %v2134, %v2374
        %v2439 = vadd.f32 %v2135, %v2375
        %v2440 = vadd.f32 %v2136, %v2376
        %v2441 = vadd.f32 %v2137, %v2377
        %v2442 = vadd.f32 %v2138, %v2378
        %v2443 = vadd.f32 %v2139, %v2379
        %v2444 = vadd.f32 %v2140, %v2380
        %v2445 = vadd.f32 %v2141, %v2381
        %v2446 = vadd.f32 %v2142, %v2382
        %v2447 = vadd.f32 %v2143, %v2383
        %v2448 = vadd.f32 %v2144, %v2384
        %v2449 = vadd.f32 %v2145, %v2385
        %v2450 = vadd.f32 %v2146, %v2386
        %v2451 = vadd.f32 %v2147, %v2387
        %v2452 = vadd.f32 %v2148, %v2388
        %v2453 = vadd.f32 %v2149, %v2389
        %v2454 = vadd.f32 %v2150, %v2390
        %v2455 = vadd.f32 %v2151, %v2391
        %v2456 = vadd.f32 %v2152, %v2392
        %v2457 = vadd.f32 %v2153, %v2393
        %v2458 = vadd.f32 %v2154, %v2394
        %v2459 = vadd.f32 %v2155, %v2395
        %v2460 = vadd.f32 %v2156, %v2396
        %v2461 = vadd.f32 %v2157, %v2397
        %v2462 = vadd.f32 %v2158, %v2398
        %v2463 = vadd.f32 %v2159, %v2399
        %v2464 = vadd.f32 %v2160, %v2400
        %v2465 = vadd.f32 %v2161, %v2401
        %v2466 = vadd.f32 %v2162, %v2402
        %v2467 = vadd.f32 %v2163, %v2403
        %v2468 = vadd.f32 %v2164, %v2404
        %v2469 = vadd.f32 %v2165, %v2405
        %v2470 = vadd.f32 %v2166, %v2406
        %v2471 = vadd.f32 %v2167, %v2407
        %v2472 = vadd.f32 %v2168, %v2408
        %v2473 = vadd.f32 %v2169, %v2409
        %v2474 = vadd.f32 %v2170, %v2410
        %v2475 = vadd.f32 %v2171, %v2411
        %v2476 = vadd.f32 %v2172, %v2412
        %v2477 = vadd.f32 %v2173, %v2413
        %v2478 = vadd.f32 %v2174, %v2414
        %v2479 = vadd.f32 %v2175, %v2415
        %v2480 = vadd.f32 %v2176, %v2416
        %v2481 = vadd.f32 %v2177, %v2417
        %v2482 = vadd.f32 %v2178, %v2418
        %v2483 = vadd.f32 %v2179, %v2419
        %v2484 = vadd.f32 %v2180, %v2420
        %v2485 = vadd.f32 %v2181, %v2421
        %v2486 = vadd.f32 %v2182, %v2422
        %v2487 = vadd.f32 %v2183, %v2423
        %v2488 = vadd.f32 %v2184, %v2424
        %v2489 = vadd.f32 %v2185, %v2425
        %v2490 = vadd.f32 %v2186, %v2426
        %v2491 = vadd.f32 %v2187, %v2427
        %v2492 = vadd.f32 %v2188, %v2428
        %2493 = vset.pattern.permute.xlu0 7
        %2494 = vperm.xlu0 %2493, %v338
        %v2495 = vpop.permute.xlu0 %2494
        %2496 = vset.pattern.permute.xlu0 7
        %2497 = vperm.xlu0 %2496, %v339
        %v2498 = vpop.permute.xlu0 %2497
        %2499 = vset.pattern.permute.xlu0 7
        %2500 = vperm.xlu0 %2499, %v340
        %v2501 = vpop.permute.xlu0 %2500
        %2502 = vset.pattern.permute.xlu0 7
        %2503 = vperm.xlu0 %2502, %v341
        %v2504 = vpop.permute.xlu0 %2503
        %2505 = vset.pattern.permute.xlu0 7
        %2506 = vperm.xlu0 %2505, %v342
        %v2507 = vpop.permute.xlu0 %2506
        %2508 = vset.pattern.permute.xlu0 7
        %2509 = vperm.xlu0 %2508, %v343
        %v2510 = vpop.permute.xlu0 %2509
        %2511 = vset.pattern.permute.xlu0 7
        %2512 = vperm.xlu0 %2511, %v344
        %v2513 = vpop.permute.xlu0 %2512
        %2514 = vset.pattern.permute.xlu0 7
        %2515 = vperm.xlu0 %2514, %v345
        %v2516 = vpop.permute.xlu0 %2515
        %2517 = vset.pattern.permute.xlu0 7
        %2518 = vperm.xlu0 %2517, %v346
        %v2519 = vpop.permute.xlu0 %2518
        %2520 = vset.pattern.permute.xlu0 7
        %2521 = vperm.xlu0 %2520, %v347
        %v2522 = vpop.permute.xlu0 %2521
        %2523 = vset.pattern.permute.xlu0 7
        %2524 = vperm.xlu0 %2523, %v348
        %v2525 = vpop.permute.xlu0 %2524
        %2526 = vset.pattern.permute.xlu0 7
        %2527 = vperm.xlu0 %2526, %v349
        %v2528 = vpop.permute.xlu0 %2527
        %2529 = vset.pattern.permute.xlu0 7
        %2530 = vperm.xlu0 %2529, %v350
        %v2531 = vpop.permute.xlu0 %2530
        %2532 = vset.pattern.permute.xlu0 7
        %2533 = vperm.xlu0 %2532, %v351
        %v2534 = vpop.permute.xlu0 %2533
        %2535 = vset.pattern.permute.xlu0 7
        %2536 = vperm.xlu0 %2535, %v352
        %v2537 = vpop.permute.xlu0 %2536
        %2538 = vset.pattern.permute.xlu0 7
        %2539 = vperm.xlu0 %2538, %v353
        %v2540 = vpop.permute.xlu0 %2539
        %vm2541 = vcmp.eq.s32.totalorder %v2495, %v361
        %vm2542 = vcmp.eq.s32.totalorder %v2495, %v362
        %vm2543 = vcmp.eq.s32.totalorder %v2495, %v363
        %vm2544 = vcmp.eq.s32.totalorder %v2495, %v364
        %vm2545 = vcmp.eq.s32.totalorder %v2498, %v361
        %vm2546 = vcmp.eq.s32.totalorder %v2498, %v362
        %vm2547 = vcmp.eq.s32.totalorder %v2498, %v363
        %vm2548 = vcmp.eq.s32.totalorder %v2498, %v364
        %vm2549 = vcmp.eq.s32.totalorder %v2501, %v361
        %vm2550 = vcmp.eq.s32.totalorder %v2501, %v362
        %vm2551 = vcmp.eq.s32.totalorder %v2501, %v363
        %vm2552 = vcmp.eq.s32.totalorder %v2501, %v364
        %vm2553 = vcmp.eq.s32.totalorder %v2504, %v361
        %vm2554 = vcmp.eq.s32.totalorder %v2504, %v362
        %vm2555 = vcmp.eq.s32.totalorder %v2504, %v363
        %vm2556 = vcmp.eq.s32.totalorder %v2504, %v364
        %vm2557 = vcmp.eq.s32.totalorder %v2507, %v361
        %vm2558 = vcmp.eq.s32.totalorder %v2507, %v362
        %vm2559 = vcmp.eq.s32.totalorder %v2507, %v363
        %vm2560 = vcmp.eq.s32.totalorder %v2507, %v364
        %vm2561 = vcmp.eq.s32.totalorder %v2510, %v361
        %vm2562 = vcmp.eq.s32.totalorder %v2510, %v362
        %vm2563 = vcmp.eq.s32.totalorder %v2510, %v363
        %vm2564 = vcmp.eq.s32.totalorder %v2510, %v364
        %vm2565 = vcmp.eq.s32.totalorder %v2513, %v361
        %vm2566 = vcmp.eq.s32.totalorder %v2513, %v362
        %vm2567 = vcmp.eq.s32.totalorder %v2513, %v363
        %vm2568 = vcmp.eq.s32.totalorder %v2513, %v364
        %vm2569 = vcmp.eq.s32.totalorder %v2516, %v361
        %vm2570 = vcmp.eq.s32.totalorder %v2516, %v362
        %vm2571 = vcmp.eq.s32.totalorder %v2516, %v363
        %vm2572 = vcmp.eq.s32.totalorder %v2516, %v364
        %vm2573 = vcmp.eq.s32.totalorder %v2519, %v361
        %vm2574 = vcmp.eq.s32.totalorder %v2519, %v362
        %vm2575 = vcmp.eq.s32.totalorder %v2519, %v363
        %vm2576 = vcmp.eq.s32.totalorder %v2519, %v364
        %vm2577 = vcmp.eq.s32.totalorder %v2522, %v361
        %vm2578 = vcmp.eq.s32.totalorder %v2522, %v362
        %vm2579 = vcmp.eq.s32.totalorder %v2522, %v363
        %vm2580 = vcmp.eq.s32.totalorder %v2522, %v364
        %vm2581 = vcmp.eq.s32.totalorder %v2525, %v361
        %vm2582 = vcmp.eq.s32.totalorder %v2525, %v362
        %vm2583 = vcmp.eq.s32.totalorder %v2525, %v363
        %vm2584 = vcmp.eq.s32.totalorder %v2525, %v364
        %vm2585 = vcmp.eq.s32.totalorder %v2528, %v361
        %vm2586 = vcmp.eq.s32.totalorder %v2528, %v362
        %vm2587 = vcmp.eq.s32.totalorder %v2528, %v363
        %vm2588 = vcmp.eq.s32.totalorder %v2528, %v364
        %vm2589 = vcmp.eq.s32.totalorder %v2531, %v361
        %vm2590 = vcmp.eq.s32.totalorder %v2531, %v362
        %vm2591 = vcmp.eq.s32.totalorder %v2531, %v363
        %vm2592 = vcmp.eq.s32.totalorder %v2531, %v364
        %vm2593 = vcmp.eq.s32.totalorder %v2534, %v361
        %vm2594 = vcmp.eq.s32.totalorder %v2534, %v362
        %vm2595 = vcmp.eq.s32.totalorder %v2534, %v363
        %vm2596 = vcmp.eq.s32.totalorder %v2534, %v364
        %vm2597 = vcmp.eq.s32.totalorder %v2537, %v361
        %vm2598 = vcmp.eq.s32.totalorder %v2537, %v362
        %vm2599 = vcmp.eq.s32.totalorder %v2537, %v363
        %vm2600 = vcmp.eq.s32.totalorder %v2537, %v364
        %vm2601 = vcmp.eq.s32.totalorder %v2540, %v361
        %vm2602 = vcmp.eq.s32.totalorder %v2540, %v362
        %vm2603 = vcmp.eq.s32.totalorder %v2540, %v363
        %vm2604 = vcmp.eq.s32.totalorder %v2540, %v364
        %v2605 = vsel %vm2541, 1, 0
        %v2606 = vsel %vm2542, 1, 0
        %v2607 = vsel %vm2543, 1, 0
        %v2608 = vsel %vm2544, 1, 0
        %v2609 = vsel %vm2545, 1, 0
        %v2610 = vsel %vm2546, 1, 0
        %v2611 = vsel %vm2547, 1, 0
        %v2612 = vsel %vm2548, 1, 0
        %v2613 = vsel %vm2549, 1, 0
        %v2614 = vsel %vm2550, 1, 0
        %v2615 = vsel %vm2551, 1, 0
        %v2616 = vsel %vm2552, 1, 0
        %v2617 = vsel %vm2553, 1, 0
        %v2618 = vsel %vm2554, 1, 0
        %v2619 = vsel %vm2555, 1, 0
        %v2620 = vsel %vm2556, 1, 0
        %v2621 = vsel %vm2557, 1, 0
        %v2622 = vsel %vm2558, 1, 0
        %v2623 = vsel %vm2559, 1, 0
        %v2624 = vsel %vm2560, 1, 0
        %v2625 = vsel %vm2561, 1, 0
        %v2626 = vsel %vm2562, 1, 0
        %v2627 = vsel %vm2563, 1, 0
        %v2628 = vsel %vm2564, 1, 0
        %v2629 = vsel %vm2565, 1, 0
        %v2630 = vsel %vm2566, 1, 0
        %v2631 = vsel %vm2567, 1, 0
        %v2632 = vsel %vm2568, 1, 0
        %v2633 = vsel %vm2569, 1, 0
        %v2634 = vsel %vm2570, 1, 0
        %v2635 = vsel %vm2571, 1, 0
        %v2636 = vsel %vm2572, 1, 0
        %v2637 = vsel %vm2573, 1, 0
        %v2638 = vsel %vm2574, 1, 0
        %v2639 = vsel %vm2575, 1, 0
        %v2640 = vsel %vm2576, 1, 0
        %v2641 = vsel %vm2577, 1, 0
        %v2642 = vsel %vm2578, 1, 0
        %v2643 = vsel %vm2579, 1, 0
        %v2644 = vsel %vm2580, 1, 0
        %v2645 = vsel %vm2581, 1, 0
        %v2646 = vsel %vm2582, 1, 0
        %v2647 = vsel %vm2583, 1, 0
        %v2648 = vsel %vm2584, 1, 0
        %v2649 = vsel %vm2585, 1, 0
        %v2650 = vsel %vm2586, 1, 0
        %v2651 = vsel %vm2587, 1, 0
        %v2652 = vsel %vm2588, 1, 0
        %v2653 = vsel %vm2589, 1, 0
        %v2654 = vsel %vm2590, 1, 0
        %v2655 = vsel %vm2591, 1, 0
        %v2656 = vsel %vm2592, 1, 0
        %v2657 = vsel %vm2593, 1, 0
        %v2658 = vsel %vm2594, 1, 0
        %v2659 = vsel %vm2595, 1, 0
        %v2660 = vsel %vm2596, 1, 0
        %v2661 = vsel %vm2597, 1, 0
        %v2662 = vsel %vm2598, 1, 0
        %v2663 = vsel %vm2599, 1, 0
        %v2664 = vsel %vm2600, 1, 0
        %v2665 = vsel %vm2601, 1, 0
        %v2666 = vsel %vm2602, 1, 0
        %v2667 = vsel %vm2603, 1, 0
        %v2668 = vsel %vm2604, 1, 0
        %v2669 = vcvt.s32.f32 %v2605
        %v2670 = vcvt.s32.f32 %v2606
        %v2671 = vcvt.s32.f32 %v2607
        %v2672 = vcvt.s32.f32 %v2608
        %v2673 = vcvt.s32.f32 %v2609
        %v2674 = vcvt.s32.f32 %v2610
        %v2675 = vcvt.s32.f32 %v2611
        %v2676 = vcvt.s32.f32 %v2612
        %v2677 = vcvt.s32.f32 %v2613
        %v2678 = vcvt.s32.f32 %v2614
        %v2679 = vcvt.s32.f32 %v2615
        %v2680 = vcvt.s32.f32 %v2616
        %v2681 = vcvt.s32.f32 %v2617
        %v2682 = vcvt.s32.f32 %v2618
        %v2683 = vcvt.s32.f32 %v2619
        %v2684 = vcvt.s32.f32 %v2620
        %v2685 = vcvt.s32.f32 %v2621
        %v2686 = vcvt.s32.f32 %v2622
        %v2687 = vcvt.s32.f32 %v2623
        %v2688 = vcvt.s32.f32 %v2624
        %v2689 = vcvt.s32.f32 %v2625
        %v2690 = vcvt.s32.f32 %v2626
        %v2691 = vcvt.s32.f32 %v2627
        %v2692 = vcvt.s32.f32 %v2628
        %v2693 = vcvt.s32.f32 %v2629
        %v2694 = vcvt.s32.f32 %v2630
        %v2695 = vcvt.s32.f32 %v2631
        %v2696 = vcvt.s32.f32 %v2632
        %v2697 = vcvt.s32.f32 %v2633
        %v2698 = vcvt.s32.f32 %v2634
        %v2699 = vcvt.s32.f32 %v2635
        %v2700 = vcvt.s32.f32 %v2636
        %v2701 = vcvt.s32.f32 %v2637
        %v2702 = vcvt.s32.f32 %v2638
        %v2703 = vcvt.s32.f32 %v2639
        %v2704 = vcvt.s32.f32 %v2640
        %v2705 = vcvt.s32.f32 %v2641
        %v2706 = vcvt.s32.f32 %v2642
        %v2707 = vcvt.s32.f32 %v2643
        %v2708 = vcvt.s32.f32 %v2644
        %v2709 = vcvt.s32.f32 %v2645
        %v2710 = vcvt.s32.f32 %v2646
        %v2711 = vcvt.s32.f32 %v2647
        %v2712 = vcvt.s32.f32 %v2648
        %v2713 = vcvt.s32.f32 %v2649
        %v2714 = vcvt.s32.f32 %v2650
        %v2715 = vcvt.s32.f32 %v2651
        %v2716 = vcvt.s32.f32 %v2652
        %v2717 = vcvt.s32.f32 %v2653
        %v2718 = vcvt.s32.f32 %v2654
        %v2719 = vcvt.s32.f32 %v2655
        %v2720 = vcvt.s32.f32 %v2656
        %v2721 = vcvt.s32.f32 %v2657
        %v2722 = vcvt.s32.f32 %v2658
        %v2723 = vcvt.s32.f32 %v2659
        %v2724 = vcvt.s32.f32 %v2660
        %v2725 = vcvt.s32.f32 %v2661
        %v2726 = vcvt.s32.f32 %v2662
        %v2727 = vcvt.s32.f32 %v2663
        %v2728 = vcvt.s32.f32 %v2664
        %v2729 = vcvt.s32.f32 %v2665
        %v2730 = vcvt.s32.f32 %v2666
        %v2731 = vcvt.s32.f32 %v2667
        %v2732 = vcvt.s32.f32 %v2668
        %v2733 = vadd.f32 %v2429, %v2669
        %v2734 = vadd.f32 %v2430, %v2670
        %v2735 = vadd.f32 %v2431, %v2671
        %v2736 = vadd.f32 %v2432, %v2672
        %v2737 = vadd.f32 %v2433, %v2673
        %v2738 = vadd.f32 %v2434, %v2674
        %v2739 = vadd.f32 %v2435, %v2675
        %v2740 = vadd.f32 %v2436, %v2676
        %v2741 = vadd.f32 %v2437, %v2677
        %v2742 = vadd.f32 %v2438, %v2678
        %v2743 = vadd.f32 %v2439, %v2679
        %v2744 = vadd.f32 %v2440, %v2680
        %v2745 = vadd.f32 %v2441, %v2681
        %v2746 = vadd.f32 %v2442, %v2682
        %v2747 = vadd.f32 %v2443, %v2683
        %v2748 = vadd.f32 %v2444, %v2684
        %v2749 = vadd.f32 %v2445, %v2685
        %v2750 = vadd.f32 %v2446, %v2686
        %v2751 = vadd.f32 %v2447, %v2687
        %v2752 = vadd.f32 %v2448, %v2688
        %v2753 = vadd.f32 %v2449, %v2689
        %v2754 = vadd.f32 %v2450, %v2690
        %v2755 = vadd.f32 %v2451, %v2691
        %v2756 = vadd.f32 %v2452, %v2692
        %v2757 = vadd.f32 %v2453, %v2693
        %v2758 = vadd.f32 %v2454, %v2694
        %v2759 = vadd.f32 %v2455, %v2695
        %v2760 = vadd.f32 %v2456, %v2696
        %v2761 = vadd.f32 %v2457, %v2697
        %v2762 = vadd.f32 %v2458, %v2698
        %v2763 = vadd.f32 %v2459, %v2699
        %v2764 = vadd.f32 %v2460, %v2700
        %v2765 = vadd.f32 %v2461, %v2701
        %v2766 = vadd.f32 %v2462, %v2702
        %v2767 = vadd.f32 %v2463, %v2703
        %v2768 = vadd.f32 %v2464, %v2704
        %v2769 = vadd.f32 %v2465, %v2705
        %v2770 = vadd.f32 %v2466, %v2706
        %v2771 = vadd.f32 %v2467, %v2707
        %v2772 = vadd.f32 %v2468, %v2708
        %v2773 = vadd.f32 %v2469, %v2709
        %v2774 = vadd.f32 %v2470, %v2710
        %v2775 = vadd.f32 %v2471, %v2711
        %v2776 = vadd.f32 %v2472, %v2712
        %v2777 = vadd.f32 %v2473, %v2713
        %v2778 = vadd.f32 %v2474, %v2714
        %v2779 = vadd.f32 %v2475, %v2715
        %v2780 = vadd.f32 %v2476, %v2716
        %v2781 = vadd.f32 %v2477, %v2717
        %v2782 = vadd.f32 %v2478, %v2718
        %v2783 = vadd.f32 %v2479, %v2719
        %v2784 = vadd.f32 %v2480, %v2720
        %v2785 = vadd.f32 %v2481, %v2721
        %v2786 = vadd.f32 %v2482, %v2722
        %v2787 = vadd.f32 %v2483, %v2723
        %v2788 = vadd.f32 %v2484, %v2724
        %v2789 = vadd.f32 %v2485, %v2725
        %v2790 = vadd.f32 %v2486, %v2726
        %v2791 = vadd.f32 %v2487, %v2727
        %v2792 = vadd.f32 %v2488, %v2728
        %v2793 = vadd.f32 %v2489, %v2729
        %v2794 = vadd.f32 %v2490, %v2730
        %v2795 = vadd.f32 %v2491, %v2731
        %v2796 = vadd.f32 %v2492, %v2732
        %2797 = vset.pattern.permute.xlu0 8
        %2798 = vperm.xlu0 %2797, %v338
        %v2799 = vpop.permute.xlu0 %2798
        %2800 = vset.pattern.permute.xlu0 8
        %2801 = vperm.xlu0 %2800, %v339
        %v2802 = vpop.permute.xlu0 %2801
        %2803 = vset.pattern.permute.xlu0 8
        %2804 = vperm.xlu0 %2803, %v340
        %v2805 = vpop.permute.xlu0 %2804
        %2806 = vset.pattern.permute.xlu0 8
        %2807 = vperm.xlu0 %2806, %v341
        %v2808 = vpop.permute.xlu0 %2807
        %2809 = vset.pattern.permute.xlu0 8
        %2810 = vperm.xlu0 %2809, %v342
        %v2811 = vpop.permute.xlu0 %2810
        %2812 = vset.pattern.permute.xlu0 8
        %2813 = vperm.xlu0 %2812, %v343
        %v2814 = vpop.permute.xlu0 %2813
        %2815 = vset.pattern.permute.xlu0 8
        %2816 = vperm.xlu0 %2815, %v344
        %v2817 = vpop.permute.xlu0 %2816
        %2818 = vset.pattern.permute.xlu0 8
        %2819 = vperm.xlu0 %2818, %v345
        %v2820 = vpop.permute.xlu0 %2819
        %2821 = vset.pattern.permute.xlu0 8
        %2822 = vperm.xlu0 %2821, %v346
        %v2823 = vpop.permute.xlu0 %2822
        %2824 = vset.pattern.permute.xlu0 8
        %2825 = vperm.xlu0 %2824, %v347
        %v2826 = vpop.permute.xlu0 %2825
        %2827 = vset.pattern.permute.xlu0 8
        %2828 = vperm.xlu0 %2827, %v348
        %v2829 = vpop.permute.xlu0 %2828
        %2830 = vset.pattern.permute.xlu0 8
        %2831 = vperm.xlu0 %2830, %v349
        %v2832 = vpop.permute.xlu0 %2831
        %2833 = vset.pattern.permute.xlu0 8
        %2834 = vperm.xlu0 %2833, %v350
        %v2835 = vpop.permute.xlu0 %2834
        %2836 = vset.pattern.permute.xlu0 8
        %2837 = vperm.xlu0 %2836, %v351
        %v2838 = vpop.permute.xlu0 %2837
        %2839 = vset.pattern.permute.xlu0 8
        %2840 = vperm.xlu0 %2839, %v352
        %v2841 = vpop.permute.xlu0 %2840
        %2842 = vset.pattern.permute.xlu0 8
        %2843 = vperm.xlu0 %2842, %v353
        %v2844 = vpop.permute.xlu0 %2843
        %vm2845 = vcmp.eq.s32.totalorder %v2799, %v361
        %vm2846 = vcmp.eq.s32.totalorder %v2799, %v362
        %vm2847 = vcmp.eq.s32.totalorder %v2799, %v363
        %vm2848 = vcmp.eq.s32.totalorder %v2799, %v364
        %vm2849 = vcmp.eq.s32.totalorder %v2802, %v361
        %vm2850 = vcmp.eq.s32.totalorder %v2802, %v362
        %vm2851 = vcmp.eq.s32.totalorder %v2802, %v363
        %vm2852 = vcmp.eq.s32.totalorder %v2802, %v364
        %vm2853 = vcmp.eq.s32.totalorder %v2805, %v361
        %vm2854 = vcmp.eq.s32.totalorder %v2805, %v362
        %vm2855 = vcmp.eq.s32.totalorder %v2805, %v363
        %vm2856 = vcmp.eq.s32.totalorder %v2805, %v364
        %vm2857 = vcmp.eq.s32.totalorder %v2808, %v361
        %vm2858 = vcmp.eq.s32.totalorder %v2808, %v362
        %vm2859 = vcmp.eq.s32.totalorder %v2808, %v363
        %vm2860 = vcmp.eq.s32.totalorder %v2808, %v364
        %vm2861 = vcmp.eq.s32.totalorder %v2811, %v361
        %vm2862 = vcmp.eq.s32.totalorder %v2811, %v362
        %vm2863 = vcmp.eq.s32.totalorder %v2811, %v363
        %vm2864 = vcmp.eq.s32.totalorder %v2811, %v364
        %vm2865 = vcmp.eq.s32.totalorder %v2814, %v361
        %vm2866 = vcmp.eq.s32.totalorder %v2814, %v362
        %vm2867 = vcmp.eq.s32.totalorder %v2814, %v363
        %vm2868 = vcmp.eq.s32.totalorder %v2814, %v364
        %vm2869 = vcmp.eq.s32.totalorder %v2817, %v361
        %vm2870 = vcmp.eq.s32.totalorder %v2817, %v362
        %vm2871 = vcmp.eq.s32.totalorder %v2817, %v363
        %vm2872 = vcmp.eq.s32.totalorder %v2817, %v364
        %vm2873 = vcmp.eq.s32.totalorder %v2820, %v361
        %vm2874 = vcmp.eq.s32.totalorder %v2820, %v362
        %vm2875 = vcmp.eq.s32.totalorder %v2820, %v363
        %vm2876 = vcmp.eq.s32.totalorder %v2820, %v364
        %vm2877 = vcmp.eq.s32.totalorder %v2823, %v361
        %vm2878 = vcmp.eq.s32.totalorder %v2823, %v362
        %vm2879 = vcmp.eq.s32.totalorder %v2823, %v363
        %vm2880 = vcmp.eq.s32.totalorder %v2823, %v364
        %vm2881 = vcmp.eq.s32.totalorder %v2826, %v361
        %vm2882 = vcmp.eq.s32.totalorder %v2826, %v362
        %vm2883 = vcmp.eq.s32.totalorder %v2826, %v363
        %vm2884 = vcmp.eq.s32.totalorder %v2826, %v364
        %vm2885 = vcmp.eq.s32.totalorder %v2829, %v361
        %vm2886 = vcmp.eq.s32.totalorder %v2829, %v362
        %vm2887 = vcmp.eq.s32.totalorder %v2829, %v363
        %vm2888 = vcmp.eq.s32.totalorder %v2829, %v364
        %vm2889 = vcmp.eq.s32.totalorder %v2832, %v361
        %vm2890 = vcmp.eq.s32.totalorder %v2832, %v362
        %vm2891 = vcmp.eq.s32.totalorder %v2832, %v363
        %vm2892 = vcmp.eq.s32.totalorder %v2832, %v364
        %vm2893 = vcmp.eq.s32.totalorder %v2835, %v361
        %vm2894 = vcmp.eq.s32.totalorder %v2835, %v362
        %vm2895 = vcmp.eq.s32.totalorder %v2835, %v363
        %vm2896 = vcmp.eq.s32.totalorder %v2835, %v364
        %vm2897 = vcmp.eq.s32.totalorder %v2838, %v361
        %vm2898 = vcmp.eq.s32.totalorder %v2838, %v362
        %vm2899 = vcmp.eq.s32.totalorder %v2838, %v363
        %vm2900 = vcmp.eq.s32.totalorder %v2838, %v364
        %vm2901 = vcmp.eq.s32.totalorder %v2841, %v361
        %vm2902 = vcmp.eq.s32.totalorder %v2841, %v362
        %vm2903 = vcmp.eq.s32.totalorder %v2841, %v363
        %vm2904 = vcmp.eq.s32.totalorder %v2841, %v364
        %vm2905 = vcmp.eq.s32.totalorder %v2844, %v361
        %vm2906 = vcmp.eq.s32.totalorder %v2844, %v362
        %vm2907 = vcmp.eq.s32.totalorder %v2844, %v363
        %vm2908 = vcmp.eq.s32.totalorder %v2844, %v364
        %v2909 = vsel %vm2845, 1, 0
        %v2910 = vsel %vm2846, 1, 0
        %v2911 = vsel %vm2847, 1, 0
        %v2912 = vsel %vm2848, 1, 0
        %v2913 = vsel %vm2849, 1, 0
        %v2914 = vsel %vm2850, 1, 0
        %v2915 = vsel %vm2851, 1, 0
        %v2916 = vsel %vm2852, 1, 0
        %v2917 = vsel %vm2853, 1, 0
        %v2918 = vsel %vm2854, 1, 0
        %v2919 = vsel %vm2855, 1, 0
        %v2920 = vsel %vm2856, 1, 0
        %v2921 = vsel %vm2857, 1, 0
        %v2922 = vsel %vm2858, 1, 0
        %v2923 = vsel %vm2859, 1, 0
        %v2924 = vsel %vm2860, 1, 0
        %v2925 = vsel %vm2861, 1, 0
        %v2926 = vsel %vm2862, 1, 0
        %v2927 = vsel %vm2863, 1, 0
        %v2928 = vsel %vm2864, 1, 0
        %v2929 = vsel %vm2865, 1, 0
        %v2930 = vsel %vm2866, 1, 0
        %v2931 = vsel %vm2867, 1, 0
        %v2932 = vsel %vm2868, 1, 0
        %v2933 = vsel %vm2869, 1, 0
        %v2934 = vsel %vm2870, 1, 0
        %v2935 = vsel %vm2871, 1, 0
        %v2936 = vsel %vm2872, 1, 0
        %v2937 = vsel %vm2873, 1, 0
        %v2938 = vsel %vm2874, 1, 0
        %v2939 = vsel %vm2875, 1, 0
        %v2940 = vsel %vm2876, 1, 0
        %v2941 = vsel %vm2877, 1, 0
        %v2942 = vsel %vm2878, 1, 0
        %v2943 = vsel %vm2879, 1, 0
        %v2944 = vsel %vm2880, 1, 0
        %v2945 = vsel %vm2881, 1, 0
        %v2946 = vsel %vm2882, 1, 0
        %v2947 = vsel %vm2883, 1, 0
        %v2948 = vsel %vm2884, 1, 0
        %v2949 = vsel %vm2885, 1, 0
        %v2950 = vsel %vm2886, 1, 0
        %v2951 = vsel %vm2887, 1, 0
        %v2952 = vsel %vm2888, 1, 0
        %v2953 = vsel %vm2889, 1, 0
        %v2954 = vsel %vm2890, 1, 0
        %v2955 = vsel %vm2891, 1, 0
        %v2956 = vsel %vm2892, 1, 0
        %v2957 = vsel %vm2893, 1, 0
        %v2958 = vsel %vm2894, 1, 0
        %v2959 = vsel %vm2895, 1, 0
        %v2960 = vsel %vm2896, 1, 0
        %v2961 = vsel %vm2897, 1, 0
        %v2962 = vsel %vm2898, 1, 0
        %v2963 = vsel %vm2899, 1, 0
        %v2964 = vsel %vm2900, 1, 0
        %v2965 = vsel %vm2901, 1, 0
        %v2966 = vsel %vm2902, 1, 0
        %v2967 = vsel %vm2903, 1, 0
        %v2968 = vsel %vm2904, 1, 0
        %v2969 = vsel %vm2905, 1, 0
        %v2970 = vsel %vm2906, 1, 0
        %v2971 = vsel %vm2907, 1, 0
        %v2972 = vsel %vm2908, 1, 0
        %v2973 = vcvt.s32.f32 %v2909
        %v2974 = vcvt.s32.f32 %v2910
        %v2975 = vcvt.s32.f32 %v2911
        %v2976 = vcvt.s32.f32 %v2912
        %v2977 = vcvt.s32.f32 %v2913
        %v2978 = vcvt.s32.f32 %v2914
        %v2979 = vcvt.s32.f32 %v2915
        %v2980 = vcvt.s32.f32 %v2916
        %v2981 = vcvt.s32.f32 %v2917
        %v2982 = vcvt.s32.f32 %v2918
        %v2983 = vcvt.s32.f32 %v2919
        %v2984 = vcvt.s32.f32 %v2920
        %v2985 = vcvt.s32.f32 %v2921
        %v2986 = vcvt.s32.f32 %v2922
        %v2987 = vcvt.s32.f32 %v2923
        %v2988 = vcvt.s32.f32 %v2924
        %v2989 = vcvt.s32.f32 %v2925
        %v2990 = vcvt.s32.f32 %v2926
        %v2991 = vcvt.s32.f32 %v2927
        %v2992 = vcvt.s32.f32 %v2928
        %v2993 = vcvt.s32.f32 %v2929
        %v2994 = vcvt.s32.f32 %v2930
        %v2995 = vcvt.s32.f32 %v2931
        %v2996 = vcvt.s32.f32 %v2932
        %v2997 = vcvt.s32.f32 %v2933
        %v2998 = vcvt.s32.f32 %v2934
        %v2999 = vcvt.s32.f32 %v2935
        %v3000 = vcvt.s32.f32 %v2936
        %v3001 = vcvt.s32.f32 %v2937
        %v3002 = vcvt.s32.f32 %v2938
        %v3003 = vcvt.s32.f32 %v2939
        %v3004 = vcvt.s32.f32 %v2940
        %v3005 = vcvt.s32.f32 %v2941
        %v3006 = vcvt.s32.f32 %v2942
        %v3007 = vcvt.s32.f32 %v2943
        %v3008 = vcvt.s32.f32 %v2944
        %v3009 = vcvt.s32.f32 %v2945
        %v3010 = vcvt.s32.f32 %v2946
        %v3011 = vcvt.s32.f32 %v2947
        %v3012 = vcvt.s32.f32 %v2948
        %v3013 = vcvt.s32.f32 %v2949
        %v3014 = vcvt.s32.f32 %v2950
        %v3015 = vcvt.s32.f32 %v2951
        %v3016 = vcvt.s32.f32 %v2952
        %v3017 = vcvt.s32.f32 %v2953
        %v3018 = vcvt.s32.f32 %v2954
        %v3019 = vcvt.s32.f32 %v2955
        %v3020 = vcvt.s32.f32 %v2956
        %v3021 = vcvt.s32.f32 %v2957
        %v3022 = vcvt.s32.f32 %v2958
        %v3023 = vcvt.s32.f32 %v2959
        %v3024 = vcvt.s32.f32 %v2960
        %v3025 = vcvt.s32.f32 %v2961
        %v3026 = vcvt.s32.f32 %v2962
        %v3027 = vcvt.s32.f32 %v2963
        %v3028 = vcvt.s32.f32 %v2964
        %v3029 = vcvt.s32.f32 %v2965
        %v3030 = vcvt.s32.f32 %v2966
        %v3031 = vcvt.s32.f32 %v2967
        %v3032 = vcvt.s32.f32 %v2968
        %v3033 = vcvt.s32.f32 %v2969
        %v3034 = vcvt.s32.f32 %v2970
        %v3035 = vcvt.s32.f32 %v2971
        %v3036 = vcvt.s32.f32 %v2972
        %v3037 = vadd.f32 %v2733, %v2973
        %v3038 = vadd.f32 %v2734, %v2974
        %v3039 = vadd.f32 %v2735, %v2975
        %v3040 = vadd.f32 %v2736, %v2976
        %v3041 = vadd.f32 %v2737, %v2977
        %v3042 = vadd.f32 %v2738, %v2978
        %v3043 = vadd.f32 %v2739, %v2979
        %v3044 = vadd.f32 %v2740, %v2980
        %v3045 = vadd.f32 %v2741, %v2981
        %v3046 = vadd.f32 %v2742, %v2982
        %v3047 = vadd.f32 %v2743, %v2983
        %v3048 = vadd.f32 %v2744, %v2984
        %v3049 = vadd.f32 %v2745, %v2985
        %v3050 = vadd.f32 %v2746, %v2986
        %v3051 = vadd.f32 %v2747, %v2987
        %v3052 = vadd.f32 %v2748, %v2988
        %v3053 = vadd.f32 %v2749, %v2989
        %v3054 = vadd.f32 %v2750, %v2990
        %v3055 = vadd.f32 %v2751, %v2991
        %v3056 = vadd.f32 %v2752, %v2992
        %v3057 = vadd.f32 %v2753, %v2993
        %v3058 = vadd.f32 %v2754, %v2994
        %v3059 = vadd.f32 %v2755, %v2995
        %v3060 = vadd.f32 %v2756, %v2996
        %v3061 = vadd.f32 %v2757, %v2997
        %v3062 = vadd.f32 %v2758, %v2998
        %v3063 = vadd.f32 %v2759, %v2999
        %v3064 = vadd.f32 %v2760, %v3000
        %v3065 = vadd.f32 %v2761, %v3001
        %v3066 = vadd.f32 %v2762, %v3002
        %v3067 = vadd.f32 %v2763, %v3003
        %v3068 = vadd.f32 %v2764, %v3004
        %v3069 = vadd.f32 %v2765, %v3005
        %v3070 = vadd.f32 %v2766, %v3006
        %v3071 = vadd.f32 %v2767, %v3007
        %v3072 = vadd.f32 %v2768, %v3008
        %v3073 = vadd.f32 %v2769, %v3009
        %v3074 = vadd.f32 %v2770, %v3010
        %v3075 = vadd.f32 %v2771, %v3011
        %v3076 = vadd.f32 %v2772, %v3012
        %v3077 = vadd.f32 %v2773, %v3013
        %v3078 = vadd.f32 %v2774, %v3014
        %v3079 = vadd.f32 %v2775, %v3015
        %v3080 = vadd.f32 %v2776, %v3016
        %v3081 = vadd.f32 %v2777, %v3017
        %v3082 = vadd.f32 %v2778, %v3018
        %v3083 = vadd.f32 %v2779, %v3019
        %v3084 = vadd.f32 %v2780, %v3020
        %v3085 = vadd.f32 %v2781, %v3021
        %v3086 = vadd.f32 %v2782, %v3022
        %v3087 = vadd.f32 %v2783, %v3023
        %v3088 = vadd.f32 %v2784, %v3024
        %v3089 = vadd.f32 %v2785, %v3025
        %v3090 = vadd.f32 %v2786, %v3026
        %v3091 = vadd.f32 %v2787, %v3027
        %v3092 = vadd.f32 %v2788, %v3028
        %v3093 = vadd.f32 %v2789, %v3029
        %v3094 = vadd.f32 %v2790, %v3030
        %v3095 = vadd.f32 %v2791, %v3031
        %v3096 = vadd.f32 %v2792, %v3032
        %v3097 = vadd.f32 %v2793, %v3033
        %v3098 = vadd.f32 %v2794, %v3034
        %v3099 = vadd.f32 %v2795, %v3035
        %v3100 = vadd.f32 %v2796, %v3036
        %3101 = vset.pattern.permute.xlu0 9
        %3102 = vperm.xlu0 %3101, %v338
        %v3103 = vpop.permute.xlu0 %3102
        %3104 = vset.pattern.permute.xlu0 9
        %3105 = vperm.xlu0 %3104, %v339
        %v3106 = vpop.permute.xlu0 %3105
        %3107 = vset.pattern.permute.xlu0 9
        %3108 = vperm.xlu0 %3107, %v340
        %v3109 = vpop.permute.xlu0 %3108
        %3110 = vset.pattern.permute.xlu0 9
        %3111 = vperm.xlu0 %3110, %v341
        %v3112 = vpop.permute.xlu0 %3111
        %3113 = vset.pattern.permute.xlu0 9
        %3114 = vperm.xlu0 %3113, %v342
        %v3115 = vpop.permute.xlu0 %3114
        %3116 = vset.pattern.permute.xlu0 9
        %3117 = vperm.xlu0 %3116, %v343
        %v3118 = vpop.permute.xlu0 %3117
        %3119 = vset.pattern.permute.xlu0 9
        %3120 = vperm.xlu0 %3119, %v344
        %v3121 = vpop.permute.xlu0 %3120
        %3122 = vset.pattern.permute.xlu0 9
        %3123 = vperm.xlu0 %3122, %v345
        %v3124 = vpop.permute.xlu0 %3123
        %3125 = vset.pattern.permute.xlu0 9
        %3126 = vperm.xlu0 %3125, %v346
        %v3127 = vpop.permute.xlu0 %3126
        %3128 = vset.pattern.permute.xlu0 9
        %3129 = vperm.xlu0 %3128, %v347
        %v3130 = vpop.permute.xlu0 %3129
        %3131 = vset.pattern.permute.xlu0 9
        %3132 = vperm.xlu0 %3131, %v348
        %v3133 = vpop.permute.xlu0 %3132
        %3134 = vset.pattern.permute.xlu0 9
        %3135 = vperm.xlu0 %3134, %v349
        %v3136 = vpop.permute.xlu0 %3135
        %3137 = vset.pattern.permute.xlu0 9
        %3138 = vperm.xlu0 %3137, %v350
        %v3139 = vpop.permute.xlu0 %3138
        %3140 = vset.pattern.permute.xlu0 9
        %3141 = vperm.xlu0 %3140, %v351
        %v3142 = vpop.permute.xlu0 %3141
        %3143 = vset.pattern.permute.xlu0 9
        %3144 = vperm.xlu0 %3143, %v352
        %v3145 = vpop.permute.xlu0 %3144
        %3146 = vset.pattern.permute.xlu0 9
        %3147 = vperm.xlu0 %3146, %v353
        %v3148 = vpop.permute.xlu0 %3147
        %vm3149 = vcmp.eq.s32.totalorder %v3103, %v361
        %vm3150 = vcmp.eq.s32.totalorder %v3103, %v362
        %vm3151 = vcmp.eq.s32.totalorder %v3103, %v363
        %vm3152 = vcmp.eq.s32.totalorder %v3103, %v364
        %vm3153 = vcmp.eq.s32.totalorder %v3106, %v361
        %vm3154 = vcmp.eq.s32.totalorder %v3106, %v362
        %vm3155 = vcmp.eq.s32.totalorder %v3106, %v363
        %vm3156 = vcmp.eq.s32.totalorder %v3106, %v364
        %vm3157 = vcmp.eq.s32.totalorder %v3109, %v361
        %vm3158 = vcmp.eq.s32.totalorder %v3109, %v362
        %vm3159 = vcmp.eq.s32.totalorder %v3109, %v363
        %vm3160 = vcmp.eq.s32.totalorder %v3109, %v364
        %vm3161 = vcmp.eq.s32.totalorder %v3112, %v361
        %vm3162 = vcmp.eq.s32.totalorder %v3112, %v362
        %vm3163 = vcmp.eq.s32.totalorder %v3112, %v363
        %vm3164 = vcmp.eq.s32.totalorder %v3112, %v364
        %vm3165 = vcmp.eq.s32.totalorder %v3115, %v361
        %vm3166 = vcmp.eq.s32.totalorder %v3115, %v362
        %vm3167 = vcmp.eq.s32.totalorder %v3115, %v363
        %vm3168 = vcmp.eq.s32.totalorder %v3115, %v364
        %vm3169 = vcmp.eq.s32.totalorder %v3118, %v361
        %vm3170 = vcmp.eq.s32.totalorder %v3118, %v362
        %vm3171 = vcmp.eq.s32.totalorder %v3118, %v363
        %vm3172 = vcmp.eq.s32.totalorder %v3118, %v364
        %vm3173 = vcmp.eq.s32.totalorder %v3121, %v361
        %vm3174 = vcmp.eq.s32.totalorder %v3121, %v362
        %vm3175 = vcmp.eq.s32.totalorder %v3121, %v363
        %vm3176 = vcmp.eq.s32.totalorder %v3121, %v364
        %vm3177 = vcmp.eq.s32.totalorder %v3124, %v361
        %vm3178 = vcmp.eq.s32.totalorder %v3124, %v362
        %vm3179 = vcmp.eq.s32.totalorder %v3124, %v363
        %vm3180 = vcmp.eq.s32.totalorder %v3124, %v364
        %vm3181 = vcmp.eq.s32.totalorder %v3127, %v361
        %vm3182 = vcmp.eq.s32.totalorder %v3127, %v362
        %vm3183 = vcmp.eq.s32.totalorder %v3127, %v363
        %vm3184 = vcmp.eq.s32.totalorder %v3127, %v364
        %vm3185 = vcmp.eq.s32.totalorder %v3130, %v361
        %vm3186 = vcmp.eq.s32.totalorder %v3130, %v362
        %vm3187 = vcmp.eq.s32.totalorder %v3130, %v363
        %vm3188 = vcmp.eq.s32.totalorder %v3130, %v364
        %vm3189 = vcmp.eq.s32.totalorder %v3133, %v361
        %vm3190 = vcmp.eq.s32.totalorder %v3133, %v362
        %vm3191 = vcmp.eq.s32.totalorder %v3133, %v363
        %vm3192 = vcmp.eq.s32.totalorder %v3133, %v364
        %vm3193 = vcmp.eq.s32.totalorder %v3136, %v361
        %vm3194 = vcmp.eq.s32.totalorder %v3136, %v362
        %vm3195 = vcmp.eq.s32.totalorder %v3136, %v363
        %vm3196 = vcmp.eq.s32.totalorder %v3136, %v364
        %vm3197 = vcmp.eq.s32.totalorder %v3139, %v361
        %vm3198 = vcmp.eq.s32.totalorder %v3139, %v362
        %vm3199 = vcmp.eq.s32.totalorder %v3139, %v363
        %vm3200 = vcmp.eq.s32.totalorder %v3139, %v364
        %vm3201 = vcmp.eq.s32.totalorder %v3142, %v361
        %vm3202 = vcmp.eq.s32.totalorder %v3142, %v362
        %vm3203 = vcmp.eq.s32.totalorder %v3142, %v363
        %vm3204 = vcmp.eq.s32.totalorder %v3142, %v364
        %vm3205 = vcmp.eq.s32.totalorder %v3145, %v361
        %vm3206 = vcmp.eq.s32.totalorder %v3145, %v362
        %vm3207 = vcmp.eq.s32.totalorder %v3145, %v363
        %vm3208 = vcmp.eq.s32.totalorder %v3145, %v364
        %vm3209 = vcmp.eq.s32.totalorder %v3148, %v361
        %vm3210 = vcmp.eq.s32.totalorder %v3148, %v362
        %vm3211 = vcmp.eq.s32.totalorder %v3148, %v363
        %vm3212 = vcmp.eq.s32.totalorder %v3148, %v364
        %v3213 = vsel %vm3149, 1, 0
        %v3214 = vsel %vm3150, 1, 0
        %v3215 = vsel %vm3151, 1, 0
        %v3216 = vsel %vm3152, 1, 0
        %v3217 = vsel %vm3153, 1, 0
        %v3218 = vsel %vm3154, 1, 0
        %v3219 = vsel %vm3155, 1, 0
        %v3220 = vsel %vm3156, 1, 0
        %v3221 = vsel %vm3157, 1, 0
        %v3222 = vsel %vm3158, 1, 0
        %v3223 = vsel %vm3159, 1, 0
        %v3224 = vsel %vm3160, 1, 0
        %v3225 = vsel %vm3161, 1, 0
        %v3226 = vsel %vm3162, 1, 0
        %v3227 = vsel %vm3163, 1, 0
        %v3228 = vsel %vm3164, 1, 0
        %v3229 = vsel %vm3165, 1, 0
        %v3230 = vsel %vm3166, 1, 0
        %v3231 = vsel %vm3167, 1, 0
        %v3232 = vsel %vm3168, 1, 0
        %v3233 = vsel %vm3169, 1, 0
        %v3234 = vsel %vm3170, 1, 0
        %v3235 = vsel %vm3171, 1, 0
        %v3236 = vsel %vm3172, 1, 0
        %v3237 = vsel %vm3173, 1, 0
        %v3238 = vsel %vm3174, 1, 0
        %v3239 = vsel %vm3175, 1, 0
        %v3240 = vsel %vm3176, 1, 0
        %v3241 = vsel %vm3177, 1, 0
        %v3242 = vsel %vm3178, 1, 0
        %v3243 = vsel %vm3179, 1, 0
        %v3244 = vsel %vm3180, 1, 0
        %v3245 = vsel %vm3181, 1, 0
        %v3246 = vsel %vm3182, 1, 0
        %v3247 = vsel %vm3183, 1, 0
        %v3248 = vsel %vm3184, 1, 0
        %v3249 = vsel %vm3185, 1, 0
        %v3250 = vsel %vm3186, 1, 0
        %v3251 = vsel %vm3187, 1, 0
        %v3252 = vsel %vm3188, 1, 0
        %v3253 = vsel %vm3189, 1, 0
        %v3254 = vsel %vm3190, 1, 0
        %v3255 = vsel %vm3191, 1, 0
        %v3256 = vsel %vm3192, 1, 0
        %v3257 = vsel %vm3193, 1, 0
        %v3258 = vsel %vm3194, 1, 0
        %v3259 = vsel %vm3195, 1, 0
        %v3260 = vsel %vm3196, 1, 0
        %v3261 = vsel %vm3197, 1, 0
        %v3262 = vsel %vm3198, 1, 0
        %v3263 = vsel %vm3199, 1, 0
        %v3264 = vsel %vm3200, 1, 0
        %v3265 = vsel %vm3201, 1, 0
        %v3266 = vsel %vm3202, 1, 0
        %v3267 = vsel %vm3203, 1, 0
        %v3268 = vsel %vm3204, 1, 0
        %v3269 = vsel %vm3205, 1, 0
        %v3270 = vsel %vm3206, 1, 0
        %v3271 = vsel %vm3207, 1, 0
        %v3272 = vsel %vm3208, 1, 0
        %v3273 = vsel %vm3209, 1, 0
        %v3274 = vsel %vm3210, 1, 0
        %v3275 = vsel %vm3211, 1, 0
        %v3276 = vsel %vm3212, 1, 0
        %v3277 = vcvt.s32.f32 %v3213
        %v3278 = vcvt.s32.f32 %v3214
        %v3279 = vcvt.s32.f32 %v3215
        %v3280 = vcvt.s32.f32 %v3216
        %v3281 = vcvt.s32.f32 %v3217
        %v3282 = vcvt.s32.f32 %v3218
        %v3283 = vcvt.s32.f32 %v3219
        %v3284 = vcvt.s32.f32 %v3220
        %v3285 = vcvt.s32.f32 %v3221
        %v3286 = vcvt.s32.f32 %v3222
        %v3287 = vcvt.s32.f32 %v3223
        %v3288 = vcvt.s32.f32 %v3224
        %v3289 = vcvt.s32.f32 %v3225
        %v3290 = vcvt.s32.f32 %v3226
        %v3291 = vcvt.s32.f32 %v3227
        %v3292 = vcvt.s32.f32 %v3228
        %v3293 = vcvt.s32.f32 %v3229
        %v3294 = vcvt.s32.f32 %v3230
        %v3295 = vcvt.s32.f32 %v3231
        %v3296 = vcvt.s32.f32 %v3232
        %v3297 = vcvt.s32.f32 %v3233
        %v3298 = vcvt.s32.f32 %v3234
        %v3299 = vcvt.s32.f32 %v3235
        %v3300 = vcvt.s32.f32 %v3236
        %v3301 = vcvt.s32.f32 %v3237
        %v3302 = vcvt.s32.f32 %v3238
        %v3303 = vcvt.s32.f32 %v3239
        %v3304 = vcvt.s32.f32 %v3240
        %v3305 = vcvt.s32.f32 %v3241
        %v3306 = vcvt.s32.f32 %v3242
        %v3307 = vcvt.s32.f32 %v3243
        %v3308 = vcvt.s32.f32 %v3244
        %v3309 = vcvt.s32.f32 %v3245
        %v3310 = vcvt.s32.f32 %v3246
        %v3311 = vcvt.s32.f32 %v3247
        %v3312 = vcvt.s32.f32 %v3248
        %v3313 = vcvt.s32.f32 %v3249
        %v3314 = vcvt.s32.f32 %v3250
        %v3315 = vcvt.s32.f32 %v3251
        %v3316 = vcvt.s32.f32 %v3252
        %v3317 = vcvt.s32.f32 %v3253
        %v3318 = vcvt.s32.f32 %v3254
        %v3319 = vcvt.s32.f32 %v3255
        %v3320 = vcvt.s32.f32 %v3256
        %v3321 = vcvt.s32.f32 %v3257
        %v3322 = vcvt.s32.f32 %v3258
        %v3323 = vcvt.s32.f32 %v3259
        %v3324 = vcvt.s32.f32 %v3260
        %v3325 = vcvt.s32.f32 %v3261
        %v3326 = vcvt.s32.f32 %v3262
        %v3327 = vcvt.s32.f32 %v3263
        %v3328 = vcvt.s32.f32 %v3264
        %v3329 = vcvt.s32.f32 %v3265
        %v3330 = vcvt.s32.f32 %v3266
        %v3331 = vcvt.s32.f32 %v3267
        %v3332 = vcvt.s32.f32 %v3268
        %v3333 = vcvt.s32.f32 %v3269
        %v3334 = vcvt.s32.f32 %v3270
        %v3335 = vcvt.s32.f32 %v3271
        %v3336 = vcvt.s32.f32 %v3272
        %v3337 = vcvt.s32.f32 %v3273
        %v3338 = vcvt.s32.f32 %v3274
        %v3339 = vcvt.s32.f32 %v3275
        %v3340 = vcvt.s32.f32 %v3276
        %v3341 = vadd.f32 %v3037, %v3277
        %v3342 = vadd.f32 %v3038, %v3278
        %v3343 = vadd.f32 %v3039, %v3279
        %v3344 = vadd.f32 %v3040, %v3280
        %v3345 = vadd.f32 %v3041, %v3281
        %v3346 = vadd.f32 %v3042, %v3282
        %v3347 = vadd.f32 %v3043, %v3283
        %v3348 = vadd.f32 %v3044, %v3284
        %v3349 = vadd.f32 %v3045, %v3285
        %v3350 = vadd.f32 %v3046, %v3286
        %v3351 = vadd.f32 %v3047, %v3287
        %v3352 = vadd.f32 %v3048, %v3288
        %v3353 = vadd.f32 %v3049, %v3289
        %v3354 = vadd.f32 %v3050, %v3290
        %v3355 = vadd.f32 %v3051, %v3291
        %v3356 = vadd.f32 %v3052, %v3292
        %v3357 = vadd.f32 %v3053, %v3293
        %v3358 = vadd.f32 %v3054, %v3294
        %v3359 = vadd.f32 %v3055, %v3295
        %v3360 = vadd.f32 %v3056, %v3296
        %v3361 = vadd.f32 %v3057, %v3297
        %v3362 = vadd.f32 %v3058, %v3298
        %v3363 = vadd.f32 %v3059, %v3299
        %v3364 = vadd.f32 %v3060, %v3300
        %v3365 = vadd.f32 %v3061, %v3301
        %v3366 = vadd.f32 %v3062, %v3302
        %v3367 = vadd.f32 %v3063, %v3303
        %v3368 = vadd.f32 %v3064, %v3304
        %v3369 = vadd.f32 %v3065, %v3305
        %v3370 = vadd.f32 %v3066, %v3306
        %v3371 = vadd.f32 %v3067, %v3307
        %v3372 = vadd.f32 %v3068, %v3308
        %v3373 = vadd.f32 %v3069, %v3309
        %v3374 = vadd.f32 %v3070, %v3310
        %v3375 = vadd.f32 %v3071, %v3311
        %v3376 = vadd.f32 %v3072, %v3312
        %v3377 = vadd.f32 %v3073, %v3313
        %v3378 = vadd.f32 %v3074, %v3314
        %v3379 = vadd.f32 %v3075, %v3315
        %v3380 = vadd.f32 %v3076, %v3316
        %v3381 = vadd.f32 %v3077, %v3317
        %v3382 = vadd.f32 %v3078, %v3318
        %v3383 = vadd.f32 %v3079, %v3319
        %v3384 = vadd.f32 %v3080, %v3320
        %v3385 = vadd.f32 %v3081, %v3321
        %v3386 = vadd.f32 %v3082, %v3322
        %v3387 = vadd.f32 %v3083, %v3323
        %v3388 = vadd.f32 %v3084, %v3324
        %v3389 = vadd.f32 %v3085, %v3325
        %v3390 = vadd.f32 %v3086, %v3326
        %v3391 = vadd.f32 %v3087, %v3327
        %v3392 = vadd.f32 %v3088, %v3328
        %v3393 = vadd.f32 %v3089, %v3329
        %v3394 = vadd.f32 %v3090, %v3330
        %v3395 = vadd.f32 %v3091, %v3331
        %v3396 = vadd.f32 %v3092, %v3332
        %v3397 = vadd.f32 %v3093, %v3333
        %v3398 = vadd.f32 %v3094, %v3334
        %v3399 = vadd.f32 %v3095, %v3335
        %v3400 = vadd.f32 %v3096, %v3336
        %v3401 = vadd.f32 %v3097, %v3337
        %v3402 = vadd.f32 %v3098, %v3338
        %v3403 = vadd.f32 %v3099, %v3339
        %v3404 = vadd.f32 %v3100, %v3340
        %3405 = vset.pattern.permute.xlu0 10
        %3406 = vperm.xlu0 %3405, %v338
        %v3407 = vpop.permute.xlu0 %3406
        %3408 = vset.pattern.permute.xlu0 10
        %3409 = vperm.xlu0 %3408, %v339
        %v3410 = vpop.permute.xlu0 %3409
        %3411 = vset.pattern.permute.xlu0 10
        %3412 = vperm.xlu0 %3411, %v340
        %v3413 = vpop.permute.xlu0 %3412
        %3414 = vset.pattern.permute.xlu0 10
        %3415 = vperm.xlu0 %3414, %v341
        %v3416 = vpop.permute.xlu0 %3415
        %3417 = vset.pattern.permute.xlu0 10
        %3418 = vperm.xlu0 %3417, %v342
        %v3419 = vpop.permute.xlu0 %3418
        %3420 = vset.pattern.permute.xlu0 10
        %3421 = vperm.xlu0 %3420, %v343
        %v3422 = vpop.permute.xlu0 %3421
        %3423 = vset.pattern.permute.xlu0 10
        %3424 = vperm.xlu0 %3423, %v344
        %v3425 = vpop.permute.xlu0 %3424
        %3426 = vset.pattern.permute.xlu0 10
        %3427 = vperm.xlu0 %3426, %v345
        %v3428 = vpop.permute.xlu0 %3427
        %3429 = vset.pattern.permute.xlu0 10
        %3430 = vperm.xlu0 %3429, %v346
        %v3431 = vpop.permute.xlu0 %3430
        %3432 = vset.pattern.permute.xlu0 10
        %3433 = vperm.xlu0 %3432, %v347
        %v3434 = vpop.permute.xlu0 %3433
        %3435 = vset.pattern.permute.xlu0 10
        %3436 = vperm.xlu0 %3435, %v348
        %v3437 = vpop.permute.xlu0 %3436
        %3438 = vset.pattern.permute.xlu0 10
        %3439 = vperm.xlu0 %3438, %v349
        %v3440 = vpop.permute.xlu0 %3439
        %3441 = vset.pattern.permute.xlu0 10
        %3442 = vperm.xlu0 %3441, %v350
        %v3443 = vpop.permute.xlu0 %3442
        %3444 = vset.pattern.permute.xlu0 10
        %3445 = vperm.xlu0 %3444, %v351
        %v3446 = vpop.permute.xlu0 %3445
        %3447 = vset.pattern.permute.xlu0 10
        %3448 = vperm.xlu0 %3447, %v352
        %v3449 = vpop.permute.xlu0 %3448
        %3450 = vset.pattern.permute.xlu0 10
        %3451 = vperm.xlu0 %3450, %v353
        %v3452 = vpop.permute.xlu0 %3451
        %vm3453 = vcmp.eq.s32.totalorder %v3407, %v361
        %vm3454 = vcmp.eq.s32.totalorder %v3407, %v362
        %vm3455 = vcmp.eq.s32.totalorder %v3407, %v363
        %vm3456 = vcmp.eq.s32.totalorder %v3407, %v364
        %vm3457 = vcmp.eq.s32.totalorder %v3410, %v361
        %vm3458 = vcmp.eq.s32.totalorder %v3410, %v362
        %vm3459 = vcmp.eq.s32.totalorder %v3410, %v363
        %vm3460 = vcmp.eq.s32.totalorder %v3410, %v364
        %vm3461 = vcmp.eq.s32.totalorder %v3413, %v361
        %vm3462 = vcmp.eq.s32.totalorder %v3413, %v362
        %vm3463 = vcmp.eq.s32.totalorder %v3413, %v363
        %vm3464 = vcmp.eq.s32.totalorder %v3413, %v364
        %vm3465 = vcmp.eq.s32.totalorder %v3416, %v361
        %vm3466 = vcmp.eq.s32.totalorder %v3416, %v362
        %vm3467 = vcmp.eq.s32.totalorder %v3416, %v363
        %vm3468 = vcmp.eq.s32.totalorder %v3416, %v364
        %vm3469 = vcmp.eq.s32.totalorder %v3419, %v361
        %vm3470 = vcmp.eq.s32.totalorder %v3419, %v362
        %vm3471 = vcmp.eq.s32.totalorder %v3419, %v363
        %vm3472 = vcmp.eq.s32.totalorder %v3419, %v364
        %vm3473 = vcmp.eq.s32.totalorder %v3422, %v361
        %vm3474 = vcmp.eq.s32.totalorder %v3422, %v362
        %vm3475 = vcmp.eq.s32.totalorder %v3422, %v363
        %vm3476 = vcmp.eq.s32.totalorder %v3422, %v364
        %vm3477 = vcmp.eq.s32.totalorder %v3425, %v361
        %vm3478 = vcmp.eq.s32.totalorder %v3425, %v362
        %vm3479 = vcmp.eq.s32.totalorder %v3425, %v363
        %vm3480 = vcmp.eq.s32.totalorder %v3425, %v364
        %vm3481 = vcmp.eq.s32.totalorder %v3428, %v361
        %vm3482 = vcmp.eq.s32.totalorder %v3428, %v362
        %vm3483 = vcmp.eq.s32.totalorder %v3428, %v363
        %vm3484 = vcmp.eq.s32.totalorder %v3428, %v364
        %vm3485 = vcmp.eq.s32.totalorder %v3431, %v361
        %vm3486 = vcmp.eq.s32.totalorder %v3431, %v362
        %vm3487 = vcmp.eq.s32.totalorder %v3431, %v363
        %vm3488 = vcmp.eq.s32.totalorder %v3431, %v364
        %vm3489 = vcmp.eq.s32.totalorder %v3434, %v361
        %vm3490 = vcmp.eq.s32.totalorder %v3434, %v362
        %vm3491 = vcmp.eq.s32.totalorder %v3434, %v363
        %vm3492 = vcmp.eq.s32.totalorder %v3434, %v364
        %vm3493 = vcmp.eq.s32.totalorder %v3437, %v361
        %vm3494 = vcmp.eq.s32.totalorder %v3437, %v362
        %vm3495 = vcmp.eq.s32.totalorder %v3437, %v363
        %vm3496 = vcmp.eq.s32.totalorder %v3437, %v364
        %vm3497 = vcmp.eq.s32.totalorder %v3440, %v361
        %vm3498 = vcmp.eq.s32.totalorder %v3440, %v362
        %vm3499 = vcmp.eq.s32.totalorder %v3440, %v363
        %vm3500 = vcmp.eq.s32.totalorder %v3440, %v364
        %vm3501 = vcmp.eq.s32.totalorder %v3443, %v361
        %vm3502 = vcmp.eq.s32.totalorder %v3443, %v362
        %vm3503 = vcmp.eq.s32.totalorder %v3443, %v363
        %vm3504 = vcmp.eq.s32.totalorder %v3443, %v364
        %vm3505 = vcmp.eq.s32.totalorder %v3446, %v361
        %vm3506 = vcmp.eq.s32.totalorder %v3446, %v362
        %vm3507 = vcmp.eq.s32.totalorder %v3446, %v363
        %vm3508 = vcmp.eq.s32.totalorder %v3446, %v364
        %vm3509 = vcmp.eq.s32.totalorder %v3449, %v361
        %vm3510 = vcmp.eq.s32.totalorder %v3449, %v362
        %vm3511 = vcmp.eq.s32.totalorder %v3449, %v363
        %vm3512 = vcmp.eq.s32.totalorder %v3449, %v364
        %vm3513 = vcmp.eq.s32.totalorder %v3452, %v361
        %vm3514 = vcmp.eq.s32.totalorder %v3452, %v362
        %vm3515 = vcmp.eq.s32.totalorder %v3452, %v363
        %vm3516 = vcmp.eq.s32.totalorder %v3452, %v364
        %v3517 = vsel %vm3453, 1, 0
        %v3518 = vsel %vm3454, 1, 0
        %v3519 = vsel %vm3455, 1, 0
        %v3520 = vsel %vm3456, 1, 0
        %v3521 = vsel %vm3457, 1, 0
        %v3522 = vsel %vm3458, 1, 0
        %v3523 = vsel %vm3459, 1, 0
        %v3524 = vsel %vm3460, 1, 0
        %v3525 = vsel %vm3461, 1, 0
        %v3526 = vsel %vm3462, 1, 0
        %v3527 = vsel %vm3463, 1, 0
        %v3528 = vsel %vm3464, 1, 0
        %v3529 = vsel %vm3465, 1, 0
        %v3530 = vsel %vm3466, 1, 0
        %v3531 = vsel %vm3467, 1, 0
        %v3532 = vsel %vm3468, 1, 0
        %v3533 = vsel %vm3469, 1, 0
        %v3534 = vsel %vm3470, 1, 0
        %v3535 = vsel %vm3471, 1, 0
        %v3536 = vsel %vm3472, 1, 0
        %v3537 = vsel %vm3473, 1, 0
        %v3538 = vsel %vm3474, 1, 0
        %v3539 = vsel %vm3475, 1, 0
        %v3540 = vsel %vm3476, 1, 0
        %v3541 = vsel %vm3477, 1, 0
        %v3542 = vsel %vm3478, 1, 0
        %v3543 = vsel %vm3479, 1, 0
        %v3544 = vsel %vm3480, 1, 0
        %v3545 = vsel %vm3481, 1, 0
        %v3546 = vsel %vm3482, 1, 0
        %v3547 = vsel %vm3483, 1, 0
        %v3548 = vsel %vm3484, 1, 0
        %v3549 = vsel %vm3485, 1, 0
        %v3550 = vsel %vm3486, 1, 0
        %v3551 = vsel %vm3487, 1, 0
        %v3552 = vsel %vm3488, 1, 0
        %v3553 = vsel %vm3489, 1, 0
        %v3554 = vsel %vm3490, 1, 0
        %v3555 = vsel %vm3491, 1, 0
        %v3556 = vsel %vm3492, 1, 0
        %v3557 = vsel %vm3493, 1, 0
        %v3558 = vsel %vm3494, 1, 0
        %v3559 = vsel %vm3495, 1, 0
        %v3560 = vsel %vm3496, 1, 0
        %v3561 = vsel %vm3497, 1, 0
        %v3562 = vsel %vm3498, 1, 0
        %v3563 = vsel %vm3499, 1, 0
        %v3564 = vsel %vm3500, 1, 0
        %v3565 = vsel %vm3501, 1, 0
        %v3566 = vsel %vm3502, 1, 0
        %v3567 = vsel %vm3503, 1, 0
        %v3568 = vsel %vm3504, 1, 0
        %v3569 = vsel %vm3505, 1, 0
        %v3570 = vsel %vm3506, 1, 0
        %v3571 = vsel %vm3507, 1, 0
        %v3572 = vsel %vm3508, 1, 0
        %v3573 = vsel %vm3509, 1, 0
        %v3574 = vsel %vm3510, 1, 0
        %v3575 = vsel %vm3511, 1, 0
        %v3576 = vsel %vm3512, 1, 0
        %v3577 = vsel %vm3513, 1, 0
        %v3578 = vsel %vm3514, 1, 0
        %v3579 = vsel %vm3515, 1, 0
        %v3580 = vsel %vm3516, 1, 0
        %v3581 = vcvt.s32.f32 %v3517
        %v3582 = vcvt.s32.f32 %v3518
        %v3583 = vcvt.s32.f32 %v3519
        %v3584 = vcvt.s32.f32 %v3520
        %v3585 = vcvt.s32.f32 %v3521
        %v3586 = vcvt.s32.f32 %v3522
        %v3587 = vcvt.s32.f32 %v3523
        %v3588 = vcvt.s32.f32 %v3524
        %v3589 = vcvt.s32.f32 %v3525
        %v3590 = vcvt.s32.f32 %v3526
        %v3591 = vcvt.s32.f32 %v3527
        %v3592 = vcvt.s32.f32 %v3528
        %v3593 = vcvt.s32.f32 %v3529
        %v3594 = vcvt.s32.f32 %v3530
        %v3595 = vcvt.s32.f32 %v3531
        %v3596 = vcvt.s32.f32 %v3532
        %v3597 = vcvt.s32.f32 %v3533
        %v3598 = vcvt.s32.f32 %v3534
        %v3599 = vcvt.s32.f32 %v3535
        %v3600 = vcvt.s32.f32 %v3536
        %v3601 = vcvt.s32.f32 %v3537
        %v3602 = vcvt.s32.f32 %v3538
        %v3603 = vcvt.s32.f32 %v3539
        %v3604 = vcvt.s32.f32 %v3540
        %v3605 = vcvt.s32.f32 %v3541
        %v3606 = vcvt.s32.f32 %v3542
        %v3607 = vcvt.s32.f32 %v3543
        %v3608 = vcvt.s32.f32 %v3544
        %v3609 = vcvt.s32.f32 %v3545
        %v3610 = vcvt.s32.f32 %v3546
        %v3611 = vcvt.s32.f32 %v3547
        %v3612 = vcvt.s32.f32 %v3548
        %v3613 = vcvt.s32.f32 %v3549
        %v3614 = vcvt.s32.f32 %v3550
        %v3615 = vcvt.s32.f32 %v3551
        %v3616 = vcvt.s32.f32 %v3552
        %v3617 = vcvt.s32.f32 %v3553
        %v3618 = vcvt.s32.f32 %v3554
        %v3619 = vcvt.s32.f32 %v3555
        %v3620 = vcvt.s32.f32 %v3556
        %v3621 = vcvt.s32.f32 %v3557
        %v3622 = vcvt.s32.f32 %v3558
        %v3623 = vcvt.s32.f32 %v3559
        %v3624 = vcvt.s32.f32 %v3560
        %v3625 = vcvt.s32.f32 %v3561
        %v3626 = vcvt.s32.f32 %v3562
        %v3627 = vcvt.s32.f32 %v3563
        %v3628 = vcvt.s32.f32 %v3564
        %v3629 = vcvt.s32.f32 %v3565
        %v3630 = vcvt.s32.f32 %v3566
        %v3631 = vcvt.s32.f32 %v3567
        %v3632 = vcvt.s32.f32 %v3568
        %v3633 = vcvt.s32.f32 %v3569
        %v3634 = vcvt.s32.f32 %v3570
        %v3635 = vcvt.s32.f32 %v3571
        %v3636 = vcvt.s32.f32 %v3572
        %v3637 = vcvt.s32.f32 %v3573
        %v3638 = vcvt.s32.f32 %v3574
        %v3639 = vcvt.s32.f32 %v3575
        %v3640 = vcvt.s32.f32 %v3576
        %v3641 = vcvt.s32.f32 %v3577
        %v3642 = vcvt.s32.f32 %v3578
        %v3643 = vcvt.s32.f32 %v3579
        %v3644 = vcvt.s32.f32 %v3580
        %v3645 = vadd.f32 %v3341, %v3581
        %v3646 = vadd.f32 %v3342, %v3582
        %v3647 = vadd.f32 %v3343, %v3583
        %v3648 = vadd.f32 %v3344, %v3584
        %v3649 = vadd.f32 %v3345, %v3585
        %v3650 = vadd.f32 %v3346, %v3586
        %v3651 = vadd.f32 %v3347, %v3587
        %v3652 = vadd.f32 %v3348, %v3588
        %v3653 = vadd.f32 %v3349, %v3589
        %v3654 = vadd.f32 %v3350, %v3590
        %v3655 = vadd.f32 %v3351, %v3591
        %v3656 = vadd.f32 %v3352, %v3592
        %v3657 = vadd.f32 %v3353, %v3593
        %v3658 = vadd.f32 %v3354, %v3594
        %v3659 = vadd.f32 %v3355, %v3595
        %v3660 = vadd.f32 %v3356, %v3596
        %v3661 = vadd.f32 %v3357, %v3597
        %v3662 = vadd.f32 %v3358, %v3598
        %v3663 = vadd.f32 %v3359, %v3599
        %v3664 = vadd.f32 %v3360, %v3600
        %v3665 = vadd.f32 %v3361, %v3601
        %v3666 = vadd.f32 %v3362, %v3602
        %v3667 = vadd.f32 %v3363, %v3603
        %v3668 = vadd.f32 %v3364, %v3604
        %v3669 = vadd.f32 %v3365, %v3605
        %v3670 = vadd.f32 %v3366, %v3606
        %v3671 = vadd.f32 %v3367, %v3607
        %v3672 = vadd.f32 %v3368, %v3608
        %v3673 = vadd.f32 %v3369, %v3609
        %v3674 = vadd.f32 %v3370, %v3610
        %v3675 = vadd.f32 %v3371, %v3611
        %v3676 = vadd.f32 %v3372, %v3612
        %v3677 = vadd.f32 %v3373, %v3613
        %v3678 = vadd.f32 %v3374, %v3614
        %v3679 = vadd.f32 %v3375, %v3615
        %v3680 = vadd.f32 %v3376, %v3616
        %v3681 = vadd.f32 %v3377, %v3617
        %v3682 = vadd.f32 %v3378, %v3618
        %v3683 = vadd.f32 %v3379, %v3619
        %v3684 = vadd.f32 %v3380, %v3620
        %v3685 = vadd.f32 %v3381, %v3621
        %v3686 = vadd.f32 %v3382, %v3622
        %v3687 = vadd.f32 %v3383, %v3623
        %v3688 = vadd.f32 %v3384, %v3624
        %v3689 = vadd.f32 %v3385, %v3625
        %v3690 = vadd.f32 %v3386, %v3626
        %v3691 = vadd.f32 %v3387, %v3627
        %v3692 = vadd.f32 %v3388, %v3628
        %v3693 = vadd.f32 %v3389, %v3629
        %v3694 = vadd.f32 %v3390, %v3630
        %v3695 = vadd.f32 %v3391, %v3631
        %v3696 = vadd.f32 %v3392, %v3632
        %v3697 = vadd.f32 %v3393, %v3633
        %v3698 = vadd.f32 %v3394, %v3634
        %v3699 = vadd.f32 %v3395, %v3635
        %v3700 = vadd.f32 %v3396, %v3636
        %v3701 = vadd.f32 %v3397, %v3637
        %v3702 = vadd.f32 %v3398, %v3638
        %v3703 = vadd.f32 %v3399, %v3639
        %v3704 = vadd.f32 %v3400, %v3640
        %v3705 = vadd.f32 %v3401, %v3641
        %v3706 = vadd.f32 %v3402, %v3642
        %v3707 = vadd.f32 %v3403, %v3643
        %v3708 = vadd.f32 %v3404, %v3644
        %3709 = vset.pattern.permute.xlu0 11
        %3710 = vperm.xlu0 %3709, %v338
        %v3711 = vpop.permute.xlu0 %3710
        %3712 = vset.pattern.permute.xlu0 11
        %3713 = vperm.xlu0 %3712, %v339
        %v3714 = vpop.permute.xlu0 %3713
        %3715 = vset.pattern.permute.xlu0 11
        %3716 = vperm.xlu0 %3715, %v340
        %v3717 = vpop.permute.xlu0 %3716
        %3718 = vset.pattern.permute.xlu0 11
        %3719 = vperm.xlu0 %3718, %v341
        %v3720 = vpop.permute.xlu0 %3719
        %3721 = vset.pattern.permute.xlu0 11
        %3722 = vperm.xlu0 %3721, %v342
        %v3723 = vpop.permute.xlu0 %3722
        %3724 = vset.pattern.permute.xlu0 11
        %3725 = vperm.xlu0 %3724, %v343
        %v3726 = vpop.permute.xlu0 %3725
        %3727 = vset.pattern.permute.xlu0 11
        %3728 = vperm.xlu0 %3727, %v344
        %v3729 = vpop.permute.xlu0 %3728
        %3730 = vset.pattern.permute.xlu0 11
        %3731 = vperm.xlu0 %3730, %v345
        %v3732 = vpop.permute.xlu0 %3731
        %3733 = vset.pattern.permute.xlu0 11
        %3734 = vperm.xlu0 %3733, %v346
        %v3735 = vpop.permute.xlu0 %3734
        %3736 = vset.pattern.permute.xlu0 11
        %3737 = vperm.xlu0 %3736, %v347
        %v3738 = vpop.permute.xlu0 %3737
        %3739 = vset.pattern.permute.xlu0 11
        %3740 = vperm.xlu0 %3739, %v348
        %v3741 = vpop.permute.xlu0 %3740
        %3742 = vset.pattern.permute.xlu0 11
        %3743 = vperm.xlu0 %3742, %v349
        %v3744 = vpop.permute.xlu0 %3743
        %3745 = vset.pattern.permute.xlu0 11
        %3746 = vperm.xlu0 %3745, %v350
        %v3747 = vpop.permute.xlu0 %3746
        %3748 = vset.pattern.permute.xlu0 11
        %3749 = vperm.xlu0 %3748, %v351
        %v3750 = vpop.permute.xlu0 %3749
        %3751 = vset.pattern.permute.xlu0 11
        %3752 = vperm.xlu0 %3751, %v352
        %v3753 = vpop.permute.xlu0 %3752
        %3754 = vset.pattern.permute.xlu0 11
        %3755 = vperm.xlu0 %3754, %v353
        %v3756 = vpop.permute.xlu0 %3755
        %vm3757 = vcmp.eq.s32.totalorder %v3711, %v361
        %vm3758 = vcmp.eq.s32.totalorder %v3711, %v362
        %vm3759 = vcmp.eq.s32.totalorder %v3711, %v363
        %vm3760 = vcmp.eq.s32.totalorder %v3711, %v364
        %vm3761 = vcmp.eq.s32.totalorder %v3714, %v361
        %vm3762 = vcmp.eq.s32.totalorder %v3714, %v362
        %vm3763 = vcmp.eq.s32.totalorder %v3714, %v363
        %vm3764 = vcmp.eq.s32.totalorder %v3714, %v364
        %vm3765 = vcmp.eq.s32.totalorder %v3717, %v361
        %vm3766 = vcmp.eq.s32.totalorder %v3717, %v362
        %vm3767 = vcmp.eq.s32.totalorder %v3717, %v363
        %vm3768 = vcmp.eq.s32.totalorder %v3717, %v364
        %vm3769 = vcmp.eq.s32.totalorder %v3720, %v361
        %vm3770 = vcmp.eq.s32.totalorder %v3720, %v362
        %vm3771 = vcmp.eq.s32.totalorder %v3720, %v363
        %vm3772 = vcmp.eq.s32.totalorder %v3720, %v364
        %vm3773 = vcmp.eq.s32.totalorder %v3723, %v361
        %vm3774 = vcmp.eq.s32.totalorder %v3723, %v362
        %vm3775 = vcmp.eq.s32.totalorder %v3723, %v363
        %vm3776 = vcmp.eq.s32.totalorder %v3723, %v364
        %vm3777 = vcmp.eq.s32.totalorder %v3726, %v361
        %vm3778 = vcmp.eq.s32.totalorder %v3726, %v362
        %vm3779 = vcmp.eq.s32.totalorder %v3726, %v363
        %vm3780 = vcmp.eq.s32.totalorder %v3726, %v364
        %vm3781 = vcmp.eq.s32.totalorder %v3729, %v361
        %vm3782 = vcmp.eq.s32.totalorder %v3729, %v362
        %vm3783 = vcmp.eq.s32.totalorder %v3729, %v363
        %vm3784 = vcmp.eq.s32.totalorder %v3729, %v364
        %vm3785 = vcmp.eq.s32.totalorder %v3732, %v361
        %vm3786 = vcmp.eq.s32.totalorder %v3732, %v362
        %vm3787 = vcmp.eq.s32.totalorder %v3732, %v363
        %vm3788 = vcmp.eq.s32.totalorder %v3732, %v364
        %vm3789 = vcmp.eq.s32.totalorder %v3735, %v361
        %vm3790 = vcmp.eq.s32.totalorder %v3735, %v362
        %vm3791 = vcmp.eq.s32.totalorder %v3735, %v363
        %vm3792 = vcmp.eq.s32.totalorder %v3735, %v364
        %vm3793 = vcmp.eq.s32.totalorder %v3738, %v361
        %vm3794 = vcmp.eq.s32.totalorder %v3738, %v362
        %vm3795 = vcmp.eq.s32.totalorder %v3738, %v363
        %vm3796 = vcmp.eq.s32.totalorder %v3738, %v364
        %vm3797 = vcmp.eq.s32.totalorder %v3741, %v361
        %vm3798 = vcmp.eq.s32.totalorder %v3741, %v362
        %vm3799 = vcmp.eq.s32.totalorder %v3741, %v363
        %vm3800 = vcmp.eq.s32.totalorder %v3741, %v364
        %vm3801 = vcmp.eq.s32.totalorder %v3744, %v361
        %vm3802 = vcmp.eq.s32.totalorder %v3744, %v362
        %vm3803 = vcmp.eq.s32.totalorder %v3744, %v363
        %vm3804 = vcmp.eq.s32.totalorder %v3744, %v364
        %vm3805 = vcmp.eq.s32.totalorder %v3747, %v361
        %vm3806 = vcmp.eq.s32.totalorder %v3747, %v362
        %vm3807 = vcmp.eq.s32.totalorder %v3747, %v363
        %vm3808 = vcmp.eq.s32.totalorder %v3747, %v364
        %vm3809 = vcmp.eq.s32.totalorder %v3750, %v361
        %vm3810 = vcmp.eq.s32.totalorder %v3750, %v362
        %vm3811 = vcmp.eq.s32.totalorder %v3750, %v363
        %vm3812 = vcmp.eq.s32.totalorder %v3750, %v364
        %vm3813 = vcmp.eq.s32.totalorder %v3753, %v361
        %vm3814 = vcmp.eq.s32.totalorder %v3753, %v362
        %vm3815 = vcmp.eq.s32.totalorder %v3753, %v363
        %vm3816 = vcmp.eq.s32.totalorder %v3753, %v364
        %vm3817 = vcmp.eq.s32.totalorder %v3756, %v361
        %vm3818 = vcmp.eq.s32.totalorder %v3756, %v362
        %vm3819 = vcmp.eq.s32.totalorder %v3756, %v363
        %vm3820 = vcmp.eq.s32.totalorder %v3756, %v364
        %v3821 = vsel %vm3757, 1, 0
        %v3822 = vsel %vm3758, 1, 0
        %v3823 = vsel %vm3759, 1, 0
        %v3824 = vsel %vm3760, 1, 0
        %v3825 = vsel %vm3761, 1, 0
        %v3826 = vsel %vm3762, 1, 0
        %v3827 = vsel %vm3763, 1, 0
        %v3828 = vsel %vm3764, 1, 0
        %v3829 = vsel %vm3765, 1, 0
        %v3830 = vsel %vm3766, 1, 0
        %v3831 = vsel %vm3767, 1, 0
        %v3832 = vsel %vm3768, 1, 0
        %v3833 = vsel %vm3769, 1, 0
        %v3834 = vsel %vm3770, 1, 0
        %v3835 = vsel %vm3771, 1, 0
        %v3836 = vsel %vm3772, 1, 0
        %v3837 = vsel %vm3773, 1, 0
        %v3838 = vsel %vm3774, 1, 0
        %v3839 = vsel %vm3775, 1, 0
        %v3840 = vsel %vm3776, 1, 0
        %v3841 = vsel %vm3777, 1, 0
        %v3842 = vsel %vm3778, 1, 0
        %v3843 = vsel %vm3779, 1, 0
        %v3844 = vsel %vm3780, 1, 0
        %v3845 = vsel %vm3781, 1, 0
        %v3846 = vsel %vm3782, 1, 0
        %v3847 = vsel %vm3783, 1, 0
        %v3848 = vsel %vm3784, 1, 0
        %v3849 = vsel %vm3785, 1, 0
        %v3850 = vsel %vm3786, 1, 0
        %v3851 = vsel %vm3787, 1, 0
        %v3852 = vsel %vm3788, 1, 0
        %v3853 = vsel %vm3789, 1, 0
        %v3854 = vsel %vm3790, 1, 0
        %v3855 = vsel %vm3791, 1, 0
        %v3856 = vsel %vm3792, 1, 0
        %v3857 = vsel %vm3793, 1, 0
        %v3858 = vsel %vm3794, 1, 0
        %v3859 = vsel %vm3795, 1, 0
        %v3860 = vsel %vm3796, 1, 0
        %v3861 = vsel %vm3797, 1, 0
        %v3862 = vsel %vm3798, 1, 0
        %v3863 = vsel %vm3799, 1, 0
        %v3864 = vsel %vm3800, 1, 0
        %v3865 = vsel %vm3801, 1, 0
        %v3866 = vsel %vm3802, 1, 0
        %v3867 = vsel %vm3803, 1, 0
        %v3868 = vsel %vm3804, 1, 0
        %v3869 = vsel %vm3805, 1, 0
        %v3870 = vsel %vm3806, 1, 0
        %v3871 = vsel %vm3807, 1, 0
        %v3872 = vsel %vm3808, 1, 0
        %v3873 = vsel %vm3809, 1, 0
        %v3874 = vsel %vm3810, 1, 0
        %v3875 = vsel %vm3811, 1, 0
        %v3876 = vsel %vm3812, 1, 0
        %v3877 = vsel %vm3813, 1, 0
        %v3878 = vsel %vm3814, 1, 0
        %v3879 = vsel %vm3815, 1, 0
        %v3880 = vsel %vm3816, 1, 0
        %v3881 = vsel %vm3817, 1, 0
        %v3882 = vsel %vm3818, 1, 0
        %v3883 = vsel %vm3819, 1, 0
        %v3884 = vsel %vm3820, 1, 0
        %v3885 = vcvt.s32.f32 %v3821
        %v3886 = vcvt.s32.f32 %v3822
        %v3887 = vcvt.s32.f32 %v3823
        %v3888 = vcvt.s32.f32 %v3824
        %v3889 = vcvt.s32.f32 %v3825
        %v3890 = vcvt.s32.f32 %v3826
        %v3891 = vcvt.s32.f32 %v3827
        %v3892 = vcvt.s32.f32 %v3828
        %v3893 = vcvt.s32.f32 %v3829
        %v3894 = vcvt.s32.f32 %v3830
        %v3895 = vcvt.s32.f32 %v3831
        %v3896 = vcvt.s32.f32 %v3832
        %v3897 = vcvt.s32.f32 %v3833
        %v3898 = vcvt.s32.f32 %v3834
        %v3899 = vcvt.s32.f32 %v3835
        %v3900 = vcvt.s32.f32 %v3836
        %v3901 = vcvt.s32.f32 %v3837
        %v3902 = vcvt.s32.f32 %v3838
        %v3903 = vcvt.s32.f32 %v3839
        %v3904 = vcvt.s32.f32 %v3840
        %v3905 = vcvt.s32.f32 %v3841
        %v3906 = vcvt.s32.f32 %v3842
        %v3907 = vcvt.s32.f32 %v3843
        %v3908 = vcvt.s32.f32 %v3844
        %v3909 = vcvt.s32.f32 %v3845
        %v3910 = vcvt.s32.f32 %v3846
        %v3911 = vcvt.s32.f32 %v3847
        %v3912 = vcvt.s32.f32 %v3848
        %v3913 = vcvt.s32.f32 %v3849
        %v3914 = vcvt.s32.f32 %v3850
        %v3915 = vcvt.s32.f32 %v3851
        %v3916 = vcvt.s32.f32 %v3852
        %v3917 = vcvt.s32.f32 %v3853
        %v3918 = vcvt.s32.f32 %v3854
        %v3919 = vcvt.s32.f32 %v3855
        %v3920 = vcvt.s32.f32 %v3856
        %v3921 = vcvt.s32.f32 %v3857
        %v3922 = vcvt.s32.f32 %v3858
        %v3923 = vcvt.s32.f32 %v3859
        %v3924 = vcvt.s32.f32 %v3860
        %v3925 = vcvt.s32.f32 %v3861
        %v3926 = vcvt.s32.f32 %v3862
        %v3927 = vcvt.s32.f32 %v3863
        %v3928 = vcvt.s32.f32 %v3864
        %v3929 = vcvt.s32.f32 %v3865
        %v3930 = vcvt.s32.f32 %v3866
        %v3931 = vcvt.s32.f32 %v3867
        %v3932 = vcvt.s32.f32 %v3868
        %v3933 = vcvt.s32.f32 %v3869
        %v3934 = vcvt.s32.f32 %v3870
        %v3935 = vcvt.s32.f32 %v3871
        %v3936 = vcvt.s32.f32 %v3872
        %v3937 = vcvt.s32.f32 %v3873
        %v3938 = vcvt.s32.f32 %v3874
        %v3939 = vcvt.s32.f32 %v3875
        %v3940 = vcvt.s32.f32 %v3876
        %v3941 = vcvt.s32.f32 %v3877
        %v3942 = vcvt.s32.f32 %v3878
        %v3943 = vcvt.s32.f32 %v3879
        %v3944 = vcvt.s32.f32 %v3880
        %v3945 = vcvt.s32.f32 %v3881
        %v3946 = vcvt.s32.f32 %v3882
        %v3947 = vcvt.s32.f32 %v3883
        %v3948 = vcvt.s32.f32 %v3884
        %v3949 = vadd.f32 %v3645, %v3885
        %v3950 = vadd.f32 %v3646, %v3886
        %v3951 = vadd.f32 %v3647, %v3887
        %v3952 = vadd.f32 %v3648, %v3888
        %v3953 = vadd.f32 %v3649, %v3889
        %v3954 = vadd.f32 %v3650, %v3890
        %v3955 = vadd.f32 %v3651, %v3891
        %v3956 = vadd.f32 %v3652, %v3892
        %v3957 = vadd.f32 %v3653, %v3893
        %v3958 = vadd.f32 %v3654, %v3894
        %v3959 = vadd.f32 %v3655, %v3895
        %v3960 = vadd.f32 %v3656, %v3896
        %v3961 = vadd.f32 %v3657, %v3897
        %v3962 = vadd.f32 %v3658, %v3898
        %v3963 = vadd.f32 %v3659, %v3899
        %v3964 = vadd.f32 %v3660, %v3900
        %v3965 = vadd.f32 %v3661, %v3901
        %v3966 = vadd.f32 %v3662, %v3902
        %v3967 = vadd.f32 %v3663, %v3903
        %v3968 = vadd.f32 %v3664, %v3904
        %v3969 = vadd.f32 %v3665, %v3905
        %v3970 = vadd.f32 %v3666, %v3906
        %v3971 = vadd.f32 %v3667, %v3907
        %v3972 = vadd.f32 %v3668, %v3908
        %v3973 = vadd.f32 %v3669, %v3909
        %v3974 = vadd.f32 %v3670, %v3910
        %v3975 = vadd.f32 %v3671, %v3911
        %v3976 = vadd.f32 %v3672, %v3912
        %v3977 = vadd.f32 %v3673, %v3913
        %v3978 = vadd.f32 %v3674, %v3914
        %v3979 = vadd.f32 %v3675, %v3915
        %v3980 = vadd.f32 %v3676, %v3916
        %v3981 = vadd.f32 %v3677, %v3917
        %v3982 = vadd.f32 %v3678, %v3918
        %v3983 = vadd.f32 %v3679, %v3919
        %v3984 = vadd.f32 %v3680, %v3920
        %v3985 = vadd.f32 %v3681, %v3921
        %v3986 = vadd.f32 %v3682, %v3922
        %v3987 = vadd.f32 %v3683, %v3923
        %v3988 = vadd.f32 %v3684, %v3924
        %v3989 = vadd.f32 %v3685, %v3925
        %v3990 = vadd.f32 %v3686, %v3926
        %v3991 = vadd.f32 %v3687, %v3927
        %v3992 = vadd.f32 %v3688, %v3928
        %v3993 = vadd.f32 %v3689, %v3929
        %v3994 = vadd.f32 %v3690, %v3930
        %v3995 = vadd.f32 %v3691, %v3931
        %v3996 = vadd.f32 %v3692, %v3932
        %v3997 = vadd.f32 %v3693, %v3933
        %v3998 = vadd.f32 %v3694, %v3934
        %v3999 = vadd.f32 %v3695, %v3935
        %v4000 = vadd.f32 %v3696, %v3936
        %v4001 = vadd.f32 %v3697, %v3937
        %v4002 = vadd.f32 %v3698, %v3938
        %v4003 = vadd.f32 %v3699, %v3939
        %v4004 = vadd.f32 %v3700, %v3940
        %v4005 = vadd.f32 %v3701, %v3941
        %v4006 = vadd.f32 %v3702, %v3942
        %v4007 = vadd.f32 %v3703, %v3943
        %v4008 = vadd.f32 %v3704, %v3944
        %v4009 = vadd.f32 %v3705, %v3945
        %v4010 = vadd.f32 %v3706, %v3946
        %v4011 = vadd.f32 %v3707, %v3947
        %v4012 = vadd.f32 %v3708, %v3948
        %4013 = vset.pattern.permute.xlu0 12
        %4014 = vperm.xlu0 %4013, %v338
        %v4015 = vpop.permute.xlu0 %4014
        %4016 = vset.pattern.permute.xlu0 12
        %4017 = vperm.xlu0 %4016, %v339
        %v4018 = vpop.permute.xlu0 %4017
        %4019 = vset.pattern.permute.xlu0 12
        %4020 = vperm.xlu0 %4019, %v340
        %v4021 = vpop.permute.xlu0 %4020
        %4022 = vset.pattern.permute.xlu0 12
        %4023 = vperm.xlu0 %4022, %v341
        %v4024 = vpop.permute.xlu0 %4023
        %4025 = vset.pattern.permute.xlu0 12
        %4026 = vperm.xlu0 %4025, %v342
        %v4027 = vpop.permute.xlu0 %4026
        %4028 = vset.pattern.permute.xlu0 12
        %4029 = vperm.xlu0 %4028, %v343
        %v4030 = vpop.permute.xlu0 %4029
        %4031 = vset.pattern.permute.xlu0 12
        %4032 = vperm.xlu0 %4031, %v344
        %v4033 = vpop.permute.xlu0 %4032
        %4034 = vset.pattern.permute.xlu0 12
        %4035 = vperm.xlu0 %4034, %v345
        %v4036 = vpop.permute.xlu0 %4035
        %4037 = vset.pattern.permute.xlu0 12
        %4038 = vperm.xlu0 %4037, %v346
        %v4039 = vpop.permute.xlu0 %4038
        %4040 = vset.pattern.permute.xlu0 12
        %4041 = vperm.xlu0 %4040, %v347
        %v4042 = vpop.permute.xlu0 %4041
        %4043 = vset.pattern.permute.xlu0 12
        %4044 = vperm.xlu0 %4043, %v348
        %v4045 = vpop.permute.xlu0 %4044
        %4046 = vset.pattern.permute.xlu0 12
        %4047 = vperm.xlu0 %4046, %v349
        %v4048 = vpop.permute.xlu0 %4047
        %4049 = vset.pattern.permute.xlu0 12
        %4050 = vperm.xlu0 %4049, %v350
        %v4051 = vpop.permute.xlu0 %4050
        %4052 = vset.pattern.permute.xlu0 12
        %4053 = vperm.xlu0 %4052, %v351
        %v4054 = vpop.permute.xlu0 %4053
        %4055 = vset.pattern.permute.xlu0 12
        %4056 = vperm.xlu0 %4055, %v352
        %v4057 = vpop.permute.xlu0 %4056
        %4058 = vset.pattern.permute.xlu0 12
        %4059 = vperm.xlu0 %4058, %v353
        %v4060 = vpop.permute.xlu0 %4059
        %vm4061 = vcmp.eq.s32.totalorder %v4015, %v361
        %vm4062 = vcmp.eq.s32.totalorder %v4015, %v362
        %vm4063 = vcmp.eq.s32.totalorder %v4015, %v363
        %vm4064 = vcmp.eq.s32.totalorder %v4015, %v364
        %vm4065 = vcmp.eq.s32.totalorder %v4018, %v361
        %vm4066 = vcmp.eq.s32.totalorder %v4018, %v362
        %vm4067 = vcmp.eq.s32.totalorder %v4018, %v363
        %vm4068 = vcmp.eq.s32.totalorder %v4018, %v364
        %vm4069 = vcmp.eq.s32.totalorder %v4021, %v361
        %vm4070 = vcmp.eq.s32.totalorder %v4021, %v362
        %vm4071 = vcmp.eq.s32.totalorder %v4021, %v363
        %vm4072 = vcmp.eq.s32.totalorder %v4021, %v364
        %vm4073 = vcmp.eq.s32.totalorder %v4024, %v361
        %vm4074 = vcmp.eq.s32.totalorder %v4024, %v362
        %vm4075 = vcmp.eq.s32.totalorder %v4024, %v363
        %vm4076 = vcmp.eq.s32.totalorder %v4024, %v364
        %vm4077 = vcmp.eq.s32.totalorder %v4027, %v361
        %vm4078 = vcmp.eq.s32.totalorder %v4027, %v362
        %vm4079 = vcmp.eq.s32.totalorder %v4027, %v363
        %vm4080 = vcmp.eq.s32.totalorder %v4027, %v364
        %vm4081 = vcmp.eq.s32.totalorder %v4030, %v361
        %vm4082 = vcmp.eq.s32.totalorder %v4030, %v362
        %vm4083 = vcmp.eq.s32.totalorder %v4030, %v363
        %vm4084 = vcmp.eq.s32.totalorder %v4030, %v364
        %vm4085 = vcmp.eq.s32.totalorder %v4033, %v361
        %vm4086 = vcmp.eq.s32.totalorder %v4033, %v362
        %vm4087 = vcmp.eq.s32.totalorder %v4033, %v363
        %vm4088 = vcmp.eq.s32.totalorder %v4033, %v364
        %vm4089 = vcmp.eq.s32.totalorder %v4036, %v361
        %vm4090 = vcmp.eq.s32.totalorder %v4036, %v362
        %vm4091 = vcmp.eq.s32.totalorder %v4036, %v363
        %vm4092 = vcmp.eq.s32.totalorder %v4036, %v364
        %vm4093 = vcmp.eq.s32.totalorder %v4039, %v361
        %vm4094 = vcmp.eq.s32.totalorder %v4039, %v362
        %vm4095 = vcmp.eq.s32.totalorder %v4039, %v363
        %vm4096 = vcmp.eq.s32.totalorder %v4039, %v364
        %vm4097 = vcmp.eq.s32.totalorder %v4042, %v361
        %vm4098 = vcmp.eq.s32.totalorder %v4042, %v362
        %vm4099 = vcmp.eq.s32.totalorder %v4042, %v363
        %vm4100 = vcmp.eq.s32.totalorder %v4042, %v364
        %vm4101 = vcmp.eq.s32.totalorder %v4045, %v361
        %vm4102 = vcmp.eq.s32.totalorder %v4045, %v362
        %vm4103 = vcmp.eq.s32.totalorder %v4045, %v363
        %vm4104 = vcmp.eq.s32.totalorder %v4045, %v364
        %vm4105 = vcmp.eq.s32.totalorder %v4048, %v361
        %vm4106 = vcmp.eq.s32.totalorder %v4048, %v362
        %vm4107 = vcmp.eq.s32.totalorder %v4048, %v363
        %vm4108 = vcmp.eq.s32.totalorder %v4048, %v364
        %vm4109 = vcmp.eq.s32.totalorder %v4051, %v361
        %vm4110 = vcmp.eq.s32.totalorder %v4051, %v362
        %vm4111 = vcmp.eq.s32.totalorder %v4051, %v363
        %vm4112 = vcmp.eq.s32.totalorder %v4051, %v364
        %vm4113 = vcmp.eq.s32.totalorder %v4054, %v361
        %vm4114 = vcmp.eq.s32.totalorder %v4054, %v362
        %vm4115 = vcmp.eq.s32.totalorder %v4054, %v363
        %vm4116 = vcmp.eq.s32.totalorder %v4054, %v364
        %vm4117 = vcmp.eq.s32.totalorder %v4057, %v361
        %vm4118 = vcmp.eq.s32.totalorder %v4057, %v362
        %vm4119 = vcmp.eq.s32.totalorder %v4057, %v363
        %vm4120 = vcmp.eq.s32.totalorder %v4057, %v364
        %vm4121 = vcmp.eq.s32.totalorder %v4060, %v361
        %vm4122 = vcmp.eq.s32.totalorder %v4060, %v362
        %vm4123 = vcmp.eq.s32.totalorder %v4060, %v363
        %vm4124 = vcmp.eq.s32.totalorder %v4060, %v364
        %v4125 = vsel %vm4061, 1, 0
        %v4126 = vsel %vm4062, 1, 0
        %v4127 = vsel %vm4063, 1, 0
        %v4128 = vsel %vm4064, 1, 0
        %v4129 = vsel %vm4065, 1, 0
        %v4130 = vsel %vm4066, 1, 0
        %v4131 = vsel %vm4067, 1, 0
        %v4132 = vsel %vm4068, 1, 0
        %v4133 = vsel %vm4069, 1, 0
        %v4134 = vsel %vm4070, 1, 0
        %v4135 = vsel %vm4071, 1, 0
        %v4136 = vsel %vm4072, 1, 0
        %v4137 = vsel %vm4073, 1, 0
        %v4138 = vsel %vm4074, 1, 0
        %v4139 = vsel %vm4075, 1, 0
        %v4140 = vsel %vm4076, 1, 0
        %v4141 = vsel %vm4077, 1, 0
        %v4142 = vsel %vm4078, 1, 0
        %v4143 = vsel %vm4079, 1, 0
        %v4144 = vsel %vm4080, 1, 0
        %v4145 = vsel %vm4081, 1, 0
        %v4146 = vsel %vm4082, 1, 0
        %v4147 = vsel %vm4083, 1, 0
        %v4148 = vsel %vm4084, 1, 0
        %v4149 = vsel %vm4085, 1, 0
        %v4150 = vsel %vm4086, 1, 0
        %v4151 = vsel %vm4087, 1, 0
        %v4152 = vsel %vm4088, 1, 0
        %v4153 = vsel %vm4089, 1, 0
        %v4154 = vsel %vm4090, 1, 0
        %v4155 = vsel %vm4091, 1, 0
        %v4156 = vsel %vm4092, 1, 0
        %v4157 = vsel %vm4093, 1, 0
        %v4158 = vsel %vm4094, 1, 0
        %v4159 = vsel %vm4095, 1, 0
        %v4160 = vsel %vm4096, 1, 0
        %v4161 = vsel %vm4097, 1, 0
        %v4162 = vsel %vm4098, 1, 0
        %v4163 = vsel %vm4099, 1, 0
        %v4164 = vsel %vm4100, 1, 0
        %v4165 = vsel %vm4101, 1, 0
        %v4166 = vsel %vm4102, 1, 0
        %v4167 = vsel %vm4103, 1, 0
        %v4168 = vsel %vm4104, 1, 0
        %v4169 = vsel %vm4105, 1, 0
        %v4170 = vsel %vm4106, 1, 0
        %v4171 = vsel %vm4107, 1, 0
        %v4172 = vsel %vm4108, 1, 0
        %v4173 = vsel %vm4109, 1, 0
        %v4174 = vsel %vm4110, 1, 0
        %v4175 = vsel %vm4111, 1, 0
        %v4176 = vsel %vm4112, 1, 0
        %v4177 = vsel %vm4113, 1, 0
        %v4178 = vsel %vm4114, 1, 0
        %v4179 = vsel %vm4115, 1, 0
        %v4180 = vsel %vm4116, 1, 0
        %v4181 = vsel %vm4117, 1, 0
        %v4182 = vsel %vm4118, 1, 0
        %v4183 = vsel %vm4119, 1, 0
        %v4184 = vsel %vm4120, 1, 0
        %v4185 = vsel %vm4121, 1, 0
        %v4186 = vsel %vm4122, 1, 0
        %v4187 = vsel %vm4123, 1, 0
        %v4188 = vsel %vm4124, 1, 0
        %v4189 = vcvt.s32.f32 %v4125
        %v4190 = vcvt.s32.f32 %v4126
        %v4191 = vcvt.s32.f32 %v4127
        %v4192 = vcvt.s32.f32 %v4128
        %v4193 = vcvt.s32.f32 %v4129
        %v4194 = vcvt.s32.f32 %v4130
        %v4195 = vcvt.s32.f32 %v4131
        %v4196 = vcvt.s32.f32 %v4132
        %v4197 = vcvt.s32.f32 %v4133
        %v4198 = vcvt.s32.f32 %v4134
        %v4199 = vcvt.s32.f32 %v4135
        %v4200 = vcvt.s32.f32 %v4136
        %v4201 = vcvt.s32.f32 %v4137
        %v4202 = vcvt.s32.f32 %v4138
        %v4203 = vcvt.s32.f32 %v4139
        %v4204 = vcvt.s32.f32 %v4140
        %v4205 = vcvt.s32.f32 %v4141
        %v4206 = vcvt.s32.f32 %v4142
        %v4207 = vcvt.s32.f32 %v4143
        %v4208 = vcvt.s32.f32 %v4144
        %v4209 = vcvt.s32.f32 %v4145
        %v4210 = vcvt.s32.f32 %v4146
        %v4211 = vcvt.s32.f32 %v4147
        %v4212 = vcvt.s32.f32 %v4148
        %v4213 = vcvt.s32.f32 %v4149
        %v4214 = vcvt.s32.f32 %v4150
        %v4215 = vcvt.s32.f32 %v4151
        %v4216 = vcvt.s32.f32 %v4152
        %v4217 = vcvt.s32.f32 %v4153
        %v4218 = vcvt.s32.f32 %v4154
        %v4219 = vcvt.s32.f32 %v4155
        %v4220 = vcvt.s32.f32 %v4156
        %v4221 = vcvt.s32.f32 %v4157
        %v4222 = vcvt.s32.f32 %v4158
        %v4223 = vcvt.s32.f32 %v4159
        %v4224 = vcvt.s32.f32 %v4160
        %v4225 = vcvt.s32.f32 %v4161
        %v4226 = vcvt.s32.f32 %v4162
        %v4227 = vcvt.s32.f32 %v4163
        %v4228 = vcvt.s32.f32 %v4164
        %v4229 = vcvt.s32.f32 %v4165
        %v4230 = vcvt.s32.f32 %v4166
        %v4231 = vcvt.s32.f32 %v4167
        %v4232 = vcvt.s32.f32 %v4168
        %v4233 = vcvt.s32.f32 %v4169
        %v4234 = vcvt.s32.f32 %v4170
        %v4235 = vcvt.s32.f32 %v4171
        %v4236 = vcvt.s32.f32 %v4172
        %v4237 = vcvt.s32.f32 %v4173
        %v4238 = vcvt.s32.f32 %v4174
        %v4239 = vcvt.s32.f32 %v4175
        %v4240 = vcvt.s32.f32 %v4176
        %v4241 = vcvt.s32.f32 %v4177
        %v4242 = vcvt.s32.f32 %v4178
        %v4243 = vcvt.s32.f32 %v4179
        %v4244 = vcvt.s32.f32 %v4180
        %v4245 = vcvt.s32.f32 %v4181
        %v4246 = vcvt.s32.f32 %v4182
        %v4247 = vcvt.s32.f32 %v4183
        %v4248 = vcvt.s32.f32 %v4184
        %v4249 = vcvt.s32.f32 %v4185
        %v4250 = vcvt.s32.f32 %v4186
        %v4251 = vcvt.s32.f32 %v4187
        %v4252 = vcvt.s32.f32 %v4188
        %v4253 = vadd.f32 %v3949, %v4189
        %v4254 = vadd.f32 %v3950, %v4190
        %v4255 = vadd.f32 %v3951, %v4191
        %v4256 = vadd.f32 %v3952, %v4192
        %v4257 = vadd.f32 %v3953, %v4193
        %v4258 = vadd.f32 %v3954, %v4194
        %v4259 = vadd.f32 %v3955, %v4195
        %v4260 = vadd.f32 %v3956, %v4196
        %v4261 = vadd.f32 %v3957, %v4197
        %v4262 = vadd.f32 %v3958, %v4198
        %v4263 = vadd.f32 %v3959, %v4199
        %v4264 = vadd.f32 %v3960, %v4200
        %v4265 = vadd.f32 %v3961, %v4201
        %v4266 = vadd.f32 %v3962, %v4202
        %v4267 = vadd.f32 %v3963, %v4203
        %v4268 = vadd.f32 %v3964, %v4204
        %v4269 = vadd.f32 %v3965, %v4205
        %v4270 = vadd.f32 %v3966, %v4206
        %v4271 = vadd.f32 %v3967, %v4207
        %v4272 = vadd.f32 %v3968, %v4208
        %v4273 = vadd.f32 %v3969, %v4209
        %v4274 = vadd.f32 %v3970, %v4210
        %v4275 = vadd.f32 %v3971, %v4211
        %v4276 = vadd.f32 %v3972, %v4212
        %v4277 = vadd.f32 %v3973, %v4213
        %v4278 = vadd.f32 %v3974, %v4214
        %v4279 = vadd.f32 %v3975, %v4215
        %v4280 = vadd.f32 %v3976, %v4216
        %v4281 = vadd.f32 %v3977, %v4217
        %v4282 = vadd.f32 %v3978, %v4218
        %v4283 = vadd.f32 %v3979, %v4219
        %v4284 = vadd.f32 %v3980, %v4220
        %v4285 = vadd.f32 %v3981, %v4221
        %v4286 = vadd.f32 %v3982, %v4222
        %v4287 = vadd.f32 %v3983, %v4223
        %v4288 = vadd.f32 %v3984, %v4224
        %v4289 = vadd.f32 %v3985, %v4225
        %v4290 = vadd.f32 %v3986, %v4226
        %v4291 = vadd.f32 %v3987, %v4227
        %v4292 = vadd.f32 %v3988, %v4228
        %v4293 = vadd.f32 %v3989, %v4229
        %v4294 = vadd.f32 %v3990, %v4230
        %v4295 = vadd.f32 %v3991, %v4231
        %v4296 = vadd.f32 %v3992, %v4232
        %v4297 = vadd.f32 %v3993, %v4233
        %v4298 = vadd.f32 %v3994, %v4234
        %v4299 = vadd.f32 %v3995, %v4235
        %v4300 = vadd.f32 %v3996, %v4236
        %v4301 = vadd.f32 %v3997, %v4237
        %v4302 = vadd.f32 %v3998, %v4238
        %v4303 = vadd.f32 %v3999, %v4239
        %v4304 = vadd.f32 %v4000, %v4240
        %v4305 = vadd.f32 %v4001, %v4241
        %v4306 = vadd.f32 %v4002, %v4242
        %v4307 = vadd.f32 %v4003, %v4243
        %v4308 = vadd.f32 %v4004, %v4244
        %v4309 = vadd.f32 %v4005, %v4245
        %v4310 = vadd.f32 %v4006, %v4246
        %v4311 = vadd.f32 %v4007, %v4247
        %v4312 = vadd.f32 %v4008, %v4248
        %v4313 = vadd.f32 %v4009, %v4249
        %v4314 = vadd.f32 %v4010, %v4250
        %v4315 = vadd.f32 %v4011, %v4251
        %v4316 = vadd.f32 %v4012, %v4252
        %4317 = vset.pattern.permute.xlu0 13
        %4318 = vperm.xlu0 %4317, %v338
        %v4319 = vpop.permute.xlu0 %4318
        %4320 = vset.pattern.permute.xlu0 13
        %4321 = vperm.xlu0 %4320, %v339
        %v4322 = vpop.permute.xlu0 %4321
        %4323 = vset.pattern.permute.xlu0 13
        %4324 = vperm.xlu0 %4323, %v340
        %v4325 = vpop.permute.xlu0 %4324
        %4326 = vset.pattern.permute.xlu0 13
        %4327 = vperm.xlu0 %4326, %v341
        %v4328 = vpop.permute.xlu0 %4327
        %4329 = vset.pattern.permute.xlu0 13
        %4330 = vperm.xlu0 %4329, %v342
        %v4331 = vpop.permute.xlu0 %4330
        %4332 = vset.pattern.permute.xlu0 13
        %4333 = vperm.xlu0 %4332, %v343
        %v4334 = vpop.permute.xlu0 %4333
        %4335 = vset.pattern.permute.xlu0 13
        %4336 = vperm.xlu0 %4335, %v344
        %v4337 = vpop.permute.xlu0 %4336
        %4338 = vset.pattern.permute.xlu0 13
        %4339 = vperm.xlu0 %4338, %v345
        %v4340 = vpop.permute.xlu0 %4339
        %4341 = vset.pattern.permute.xlu0 13
        %4342 = vperm.xlu0 %4341, %v346
        %v4343 = vpop.permute.xlu0 %4342
        %4344 = vset.pattern.permute.xlu0 13
        %4345 = vperm.xlu0 %4344, %v347
        %v4346 = vpop.permute.xlu0 %4345
        %4347 = vset.pattern.permute.xlu0 13
        %4348 = vperm.xlu0 %4347, %v348
        %v4349 = vpop.permute.xlu0 %4348
        %4350 = vset.pattern.permute.xlu0 13
        %4351 = vperm.xlu0 %4350, %v349
        %v4352 = vpop.permute.xlu0 %4351
        %4353 = vset.pattern.permute.xlu0 13
        %4354 = vperm.xlu0 %4353, %v350
        %v4355 = vpop.permute.xlu0 %4354
        %4356 = vset.pattern.permute.xlu0 13
        %4357 = vperm.xlu0 %4356, %v351
        %v4358 = vpop.permute.xlu0 %4357
        %4359 = vset.pattern.permute.xlu0 13
        %4360 = vperm.xlu0 %4359, %v352
        %v4361 = vpop.permute.xlu0 %4360
        %4362 = vset.pattern.permute.xlu0 13
        %4363 = vperm.xlu0 %4362, %v353
        %v4364 = vpop.permute.xlu0 %4363
        %vm4365 = vcmp.eq.s32.totalorder %v4319, %v361
        %vm4366 = vcmp.eq.s32.totalorder %v4319, %v362
        %vm4367 = vcmp.eq.s32.totalorder %v4319, %v363
        %vm4368 = vcmp.eq.s32.totalorder %v4319, %v364
        %vm4369 = vcmp.eq.s32.totalorder %v4322, %v361
        %vm4370 = vcmp.eq.s32.totalorder %v4322, %v362
        %vm4371 = vcmp.eq.s32.totalorder %v4322, %v363
        %vm4372 = vcmp.eq.s32.totalorder %v4322, %v364
        %vm4373 = vcmp.eq.s32.totalorder %v4325, %v361
        %vm4374 = vcmp.eq.s32.totalorder %v4325, %v362
        %vm4375 = vcmp.eq.s32.totalorder %v4325, %v363
        %vm4376 = vcmp.eq.s32.totalorder %v4325, %v364
        %vm4377 = vcmp.eq.s32.totalorder %v4328, %v361
        %vm4378 = vcmp.eq.s32.totalorder %v4328, %v362
        %vm4379 = vcmp.eq.s32.totalorder %v4328, %v363
        %vm4380 = vcmp.eq.s32.totalorder %v4328, %v364
        %vm4381 = vcmp.eq.s32.totalorder %v4331, %v361
        %vm4382 = vcmp.eq.s32.totalorder %v4331, %v362
        %vm4383 = vcmp.eq.s32.totalorder %v4331, %v363
        %vm4384 = vcmp.eq.s32.totalorder %v4331, %v364
        %vm4385 = vcmp.eq.s32.totalorder %v4334, %v361
        %vm4386 = vcmp.eq.s32.totalorder %v4334, %v362
        %vm4387 = vcmp.eq.s32.totalorder %v4334, %v363
        %vm4388 = vcmp.eq.s32.totalorder %v4334, %v364
        %vm4389 = vcmp.eq.s32.totalorder %v4337, %v361
        %vm4390 = vcmp.eq.s32.totalorder %v4337, %v362
        %vm4391 = vcmp.eq.s32.totalorder %v4337, %v363
        %vm4392 = vcmp.eq.s32.totalorder %v4337, %v364
        %vm4393 = vcmp.eq.s32.totalorder %v4340, %v361
        %vm4394 = vcmp.eq.s32.totalorder %v4340, %v362
        %vm4395 = vcmp.eq.s32.totalorder %v4340, %v363
        %vm4396 = vcmp.eq.s32.totalorder %v4340, %v364
        %vm4397 = vcmp.eq.s32.totalorder %v4343, %v361
        %vm4398 = vcmp.eq.s32.totalorder %v4343, %v362
        %vm4399 = vcmp.eq.s32.totalorder %v4343, %v363
        %vm4400 = vcmp.eq.s32.totalorder %v4343, %v364
        %vm4401 = vcmp.eq.s32.totalorder %v4346, %v361
        %vm4402 = vcmp.eq.s32.totalorder %v4346, %v362
        %vm4403 = vcmp.eq.s32.totalorder %v4346, %v363
        %vm4404 = vcmp.eq.s32.totalorder %v4346, %v364
        %vm4405 = vcmp.eq.s32.totalorder %v4349, %v361
        %vm4406 = vcmp.eq.s32.totalorder %v4349, %v362
        %vm4407 = vcmp.eq.s32.totalorder %v4349, %v363
        %vm4408 = vcmp.eq.s32.totalorder %v4349, %v364
        %vm4409 = vcmp.eq.s32.totalorder %v4352, %v361
        %vm4410 = vcmp.eq.s32.totalorder %v4352, %v362
        %vm4411 = vcmp.eq.s32.totalorder %v4352, %v363
        %vm4412 = vcmp.eq.s32.totalorder %v4352, %v364
        %vm4413 = vcmp.eq.s32.totalorder %v4355, %v361
        %vm4414 = vcmp.eq.s32.totalorder %v4355, %v362
        %vm4415 = vcmp.eq.s32.totalorder %v4355, %v363
        %vm4416 = vcmp.eq.s32.totalorder %v4355, %v364
        %vm4417 = vcmp.eq.s32.totalorder %v4358, %v361
        %vm4418 = vcmp.eq.s32.totalorder %v4358, %v362
        %vm4419 = vcmp.eq.s32.totalorder %v4358, %v363
        %vm4420 = vcmp.eq.s32.totalorder %v4358, %v364
        %vm4421 = vcmp.eq.s32.totalorder %v4361, %v361
        %vm4422 = vcmp.eq.s32.totalorder %v4361, %v362
        %vm4423 = vcmp.eq.s32.totalorder %v4361, %v363
        %vm4424 = vcmp.eq.s32.totalorder %v4361, %v364
        %vm4425 = vcmp.eq.s32.totalorder %v4364, %v361
        %vm4426 = vcmp.eq.s32.totalorder %v4364, %v362
        %vm4427 = vcmp.eq.s32.totalorder %v4364, %v363
        %vm4428 = vcmp.eq.s32.totalorder %v4364, %v364
        %v4429 = vsel %vm4365, 1, 0
        %v4430 = vsel %vm4366, 1, 0
        %v4431 = vsel %vm4367, 1, 0
        %v4432 = vsel %vm4368, 1, 0
        %v4433 = vsel %vm4369, 1, 0
        %v4434 = vsel %vm4370, 1, 0
        %v4435 = vsel %vm4371, 1, 0
        %v4436 = vsel %vm4372, 1, 0
        %v4437 = vsel %vm4373, 1, 0
        %v4438 = vsel %vm4374, 1, 0
        %v4439 = vsel %vm4375, 1, 0
        %v4440 = vsel %vm4376, 1, 0
        %v4441 = vsel %vm4377, 1, 0
        %v4442 = vsel %vm4378, 1, 0
        %v4443 = vsel %vm4379, 1, 0
        %v4444 = vsel %vm4380, 1, 0
        %v4445 = vsel %vm4381, 1, 0
        %v4446 = vsel %vm4382, 1, 0
        %v4447 = vsel %vm4383, 1, 0
        %v4448 = vsel %vm4384, 1, 0
        %v4449 = vsel %vm4385, 1, 0
        %v4450 = vsel %vm4386, 1, 0
        %v4451 = vsel %vm4387, 1, 0
        %v4452 = vsel %vm4388, 1, 0
        %v4453 = vsel %vm4389, 1, 0
        %v4454 = vsel %vm4390, 1, 0
        %v4455 = vsel %vm4391, 1, 0
        %v4456 = vsel %vm4392, 1, 0
        %v4457 = vsel %vm4393, 1, 0
        %v4458 = vsel %vm4394, 1, 0
        %v4459 = vsel %vm4395, 1, 0
        %v4460 = vsel %vm4396, 1, 0
        %v4461 = vsel %vm4397, 1, 0
        %v4462 = vsel %vm4398, 1, 0
        %v4463 = vsel %vm4399, 1, 0
        %v4464 = vsel %vm4400, 1, 0
        %v4465 = vsel %vm4401, 1, 0
        %v4466 = vsel %vm4402, 1, 0
        %v4467 = vsel %vm4403, 1, 0
        %v4468 = vsel %vm4404, 1, 0
        %v4469 = vsel %vm4405, 1, 0
        %v4470 = vsel %vm4406, 1, 0
        %v4471 = vsel %vm4407, 1, 0
        %v4472 = vsel %vm4408, 1, 0
        %v4473 = vsel %vm4409, 1, 0
        %v4474 = vsel %vm4410, 1, 0
        %v4475 = vsel %vm4411, 1, 0
        %v4476 = vsel %vm4412, 1, 0
        %v4477 = vsel %vm4413, 1, 0
        %v4478 = vsel %vm4414, 1, 0
        %v4479 = vsel %vm4415, 1, 0
        %v4480 = vsel %vm4416, 1, 0
        %v4481 = vsel %vm4417, 1, 0
        %v4482 = vsel %vm4418, 1, 0
        %v4483 = vsel %vm4419, 1, 0
        %v4484 = vsel %vm4420, 1, 0
        %v4485 = vsel %vm4421, 1, 0
        %v4486 = vsel %vm4422, 1, 0
        %v4487 = vsel %vm4423, 1, 0
        %v4488 = vsel %vm4424, 1, 0
        %v4489 = vsel %vm4425, 1, 0
        %v4490 = vsel %vm4426, 1, 0
        %v4491 = vsel %vm4427, 1, 0
        %v4492 = vsel %vm4428, 1, 0
        %v4493 = vcvt.s32.f32 %v4429
        %v4494 = vcvt.s32.f32 %v4430
        %v4495 = vcvt.s32.f32 %v4431
        %v4496 = vcvt.s32.f32 %v4432
        %v4497 = vcvt.s32.f32 %v4433
        %v4498 = vcvt.s32.f32 %v4434
        %v4499 = vcvt.s32.f32 %v4435
        %v4500 = vcvt.s32.f32 %v4436
        %v4501 = vcvt.s32.f32 %v4437
        %v4502 = vcvt.s32.f32 %v4438
        %v4503 = vcvt.s32.f32 %v4439
        %v4504 = vcvt.s32.f32 %v4440
        %v4505 = vcvt.s32.f32 %v4441
        %v4506 = vcvt.s32.f32 %v4442
        %v4507 = vcvt.s32.f32 %v4443
        %v4508 = vcvt.s32.f32 %v4444
        %v4509 = vcvt.s32.f32 %v4445
        %v4510 = vcvt.s32.f32 %v4446
        %v4511 = vcvt.s32.f32 %v4447
        %v4512 = vcvt.s32.f32 %v4448
        %v4513 = vcvt.s32.f32 %v4449
        %v4514 = vcvt.s32.f32 %v4450
        %v4515 = vcvt.s32.f32 %v4451
        %v4516 = vcvt.s32.f32 %v4452
        %v4517 = vcvt.s32.f32 %v4453
        %v4518 = vcvt.s32.f32 %v4454
        %v4519 = vcvt.s32.f32 %v4455
        %v4520 = vcvt.s32.f32 %v4456
        %v4521 = vcvt.s32.f32 %v4457
        %v4522 = vcvt.s32.f32 %v4458
        %v4523 = vcvt.s32.f32 %v4459
        %v4524 = vcvt.s32.f32 %v4460
        %v4525 = vcvt.s32.f32 %v4461
        %v4526 = vcvt.s32.f32 %v4462
        %v4527 = vcvt.s32.f32 %v4463
        %v4528 = vcvt.s32.f32 %v4464
        %v4529 = vcvt.s32.f32 %v4465
        %v4530 = vcvt.s32.f32 %v4466
        %v4531 = vcvt.s32.f32 %v4467
        %v4532 = vcvt.s32.f32 %v4468
        %v4533 = vcvt.s32.f32 %v4469
        %v4534 = vcvt.s32.f32 %v4470
        %v4535 = vcvt.s32.f32 %v4471
        %v4536 = vcvt.s32.f32 %v4472
        %v4537 = vcvt.s32.f32 %v4473
        %v4538 = vcvt.s32.f32 %v4474
        %v4539 = vcvt.s32.f32 %v4475
        %v4540 = vcvt.s32.f32 %v4476
        %v4541 = vcvt.s32.f32 %v4477
        %v4542 = vcvt.s32.f32 %v4478
        %v4543 = vcvt.s32.f32 %v4479
        %v4544 = vcvt.s32.f32 %v4480
        %v4545 = vcvt.s32.f32 %v4481
        %v4546 = vcvt.s32.f32 %v4482
        %v4547 = vcvt.s32.f32 %v4483
        %v4548 = vcvt.s32.f32 %v4484
        %v4549 = vcvt.s32.f32 %v4485
        %v4550 = vcvt.s32.f32 %v4486
        %v4551 = vcvt.s32.f32 %v4487
        %v4552 = vcvt.s32.f32 %v4488
        %v4553 = vcvt.s32.f32 %v4489
        %v4554 = vcvt.s32.f32 %v4490
        %v4555 = vcvt.s32.f32 %v4491
        %v4556 = vcvt.s32.f32 %v4492
        %v4557 = vadd.f32 %v4253, %v4493
        %v4558 = vadd.f32 %v4254, %v4494
        %v4559 = vadd.f32 %v4255, %v4495
        %v4560 = vadd.f32 %v4256, %v4496
        %v4561 = vadd.f32 %v4257, %v4497
        %v4562 = vadd.f32 %v4258, %v4498
        %v4563 = vadd.f32 %v4259, %v4499
        %v4564 = vadd.f32 %v4260, %v4500
        %v4565 = vadd.f32 %v4261, %v4501
        %v4566 = vadd.f32 %v4262, %v4502
        %v4567 = vadd.f32 %v4263, %v4503
        %v4568 = vadd.f32 %v4264, %v4504
        %v4569 = vadd.f32 %v4265, %v4505
        %v4570 = vadd.f32 %v4266, %v4506
        %v4571 = vadd.f32 %v4267, %v4507
        %v4572 = vadd.f32 %v4268, %v4508
        %v4573 = vadd.f32 %v4269, %v4509
        %v4574 = vadd.f32 %v4270, %v4510
        %v4575 = vadd.f32 %v4271, %v4511
        %v4576 = vadd.f32 %v4272, %v4512
        %v4577 = vadd.f32 %v4273, %v4513
        %v4578 = vadd.f32 %v4274, %v4514
        %v4579 = vadd.f32 %v4275, %v4515
        %v4580 = vadd.f32 %v4276, %v4516
        %v4581 = vadd.f32 %v4277, %v4517
        %v4582 = vadd.f32 %v4278, %v4518
        %v4583 = vadd.f32 %v4279, %v4519
        %v4584 = vadd.f32 %v4280, %v4520
        %v4585 = vadd.f32 %v4281, %v4521
        %v4586 = vadd.f32 %v4282, %v4522
        %v4587 = vadd.f32 %v4283, %v4523
        %v4588 = vadd.f32 %v4284, %v4524
        %v4589 = vadd.f32 %v4285, %v4525
        %v4590 = vadd.f32 %v4286, %v4526
        %v4591 = vadd.f32 %v4287, %v4527
        %v4592 = vadd.f32 %v4288, %v4528
        %v4593 = vadd.f32 %v4289, %v4529
        %v4594 = vadd.f32 %v4290, %v4530
        %v4595 = vadd.f32 %v4291, %v4531
        %v4596 = vadd.f32 %v4292, %v4532
        %v4597 = vadd.f32 %v4293, %v4533
        %v4598 = vadd.f32 %v4294, %v4534
        %v4599 = vadd.f32 %v4295, %v4535
        %v4600 = vadd.f32 %v4296, %v4536
        %v4601 = vadd.f32 %v4297, %v4537
        %v4602 = vadd.f32 %v4298, %v4538
        %v4603 = vadd.f32 %v4299, %v4539
        %v4604 = vadd.f32 %v4300, %v4540
        %v4605 = vadd.f32 %v4301, %v4541
        %v4606 = vadd.f32 %v4302, %v4542
        %v4607 = vadd.f32 %v4303, %v4543
        %v4608 = vadd.f32 %v4304, %v4544
        %v4609 = vadd.f32 %v4305, %v4545
        %v4610 = vadd.f32 %v4306, %v4546
        %v4611 = vadd.f32 %v4307, %v4547
        %v4612 = vadd.f32 %v4308, %v4548
        %v4613 = vadd.f32 %v4309, %v4549
        %v4614 = vadd.f32 %v4310, %v4550
        %v4615 = vadd.f32 %v4311, %v4551
        %v4616 = vadd.f32 %v4312, %v4552
        %v4617 = vadd.f32 %v4313, %v4553
        %v4618 = vadd.f32 %v4314, %v4554
        %v4619 = vadd.f32 %v4315, %v4555
        %v4620 = vadd.f32 %v4316, %v4556
        %4621 = vset.pattern.permute.xlu0 14
        %4622 = vperm.xlu0 %4621, %v338
        %v4623 = vpop.permute.xlu0 %4622
        %4624 = vset.pattern.permute.xlu0 14
        %4625 = vperm.xlu0 %4624, %v339
        %v4626 = vpop.permute.xlu0 %4625
        %4627 = vset.pattern.permute.xlu0 14
        %4628 = vperm.xlu0 %4627, %v340
        %v4629 = vpop.permute.xlu0 %4628
        %4630 = vset.pattern.permute.xlu0 14
        %4631 = vperm.xlu0 %4630, %v341
        %v4632 = vpop.permute.xlu0 %4631
        %4633 = vset.pattern.permute.xlu0 14
        %4634 = vperm.xlu0 %4633, %v342
        %v4635 = vpop.permute.xlu0 %4634
        %4636 = vset.pattern.permute.xlu0 14
        %4637 = vperm.xlu0 %4636, %v343
        %v4638 = vpop.permute.xlu0 %4637
        %4639 = vset.pattern.permute.xlu0 14
        %4640 = vperm.xlu0 %4639, %v344
        %v4641 = vpop.permute.xlu0 %4640
        %4642 = vset.pattern.permute.xlu0 14
        %4643 = vperm.xlu0 %4642, %v345
        %v4644 = vpop.permute.xlu0 %4643
        %4645 = vset.pattern.permute.xlu0 14
        %4646 = vperm.xlu0 %4645, %v346
        %v4647 = vpop.permute.xlu0 %4646
        %4648 = vset.pattern.permute.xlu0 14
        %4649 = vperm.xlu0 %4648, %v347
        %v4650 = vpop.permute.xlu0 %4649
        %4651 = vset.pattern.permute.xlu0 14
        %4652 = vperm.xlu0 %4651, %v348
        %v4653 = vpop.permute.xlu0 %4652
        %4654 = vset.pattern.permute.xlu0 14
        %4655 = vperm.xlu0 %4654, %v349
        %v4656 = vpop.permute.xlu0 %4655
        %4657 = vset.pattern.permute.xlu0 14
        %4658 = vperm.xlu0 %4657, %v350
        %v4659 = vpop.permute.xlu0 %4658
        %4660 = vset.pattern.permute.xlu0 14
        %4661 = vperm.xlu0 %4660, %v351
        %v4662 = vpop.permute.xlu0 %4661
        %4663 = vset.pattern.permute.xlu0 14
        %4664 = vperm.xlu0 %4663, %v352
        %v4665 = vpop.permute.xlu0 %4664
        %4666 = vset.pattern.permute.xlu0 14
        %4667 = vperm.xlu0 %4666, %v353
        %v4668 = vpop.permute.xlu0 %4667
        %vm4669 = vcmp.eq.s32.totalorder %v4623, %v361
        %vm4670 = vcmp.eq.s32.totalorder %v4623, %v362
        %vm4671 = vcmp.eq.s32.totalorder %v4623, %v363
        %vm4672 = vcmp.eq.s32.totalorder %v4623, %v364
        %vm4673 = vcmp.eq.s32.totalorder %v4626, %v361
        %vm4674 = vcmp.eq.s32.totalorder %v4626, %v362
        %vm4675 = vcmp.eq.s32.totalorder %v4626, %v363
        %vm4676 = vcmp.eq.s32.totalorder %v4626, %v364
        %vm4677 = vcmp.eq.s32.totalorder %v4629, %v361
        %vm4678 = vcmp.eq.s32.totalorder %v4629, %v362
        %vm4679 = vcmp.eq.s32.totalorder %v4629, %v363
        %vm4680 = vcmp.eq.s32.totalorder %v4629, %v364
        %vm4681 = vcmp.eq.s32.totalorder %v4632, %v361
        %vm4682 = vcmp.eq.s32.totalorder %v4632, %v362
        %vm4683 = vcmp.eq.s32.totalorder %v4632, %v363
        %vm4684 = vcmp.eq.s32.totalorder %v4632, %v364
        %vm4685 = vcmp.eq.s32.totalorder %v4635, %v361
        %vm4686 = vcmp.eq.s32.totalorder %v4635, %v362
        %vm4687 = vcmp.eq.s32.totalorder %v4635, %v363
        %vm4688 = vcmp.eq.s32.totalorder %v4635, %v364
        %vm4689 = vcmp.eq.s32.totalorder %v4638, %v361
        %vm4690 = vcmp.eq.s32.totalorder %v4638, %v362
        %vm4691 = vcmp.eq.s32.totalorder %v4638, %v363
        %vm4692 = vcmp.eq.s32.totalorder %v4638, %v364
        %vm4693 = vcmp.eq.s32.totalorder %v4641, %v361
        %vm4694 = vcmp.eq.s32.totalorder %v4641, %v362
        %vm4695 = vcmp.eq.s32.totalorder %v4641, %v363
        %vm4696 = vcmp.eq.s32.totalorder %v4641, %v364
        %vm4697 = vcmp.eq.s32.totalorder %v4644, %v361
        %vm4698 = vcmp.eq.s32.totalorder %v4644, %v362
        %vm4699 = vcmp.eq.s32.totalorder %v4644, %v363
        %vm4700 = vcmp.eq.s32.totalorder %v4644, %v364
        %vm4701 = vcmp.eq.s32.totalorder %v4647, %v361
        %vm4702 = vcmp.eq.s32.totalorder %v4647, %v362
        %vm4703 = vcmp.eq.s32.totalorder %v4647, %v363
        %vm4704 = vcmp.eq.s32.totalorder %v4647, %v364
        %vm4705 = vcmp.eq.s32.totalorder %v4650, %v361
        %vm4706 = vcmp.eq.s32.totalorder %v4650, %v362
        %vm4707 = vcmp.eq.s32.totalorder %v4650, %v363
        %vm4708 = vcmp.eq.s32.totalorder %v4650, %v364
        %vm4709 = vcmp.eq.s32.totalorder %v4653, %v361
        %vm4710 = vcmp.eq.s32.totalorder %v4653, %v362
        %vm4711 = vcmp.eq.s32.totalorder %v4653, %v363
        %vm4712 = vcmp.eq.s32.totalorder %v4653, %v364
        %vm4713 = vcmp.eq.s32.totalorder %v4656, %v361
        %vm4714 = vcmp.eq.s32.totalorder %v4656, %v362
        %vm4715 = vcmp.eq.s32.totalorder %v4656, %v363
        %vm4716 = vcmp.eq.s32.totalorder %v4656, %v364
        %vm4717 = vcmp.eq.s32.totalorder %v4659, %v361
        %vm4718 = vcmp.eq.s32.totalorder %v4659, %v362
        %vm4719 = vcmp.eq.s32.totalorder %v4659, %v363
        %vm4720 = vcmp.eq.s32.totalorder %v4659, %v364
        %vm4721 = vcmp.eq.s32.totalorder %v4662, %v361
        %vm4722 = vcmp.eq.s32.totalorder %v4662, %v362
        %vm4723 = vcmp.eq.s32.totalorder %v4662, %v363
        %vm4724 = vcmp.eq.s32.totalorder %v4662, %v364
        %vm4725 = vcmp.eq.s32.totalorder %v4665, %v361
        %vm4726 = vcmp.eq.s32.totalorder %v4665, %v362
        %vm4727 = vcmp.eq.s32.totalorder %v4665, %v363
        %vm4728 = vcmp.eq.s32.totalorder %v4665, %v364
        %vm4729 = vcmp.eq.s32.totalorder %v4668, %v361
        %vm4730 = vcmp.eq.s32.totalorder %v4668, %v362
        %vm4731 = vcmp.eq.s32.totalorder %v4668, %v363
        %vm4732 = vcmp.eq.s32.totalorder %v4668, %v364
        %v4733 = vsel %vm4669, 1, 0
        %v4734 = vsel %vm4670, 1, 0
        %v4735 = vsel %vm4671, 1, 0
        %v4736 = vsel %vm4672, 1, 0
        %v4737 = vsel %vm4673, 1, 0
        %v4738 = vsel %vm4674, 1, 0
        %v4739 = vsel %vm4675, 1, 0
        %v4740 = vsel %vm4676, 1, 0
        %v4741 = vsel %vm4677, 1, 0
        %v4742 = vsel %vm4678, 1, 0
        %v4743 = vsel %vm4679, 1, 0
        %v4744 = vsel %vm4680, 1, 0
        %v4745 = vsel %vm4681, 1, 0
        %v4746 = vsel %vm4682, 1, 0
        %v4747 = vsel %vm4683, 1, 0
        %v4748 = vsel %vm4684, 1, 0
        %v4749 = vsel %vm4685, 1, 0
        %v4750 = vsel %vm4686, 1, 0
        %v4751 = vsel %vm4687, 1, 0
        %v4752 = vsel %vm4688, 1, 0
        %v4753 = vsel %vm4689, 1, 0
        %v4754 = vsel %vm4690, 1, 0
        %v4755 = vsel %vm4691, 1, 0
        %v4756 = vsel %vm4692, 1, 0
        %v4757 = vsel %vm4693, 1, 0
        %v4758 = vsel %vm4694, 1, 0
        %v4759 = vsel %vm4695, 1, 0
        %v4760 = vsel %vm4696, 1, 0
        %v4761 = vsel %vm4697, 1, 0
        %v4762 = vsel %vm4698, 1, 0
        %v4763 = vsel %vm4699, 1, 0
        %v4764 = vsel %vm4700, 1, 0
        %v4765 = vsel %vm4701, 1, 0
        %v4766 = vsel %vm4702, 1, 0
        %v4767 = vsel %vm4703, 1, 0
        %v4768 = vsel %vm4704, 1, 0
        %v4769 = vsel %vm4705, 1, 0
        %v4770 = vsel %vm4706, 1, 0
        %v4771 = vsel %vm4707, 1, 0
        %v4772 = vsel %vm4708, 1, 0
        %v4773 = vsel %vm4709, 1, 0
        %v4774 = vsel %vm4710, 1, 0
        %v4775 = vsel %vm4711, 1, 0
        %v4776 = vsel %vm4712, 1, 0
        %v4777 = vsel %vm4713, 1, 0
        %v4778 = vsel %vm4714, 1, 0
        %v4779 = vsel %vm4715, 1, 0
        %v4780 = vsel %vm4716, 1, 0
        %v4781 = vsel %vm4717, 1, 0
        %v4782 = vsel %vm4718, 1, 0
        %v4783 = vsel %vm4719, 1, 0
        %v4784 = vsel %vm4720, 1, 0
        %v4785 = vsel %vm4721, 1, 0
        %v4786 = vsel %vm4722, 1, 0
        %v4787 = vsel %vm4723, 1, 0
        %v4788 = vsel %vm4724, 1, 0
        %v4789 = vsel %vm4725, 1, 0
        %v4790 = vsel %vm4726, 1, 0
        %v4791 = vsel %vm4727, 1, 0
        %v4792 = vsel %vm4728, 1, 0
        %v4793 = vsel %vm4729, 1, 0
        %v4794 = vsel %vm4730, 1, 0
        %v4795 = vsel %vm4731, 1, 0
        %v4796 = vsel %vm4732, 1, 0
        %v4797 = vcvt.s32.f32 %v4733
        %v4798 = vcvt.s32.f32 %v4734
        %v4799 = vcvt.s32.f32 %v4735
        %v4800 = vcvt.s32.f32 %v4736
        %v4801 = vcvt.s32.f32 %v4737
        %v4802 = vcvt.s32.f32 %v4738
        %v4803 = vcvt.s32.f32 %v4739
        %v4804 = vcvt.s32.f32 %v4740
        %v4805 = vcvt.s32.f32 %v4741
        %v4806 = vcvt.s32.f32 %v4742
        %v4807 = vcvt.s32.f32 %v4743
        %v4808 = vcvt.s32.f32 %v4744
        %v4809 = vcvt.s32.f32 %v4745
        %v4810 = vcvt.s32.f32 %v4746
        %v4811 = vcvt.s32.f32 %v4747
        %v4812 = vcvt.s32.f32 %v4748
        %v4813 = vcvt.s32.f32 %v4749
        %v4814 = vcvt.s32.f32 %v4750
        %v4815 = vcvt.s32.f32 %v4751
        %v4816 = vcvt.s32.f32 %v4752
        %v4817 = vcvt.s32.f32 %v4753
        %v4818 = vcvt.s32.f32 %v4754
        %v4819 = vcvt.s32.f32 %v4755
        %v4820 = vcvt.s32.f32 %v4756
        %v4821 = vcvt.s32.f32 %v4757
        %v4822 = vcvt.s32.f32 %v4758
        %v4823 = vcvt.s32.f32 %v4759
        %v4824 = vcvt.s32.f32 %v4760
        %v4825 = vcvt.s32.f32 %v4761
        %v4826 = vcvt.s32.f32 %v4762
        %v4827 = vcvt.s32.f32 %v4763
        %v4828 = vcvt.s32.f32 %v4764
        %v4829 = vcvt.s32.f32 %v4765
        %v4830 = vcvt.s32.f32 %v4766
        %v4831 = vcvt.s32.f32 %v4767
        %v4832 = vcvt.s32.f32 %v4768
        %v4833 = vcvt.s32.f32 %v4769
        %v4834 = vcvt.s32.f32 %v4770
        %v4835 = vcvt.s32.f32 %v4771
        %v4836 = vcvt.s32.f32 %v4772
        %v4837 = vcvt.s32.f32 %v4773
        %v4838 = vcvt.s32.f32 %v4774
        %v4839 = vcvt.s32.f32 %v4775
        %v4840 = vcvt.s32.f32 %v4776
        %v4841 = vcvt.s32.f32 %v4777
        %v4842 = vcvt.s32.f32 %v4778
        %v4843 = vcvt.s32.f32 %v4779
        %v4844 = vcvt.s32.f32 %v4780
        %v4845 = vcvt.s32.f32 %v4781
        %v4846 = vcvt.s32.f32 %v4782
        %v4847 = vcvt.s32.f32 %v4783
        %v4848 = vcvt.s32.f32 %v4784
        %v4849 = vcvt.s32.f32 %v4785
        %v4850 = vcvt.s32.f32 %v4786
        %v4851 = vcvt.s32.f32 %v4787
        %v4852 = vcvt.s32.f32 %v4788
        %v4853 = vcvt.s32.f32 %v4789
        %v4854 = vcvt.s32.f32 %v4790
        %v4855 = vcvt.s32.f32 %v4791
        %v4856 = vcvt.s32.f32 %v4792
        %v4857 = vcvt.s32.f32 %v4793
        %v4858 = vcvt.s32.f32 %v4794
        %v4859 = vcvt.s32.f32 %v4795
        %v4860 = vcvt.s32.f32 %v4796
        %v4861 = vadd.f32 %v4557, %v4797
        %v4862 = vadd.f32 %v4558, %v4798
        %v4863 = vadd.f32 %v4559, %v4799
        %v4864 = vadd.f32 %v4560, %v4800
        %v4865 = vadd.f32 %v4561, %v4801
        %v4866 = vadd.f32 %v4562, %v4802
        %v4867 = vadd.f32 %v4563, %v4803
        %v4868 = vadd.f32 %v4564, %v4804
        %v4869 = vadd.f32 %v4565, %v4805
        %v4870 = vadd.f32 %v4566, %v4806
        %v4871 = vadd.f32 %v4567, %v4807
        %v4872 = vadd.f32 %v4568, %v4808
        %v4873 = vadd.f32 %v4569, %v4809
        %v4874 = vadd.f32 %v4570, %v4810
        %v4875 = vadd.f32 %v4571, %v4811
        %v4876 = vadd.f32 %v4572, %v4812
        %v4877 = vadd.f32 %v4573, %v4813
        %v4878 = vadd.f32 %v4574, %v4814
        %v4879 = vadd.f32 %v4575, %v4815
        %v4880 = vadd.f32 %v4576, %v4816
        %v4881 = vadd.f32 %v4577, %v4817
        %v4882 = vadd.f32 %v4578, %v4818
        %v4883 = vadd.f32 %v4579, %v4819
        %v4884 = vadd.f32 %v4580, %v4820
        %v4885 = vadd.f32 %v4581, %v4821
        %v4886 = vadd.f32 %v4582, %v4822
        %v4887 = vadd.f32 %v4583, %v4823
        %v4888 = vadd.f32 %v4584, %v4824
        %v4889 = vadd.f32 %v4585, %v4825
        %v4890 = vadd.f32 %v4586, %v4826
        %v4891 = vadd.f32 %v4587, %v4827
        %v4892 = vadd.f32 %v4588, %v4828
        %v4893 = vadd.f32 %v4589, %v4829
        %v4894 = vadd.f32 %v4590, %v4830
        %v4895 = vadd.f32 %v4591, %v4831
        %v4896 = vadd.f32 %v4592, %v4832
        %v4897 = vadd.f32 %v4593, %v4833
        %v4898 = vadd.f32 %v4594, %v4834
        %v4899 = vadd.f32 %v4595, %v4835
        %v4900 = vadd.f32 %v4596, %v4836
        %v4901 = vadd.f32 %v4597, %v4837
        %v4902 = vadd.f32 %v4598, %v4838
        %v4903 = vadd.f32 %v4599, %v4839
        %v4904 = vadd.f32 %v4600, %v4840
        %v4905 = vadd.f32 %v4601, %v4841
        %v4906 = vadd.f32 %v4602, %v4842
        %v4907 = vadd.f32 %v4603, %v4843
        %v4908 = vadd.f32 %v4604, %v4844
        %v4909 = vadd.f32 %v4605, %v4845
        %v4910 = vadd.f32 %v4606, %v4846
        %v4911 = vadd.f32 %v4607, %v4847
        %v4912 = vadd.f32 %v4608, %v4848
        %v4913 = vadd.f32 %v4609, %v4849
        %v4914 = vadd.f32 %v4610, %v4850
        %v4915 = vadd.f32 %v4611, %v4851
        %v4916 = vadd.f32 %v4612, %v4852
        %v4917 = vadd.f32 %v4613, %v4853
        %v4918 = vadd.f32 %v4614, %v4854
        %v4919 = vadd.f32 %v4615, %v4855
        %v4920 = vadd.f32 %v4616, %v4856
        %v4921 = vadd.f32 %v4617, %v4857
        %v4922 = vadd.f32 %v4618, %v4858
        %v4923 = vadd.f32 %v4619, %v4859
        %v4924 = vadd.f32 %v4620, %v4860
        %4925 = vset.pattern.permute.xlu0 15
        %4926 = vperm.xlu0 %4925, %v338
        %v4927 = vpop.permute.xlu0 %4926
        %4928 = vset.pattern.permute.xlu0 15
        %4929 = vperm.xlu0 %4928, %v339
        %v4930 = vpop.permute.xlu0 %4929
        %4931 = vset.pattern.permute.xlu0 15
        %4932 = vperm.xlu0 %4931, %v340
        %v4933 = vpop.permute.xlu0 %4932
        %4934 = vset.pattern.permute.xlu0 15
        %4935 = vperm.xlu0 %4934, %v341
        %v4936 = vpop.permute.xlu0 %4935
        %4937 = vset.pattern.permute.xlu0 15
        %4938 = vperm.xlu0 %4937, %v342
        %v4939 = vpop.permute.xlu0 %4938
        %4940 = vset.pattern.permute.xlu0 15
        %4941 = vperm.xlu0 %4940, %v343
        %v4942 = vpop.permute.xlu0 %4941
        %4943 = vset.pattern.permute.xlu0 15
        %4944 = vperm.xlu0 %4943, %v344
        %v4945 = vpop.permute.xlu0 %4944
        %4946 = vset.pattern.permute.xlu0 15
        %4947 = vperm.xlu0 %4946, %v345
        %v4948 = vpop.permute.xlu0 %4947
        %4949 = vset.pattern.permute.xlu0 15
        %4950 = vperm.xlu0 %4949, %v346
        %v4951 = vpop.permute.xlu0 %4950
        %4952 = vset.pattern.permute.xlu0 15
        %4953 = vperm.xlu0 %4952, %v347
        %v4954 = vpop.permute.xlu0 %4953
        %4955 = vset.pattern.permute.xlu0 15
        %4956 = vperm.xlu0 %4955, %v348
        %v4957 = vpop.permute.xlu0 %4956
        %4958 = vset.pattern.permute.xlu0 15
        %4959 = vperm.xlu0 %4958, %v349
        %v4960 = vpop.permute.xlu0 %4959
        %4961 = vset.pattern.permute.xlu0 15
        %4962 = vperm.xlu0 %4961, %v350
        %v4963 = vpop.permute.xlu0 %4962
        %4964 = vset.pattern.permute.xlu0 15
        %4965 = vperm.xlu0 %4964, %v351
        %v4966 = vpop.permute.xlu0 %4965
        %4967 = vset.pattern.permute.xlu0 15
        %4968 = vperm.xlu0 %4967, %v352
        %v4969 = vpop.permute.xlu0 %4968
        %4970 = vset.pattern.permute.xlu0 15
        %4971 = vperm.xlu0 %4970, %v353
        %v4972 = vpop.permute.xlu0 %4971
        %vm4973 = vcmp.eq.s32.totalorder %v4927, %v361
        %vm4974 = vcmp.eq.s32.totalorder %v4927, %v362
        %vm4975 = vcmp.eq.s32.totalorder %v4927, %v363
        %vm4976 = vcmp.eq.s32.totalorder %v4927, %v364
        %vm4977 = vcmp.eq.s32.totalorder %v4930, %v361
        %vm4978 = vcmp.eq.s32.totalorder %v4930, %v362
        %vm4979 = vcmp.eq.s32.totalorder %v4930, %v363
        %vm4980 = vcmp.eq.s32.totalorder %v4930, %v364
        %vm4981 = vcmp.eq.s32.totalorder %v4933, %v361
        %vm4982 = vcmp.eq.s32.totalorder %v4933, %v362
        %vm4983 = vcmp.eq.s32.totalorder %v4933, %v363
        %vm4984 = vcmp.eq.s32.totalorder %v4933, %v364
        %vm4985 = vcmp.eq.s32.totalorder %v4936, %v361
        %vm4986 = vcmp.eq.s32.totalorder %v4936, %v362
        %vm4987 = vcmp.eq.s32.totalorder %v4936, %v363
        %vm4988 = vcmp.eq.s32.totalorder %v4936, %v364
        %vm4989 = vcmp.eq.s32.totalorder %v4939, %v361
        %vm4990 = vcmp.eq.s32.totalorder %v4939, %v362
        %vm4991 = vcmp.eq.s32.totalorder %v4939, %v363
        %vm4992 = vcmp.eq.s32.totalorder %v4939, %v364
        %vm4993 = vcmp.eq.s32.totalorder %v4942, %v361
        %vm4994 = vcmp.eq.s32.totalorder %v4942, %v362
        %vm4995 = vcmp.eq.s32.totalorder %v4942, %v363
        %vm4996 = vcmp.eq.s32.totalorder %v4942, %v364
        %vm4997 = vcmp.eq.s32.totalorder %v4945, %v361
        %vm4998 = vcmp.eq.s32.totalorder %v4945, %v362
        %vm4999 = vcmp.eq.s32.totalorder %v4945, %v363
        %vm5000 = vcmp.eq.s32.totalorder %v4945, %v364
        %vm5001 = vcmp.eq.s32.totalorder %v4948, %v361
        %vm5002 = vcmp.eq.s32.totalorder %v4948, %v362
        %vm5003 = vcmp.eq.s32.totalorder %v4948, %v363
        %vm5004 = vcmp.eq.s32.totalorder %v4948, %v364
        %vm5005 = vcmp.eq.s32.totalorder %v4951, %v361
        %vm5006 = vcmp.eq.s32.totalorder %v4951, %v362
        %vm5007 = vcmp.eq.s32.totalorder %v4951, %v363
        %vm5008 = vcmp.eq.s32.totalorder %v4951, %v364
        %vm5009 = vcmp.eq.s32.totalorder %v4954, %v361
        %vm5010 = vcmp.eq.s32.totalorder %v4954, %v362
        %vm5011 = vcmp.eq.s32.totalorder %v4954, %v363
        %vm5012 = vcmp.eq.s32.totalorder %v4954, %v364
        %vm5013 = vcmp.eq.s32.totalorder %v4957, %v361
        %vm5014 = vcmp.eq.s32.totalorder %v4957, %v362
        %vm5015 = vcmp.eq.s32.totalorder %v4957, %v363
        %vm5016 = vcmp.eq.s32.totalorder %v4957, %v364
        %vm5017 = vcmp.eq.s32.totalorder %v4960, %v361
        %vm5018 = vcmp.eq.s32.totalorder %v4960, %v362
        %vm5019 = vcmp.eq.s32.totalorder %v4960, %v363
        %vm5020 = vcmp.eq.s32.totalorder %v4960, %v364
        %vm5021 = vcmp.eq.s32.totalorder %v4963, %v361
        %vm5022 = vcmp.eq.s32.totalorder %v4963, %v362
        %vm5023 = vcmp.eq.s32.totalorder %v4963, %v363
        %vm5024 = vcmp.eq.s32.totalorder %v4963, %v364
        %vm5025 = vcmp.eq.s32.totalorder %v4966, %v361
        %vm5026 = vcmp.eq.s32.totalorder %v4966, %v362
        %vm5027 = vcmp.eq.s32.totalorder %v4966, %v363
        %vm5028 = vcmp.eq.s32.totalorder %v4966, %v364
        %vm5029 = vcmp.eq.s32.totalorder %v4969, %v361
        %vm5030 = vcmp.eq.s32.totalorder %v4969, %v362
        %vm5031 = vcmp.eq.s32.totalorder %v4969, %v363
        %vm5032 = vcmp.eq.s32.totalorder %v4969, %v364
        %vm5033 = vcmp.eq.s32.totalorder %v4972, %v361
        %vm5034 = vcmp.eq.s32.totalorder %v4972, %v362
        %vm5035 = vcmp.eq.s32.totalorder %v4972, %v363
        %vm5036 = vcmp.eq.s32.totalorder %v4972, %v364
        %v5037 = vsel %vm4973, 1, 0
        %v5038 = vsel %vm4974, 1, 0
        %v5039 = vsel %vm4975, 1, 0
        %v5040 = vsel %vm4976, 1, 0
        %v5041 = vsel %vm4977, 1, 0
        %v5042 = vsel %vm4978, 1, 0
        %v5043 = vsel %vm4979, 1, 0
        %v5044 = vsel %vm4980, 1, 0
        %v5045 = vsel %vm4981, 1, 0
        %v5046 = vsel %vm4982, 1, 0
        %v5047 = vsel %vm4983, 1, 0
        %v5048 = vsel %vm4984, 1, 0
        %v5049 = vsel %vm4985, 1, 0
        %v5050 = vsel %vm4986, 1, 0
        %v5051 = vsel %vm4987, 1, 0
        %v5052 = vsel %vm4988, 1, 0
        %v5053 = vsel %vm4989, 1, 0
        %v5054 = vsel %vm4990, 1, 0
        %v5055 = vsel %vm4991, 1, 0
        %v5056 = vsel %vm4992, 1, 0
        %v5057 = vsel %vm4993, 1, 0
        %v5058 = vsel %vm4994, 1, 0
        %v5059 = vsel %vm4995, 1, 0
        %v5060 = vsel %vm4996, 1, 0
        %v5061 = vsel %vm4997, 1, 0
        %v5062 = vsel %vm4998, 1, 0
        %v5063 = vsel %vm4999, 1, 0
        %v5064 = vsel %vm5000, 1, 0
        %v5065 = vsel %vm5001, 1, 0
        %v5066 = vsel %vm5002, 1, 0
        %v5067 = vsel %vm5003, 1, 0
        %v5068 = vsel %vm5004, 1, 0
        %v5069 = vsel %vm5005, 1, 0
        %v5070 = vsel %vm5006, 1, 0
        %v5071 = vsel %vm5007, 1, 0
        %v5072 = vsel %vm5008, 1, 0
        %v5073 = vsel %vm5009, 1, 0
        %v5074 = vsel %vm5010, 1, 0
        %v5075 = vsel %vm5011, 1, 0
        %v5076 = vsel %vm5012, 1, 0
        %v5077 = vsel %vm5013, 1, 0
        %v5078 = vsel %vm5014, 1, 0
        %v5079 = vsel %vm5015, 1, 0
        %v5080 = vsel %vm5016, 1, 0
        %v5081 = vsel %vm5017, 1, 0
        %v5082 = vsel %vm5018, 1, 0
        %v5083 = vsel %vm5019, 1, 0
        %v5084 = vsel %vm5020, 1, 0
        %v5085 = vsel %vm5021, 1, 0
        %v5086 = vsel %vm5022, 1, 0
        %v5087 = vsel %vm5023, 1, 0
        %v5088 = vsel %vm5024, 1, 0
        %v5089 = vsel %vm5025, 1, 0
        %v5090 = vsel %vm5026, 1, 0
        %v5091 = vsel %vm5027, 1, 0
        %v5092 = vsel %vm5028, 1, 0
        %v5093 = vsel %vm5029, 1, 0
        %v5094 = vsel %vm5030, 1, 0
        %v5095 = vsel %vm5031, 1, 0
        %v5096 = vsel %vm5032, 1, 0
        %v5097 = vsel %vm5033, 1, 0
        %v5098 = vsel %vm5034, 1, 0
        %v5099 = vsel %vm5035, 1, 0
        %v5100 = vsel %vm5036, 1, 0
        %v5101 = vcvt.s32.f32 %v5037
        %v5102 = vcvt.s32.f32 %v5038
        %v5103 = vcvt.s32.f32 %v5039
        %v5104 = vcvt.s32.f32 %v5040
        %v5105 = vcvt.s32.f32 %v5041
        %v5106 = vcvt.s32.f32 %v5042
        %v5107 = vcvt.s32.f32 %v5043
        %v5108 = vcvt.s32.f32 %v5044
        %v5109 = vcvt.s32.f32 %v5045
        %v5110 = vcvt.s32.f32 %v5046
        %v5111 = vcvt.s32.f32 %v5047
        %v5112 = vcvt.s32.f32 %v5048
        %v5113 = vcvt.s32.f32 %v5049
        %v5114 = vcvt.s32.f32 %v5050
        %v5115 = vcvt.s32.f32 %v5051
        %v5116 = vcvt.s32.f32 %v5052
        %v5117 = vcvt.s32.f32 %v5053
        %v5118 = vcvt.s32.f32 %v5054
        %v5119 = vcvt.s32.f32 %v5055
        %v5120 = vcvt.s32.f32 %v5056
        %v5121 = vcvt.s32.f32 %v5057
        %v5122 = vcvt.s32.f32 %v5058
        %v5123 = vcvt.s32.f32 %v5059
        %v5124 = vcvt.s32.f32 %v5060
        %v5125 = vcvt.s32.f32 %v5061
        %v5126 = vcvt.s32.f32 %v5062
        %v5127 = vcvt.s32.f32 %v5063
        %v5128 = vcvt.s32.f32 %v5064
        %v5129 = vcvt.s32.f32 %v5065
        %v5130 = vcvt.s32.f32 %v5066
        %v5131 = vcvt.s32.f32 %v5067
        %v5132 = vcvt.s32.f32 %v5068
        %v5133 = vcvt.s32.f32 %v5069
        %v5134 = vcvt.s32.f32 %v5070
        %v5135 = vcvt.s32.f32 %v5071
        %v5136 = vcvt.s32.f32 %v5072
        %v5137 = vcvt.s32.f32 %v5073
        %v5138 = vcvt.s32.f32 %v5074
        %v5139 = vcvt.s32.f32 %v5075
        %v5140 = vcvt.s32.f32 %v5076
        %v5141 = vcvt.s32.f32 %v5077
        %v5142 = vcvt.s32.f32 %v5078
        %v5143 = vcvt.s32.f32 %v5079
        %v5144 = vcvt.s32.f32 %v5080
        %v5145 = vcvt.s32.f32 %v5081
        %v5146 = vcvt.s32.f32 %v5082
        %v5147 = vcvt.s32.f32 %v5083
        %v5148 = vcvt.s32.f32 %v5084
        %v5149 = vcvt.s32.f32 %v5085
        %v5150 = vcvt.s32.f32 %v5086
        %v5151 = vcvt.s32.f32 %v5087
        %v5152 = vcvt.s32.f32 %v5088
        %v5153 = vcvt.s32.f32 %v5089
        %v5154 = vcvt.s32.f32 %v5090
        %v5155 = vcvt.s32.f32 %v5091
        %v5156 = vcvt.s32.f32 %v5092
        %v5157 = vcvt.s32.f32 %v5093
        %v5158 = vcvt.s32.f32 %v5094
        %v5159 = vcvt.s32.f32 %v5095
        %v5160 = vcvt.s32.f32 %v5096
        %v5161 = vcvt.s32.f32 %v5097
        %v5162 = vcvt.s32.f32 %v5098
        %v5163 = vcvt.s32.f32 %v5099
        %v5164 = vcvt.s32.f32 %v5100
        %v5165 = vadd.f32 %v4861, %v5101
        %v5166 = vadd.f32 %v4862, %v5102
        %v5167 = vadd.f32 %v4863, %v5103
        %v5168 = vadd.f32 %v4864, %v5104
        %v5169 = vadd.f32 %v4865, %v5105
        %v5170 = vadd.f32 %v4866, %v5106
        %v5171 = vadd.f32 %v4867, %v5107
        %v5172 = vadd.f32 %v4868, %v5108
        %v5173 = vadd.f32 %v4869, %v5109
        %v5174 = vadd.f32 %v4870, %v5110
        %v5175 = vadd.f32 %v4871, %v5111
        %v5176 = vadd.f32 %v4872, %v5112
        %v5177 = vadd.f32 %v4873, %v5113
        %v5178 = vadd.f32 %v4874, %v5114
        %v5179 = vadd.f32 %v4875, %v5115
        %v5180 = vadd.f32 %v4876, %v5116
        %v5181 = vadd.f32 %v4877, %v5117
        %v5182 = vadd.f32 %v4878, %v5118
        %v5183 = vadd.f32 %v4879, %v5119
        %v5184 = vadd.f32 %v4880, %v5120
        %v5185 = vadd.f32 %v4881, %v5121
        %v5186 = vadd.f32 %v4882, %v5122
        %v5187 = vadd.f32 %v4883, %v5123
        %v5188 = vadd.f32 %v4884, %v5124
        %v5189 = vadd.f32 %v4885, %v5125
        %v5190 = vadd.f32 %v4886, %v5126
        %v5191 = vadd.f32 %v4887, %v5127
        %v5192 = vadd.f32 %v4888, %v5128
        %v5193 = vadd.f32 %v4889, %v5129
        %v5194 = vadd.f32 %v4890, %v5130
        %v5195 = vadd.f32 %v4891, %v5131
        %v5196 = vadd.f32 %v4892, %v5132
        %v5197 = vadd.f32 %v4893, %v5133
        %v5198 = vadd.f32 %v4894, %v5134
        %v5199 = vadd.f32 %v4895, %v5135
        %v5200 = vadd.f32 %v4896, %v5136
        %v5201 = vadd.f32 %v4897, %v5137
        %v5202 = vadd.f32 %v4898, %v5138
        %v5203 = vadd.f32 %v4899, %v5139
        %v5204 = vadd.f32 %v4900, %v5140
        %v5205 = vadd.f32 %v4901, %v5141
        %v5206 = vadd.f32 %v4902, %v5142
        %v5207 = vadd.f32 %v4903, %v5143
        %v5208 = vadd.f32 %v4904, %v5144
        %v5209 = vadd.f32 %v4905, %v5145
        %v5210 = vadd.f32 %v4906, %v5146
        %v5211 = vadd.f32 %v4907, %v5147
        %v5212 = vadd.f32 %v4908, %v5148
        %v5213 = vadd.f32 %v4909, %v5149
        %v5214 = vadd.f32 %v4910, %v5150
        %v5215 = vadd.f32 %v4911, %v5151
        %v5216 = vadd.f32 %v4912, %v5152
        %v5217 = vadd.f32 %v4913, %v5153
        %v5218 = vadd.f32 %v4914, %v5154
        %v5219 = vadd.f32 %v4915, %v5155
        %v5220 = vadd.f32 %v4916, %v5156
        %v5221 = vadd.f32 %v4917, %v5157
        %v5222 = vadd.f32 %v4918, %v5158
        %v5223 = vadd.f32 %v4919, %v5159
        %v5224 = vadd.f32 %v4920, %v5160
        %v5225 = vadd.f32 %v4921, %v5161
        %v5226 = vadd.f32 %v4922, %v5162
        %v5227 = vadd.f32 %v4923, %v5163
        %v5228 = vadd.f32 %v4924, %v5164
        %v5229 = vmul.f32 %v5165, 0.0625
        %v5230 = vmul.f32 %v5166, 0.0625
        %v5231 = vmul.f32 %v5167, 0.0625
        %v5232 = vmul.f32 %v5168, 0.0625
        %v5233 = vmul.f32 %v5169, 0.0625
        %v5234 = vmul.f32 %v5170, 0.0625
        %v5235 = vmul.f32 %v5171, 0.0625
        %v5236 = vmul.f32 %v5172, 0.0625
        %v5237 = vmul.f32 %v5173, 0.0625
        %v5238 = vmul.f32 %v5174, 0.0625
        %v5239 = vmul.f32 %v5175, 0.0625
        %v5240 = vmul.f32 %v5176, 0.0625
        %v5241 = vmul.f32 %v5177, 0.0625
        %v5242 = vmul.f32 %v5178, 0.0625
        %v5243 = vmul.f32 %v5179, 0.0625
        %v5244 = vmul.f32 %v5180, 0.0625
        %v5245 = vmul.f32 %v5181, 0.0625
        %v5246 = vmul.f32 %v5182, 0.0625
        %v5247 = vmul.f32 %v5183, 0.0625
        %v5248 = vmul.f32 %v5184, 0.0625
        %v5249 = vmul.f32 %v5185, 0.0625
        %v5250 = vmul.f32 %v5186, 0.0625
        %v5251 = vmul.f32 %v5187, 0.0625
        %v5252 = vmul.f32 %v5188, 0.0625
        %v5253 = vmul.f32 %v5189, 0.0625
        %v5254 = vmul.f32 %v5190, 0.0625
        %v5255 = vmul.f32 %v5191, 0.0625
        %v5256 = vmul.f32 %v5192, 0.0625
        %v5257 = vmul.f32 %v5193, 0.0625
        %v5258 = vmul.f32 %v5194, 0.0625
        %v5259 = vmul.f32 %v5195, 0.0625
        %v5260 = vmul.f32 %v5196, 0.0625
        %v5261 = vmul.f32 %v5197, 0.0625
        %v5262 = vmul.f32 %v5198, 0.0625
        %v5263 = vmul.f32 %v5199, 0.0625
        %v5264 = vmul.f32 %v5200, 0.0625
        %v5265 = vmul.f32 %v5201, 0.0625
        %v5266 = vmul.f32 %v5202, 0.0625
        %v5267 = vmul.f32 %v5203, 0.0625
        %v5268 = vmul.f32 %v5204, 0.0625
        %v5269 = vmul.f32 %v5205, 0.0625
        %v5270 = vmul.f32 %v5206, 0.0625
        %v5271 = vmul.f32 %v5207, 0.0625
        %v5272 = vmul.f32 %v5208, 0.0625
        %v5273 = vmul.f32 %v5209, 0.0625
        %v5274 = vmul.f32 %v5210, 0.0625
        %v5275 = vmul.f32 %v5211, 0.0625
        %v5276 = vmul.f32 %v5212, 0.0625
        %v5277 = vmul.f32 %v5213, 0.0625
        %v5278 = vmul.f32 %v5214, 0.0625
        %v5279 = vmul.f32 %v5215, 0.0625
        %v5280 = vmul.f32 %v5216, 0.0625
        %v5281 = vmul.f32 %v5217, 0.0625
        %v5282 = vmul.f32 %v5218, 0.0625
        %v5283 = vmul.f32 %v5219, 0.0625
        %v5284 = vmul.f32 %v5220, 0.0625
        %v5285 = vmul.f32 %v5221, 0.0625
        %v5286 = vmul.f32 %v5222, 0.0625
        %v5287 = vmul.f32 %v5223, 0.0625
        %v5288 = vmul.f32 %v5224, 0.0625
        %v5289 = vmul.f32 %v5225, 0.0625
        %v5290 = vmul.f32 %v5226, 0.0625
        %v5291 = vmul.f32 %v5227, 0.0625
        %v5292 = vmul.f32 %v5228, 0.0625
        %v5293 = vpack.c.bf16 %v5233, %v5229
        %v5294 = vpack.c.bf16 %v5234, %v5230
        %v5295 = vpack.c.bf16 %v5235, %v5231
        %v5296 = vpack.c.bf16 %v5236, %v5232
        %v5297 = vpack.c.bf16 %v5241, %v5237
        %v5298 = vpack.c.bf16 %v5242, %v5238
        %v5299 = vpack.c.bf16 %v5243, %v5239
        %v5300 = vpack.c.bf16 %v5244, %v5240
        %v5301 = vpack.c.bf16 %v5249, %v5245
        %v5302 = vpack.c.bf16 %v5250, %v5246
        %v5303 = vpack.c.bf16 %v5251, %v5247
        %v5304 = vpack.c.bf16 %v5252, %v5248
        %v5305 = vpack.c.bf16 %v5257, %v5253
        %v5306 = vpack.c.bf16 %v5258, %v5254
        %v5307 = vpack.c.bf16 %v5259, %v5255
        %v5308 = vpack.c.bf16 %v5260, %v5256
        %v5309 = vpack.c.bf16 %v5265, %v5261
        %v5310 = vpack.c.bf16 %v5266, %v5262
        %v5311 = vpack.c.bf16 %v5267, %v5263
        %v5312 = vpack.c.bf16 %v5268, %v5264
        %v5313 = vpack.c.bf16 %v5273, %v5269
        %v5314 = vpack.c.bf16 %v5274, %v5270
        %v5315 = vpack.c.bf16 %v5275, %v5271
        %v5316 = vpack.c.bf16 %v5276, %v5272
        %v5317 = vpack.c.bf16 %v5281, %v5277
        %v5318 = vpack.c.bf16 %v5282, %v5278
        %v5319 = vpack.c.bf16 %v5283, %v5279
        %v5320 = vpack.c.bf16 %v5284, %v5280
        %v5321 = vpack.c.bf16 %v5289, %v5285
        %v5322 = vpack.c.bf16 %v5290, %v5286
        %v5323 = vpack.c.bf16 %v5291, %v5287
        %v5324 = vpack.c.bf16 %v5292, %v5288
        %v5325 = vld [vmem:[#allocation2] sm:$0xff]
        %v5326 = vld [vmem:[#allocation2 + $0x8] sm:$0xff]
        %v5327 = vld [vmem:[#allocation2 + $0x10] sm:$0xff]
        %v5328 = vld [vmem:[#allocation2 + $0x18] sm:$0xff]
        %v5329 = vld [vmem:[#allocation2 + $0x20] sm:$0xff]
        %v5330 = vld [vmem:[#allocation2 + $0x28] sm:$0xff]
        %v5331 = vld [vmem:[#allocation2 + $0x30] sm:$0xff]
        %v5332 = vld [vmem:[#allocation2 + $0x38] sm:$0xff]
        %v5333 = vld [vmem:[#allocation2 + $0x40] sm:$0xff]
        %v5334 = vld [vmem:[#allocation2 + $0x48] sm:$0xff]
        %v5335 = vld [vmem:[#allocation2 + $0x50] sm:$0xff]
        %v5336 = vld [vmem:[#allocation2 + $0x58] sm:$0xff]
        %v5337 = vld [vmem:[#allocation2 + $0x60] sm:$0xff]
        %v5338 = vld [vmem:[#allocation2 + $0x68] sm:$0xff]
        %v5339 = vld [vmem:[#allocation2 + $0x70] sm:$0xff]
        %v5340 = vld [vmem:[#allocation2 + $0x78] sm:$0xff]
        %v5341 = vld [vmem:[%s314] sm:$0xf]
        %v5342 = vld [vmem:[%s314 + $0x4] sm:$0xf]
        %v5343 = vld [vmem:[%s314 + $0x8] sm:$0xf]
        %v5344 = vld [vmem:[%s314 + $0xc] sm:$0xf]
        %v5345 = vld [vmem:[%s314 + $0x10] sm:$0xf]
        %v5346 = vld [vmem:[%s314 + $0x14] sm:$0xf]
        %v5347 = vld [vmem:[%s314 + $0x18] sm:$0xf]
        %v5348 = vld [vmem:[%s314 + $0x1c] sm:$0xf]
        %v5349 = vld [vmem:[%s314 + $0x20] sm:$0xf]
        %v5350 = vld [vmem:[%s314 + $0x24] sm:$0xf]
        %v5351 = vld [vmem:[%s314 + $0x28] sm:$0xf]
        %v5352 = vld [vmem:[%s314 + $0x2c] sm:$0xf]
        %v5353 = vld [vmem:[%s314 + $0x30] sm:$0xf]
        %v5354 = vld [vmem:[%s314 + $0x34] sm:$0xf]
        %v5355 = vld [vmem:[%s314 + $0x38] sm:$0xf]
        %v5356 = vld [vmem:[%s314 + $0x3c] sm:$0xf]
        %v5357 = vld [vmem:[%s314 + $0x40] sm:$0xf]
        %v5358 = vld [vmem:[%s314 + $0x44] sm:$0xf]
        %v5359 = vld [vmem:[%s314 + $0x48] sm:$0xf]
        %v5360 = vld [vmem:[%s314 + $0x4c] sm:$0xf]
        %v5361 = vld [vmem:[%s314 + $0x50] sm:$0xf]
        %v5362 = vld [vmem:[%s314 + $0x54] sm:$0xf]
        %v5363 = vld [vmem:[%s314 + $0x58] sm:$0xf]
        %v5364 = vld [vmem:[%s314 + $0x5c] sm:$0xf]
        %v5365 = vld [vmem:[%s314 + $0x60] sm:$0xf]
        %v5366 = vld [vmem:[%s314 + $0x64] sm:$0xf]
        %v5367 = vld [vmem:[%s314 + $0x68] sm:$0xf]
        %v5368 = vld [vmem:[%s314 + $0x6c] sm:$0xf]
        %v5369 = vld [vmem:[%s314 + $0x70] sm:$0xf]
        %v5370 = vld [vmem:[%s314 + $0x74] sm:$0xf]
        %v5371 = vld [vmem:[%s314 + $0x78] sm:$0xf]
        %v5372 = vld [vmem:[%s314 + $0x7c] sm:$0xf]
        %v5373 = vld [vmem:[%s314 + $0x80] sm:$0xf]
        %v5374 = vld [vmem:[%s314 + $0x84] sm:$0xf]
        %v5375 = vld [vmem:[%s314 + $0x88] sm:$0xf]
        %v5376 = vld [vmem:[%s314 + $0x8c] sm:$0xf]
        %v5377 = vld [vmem:[%s314 + $0x90] sm:$0xf]
        %v5378 = vld [vmem:[%s314 + $0x94] sm:$0xf]
        %v5379 = vld [vmem:[%s314 + $0x98] sm:$0xf]
        %v5380 = vld [vmem:[%s314 + $0x9c] sm:$0xf]
        %v5381 = vld [vmem:[%s314 + $0xa0] sm:$0xf]
        %v5382 = vld [vmem:[%s314 + $0xa4] sm:$0xf]
        %v5383 = vld [vmem:[%s314 + $0xa8] sm:$0xf]
        %v5384 = vld [vmem:[%s314 + $0xac] sm:$0xf]
        %v5385 = vld [vmem:[%s314 + $0xb0] sm:$0xf]
        %v5386 = vld [vmem:[%s314 + $0xb4] sm:$0xf]
        %v5387 = vld [vmem:[%s314 + $0xb8] sm:$0xf]
        %v5388 = vld [vmem:[%s314 + $0xbc] sm:$0xf]
        %v5389 = vld [vmem:[%s314 + $0xc0] sm:$0xf]
        %v5390 = vld [vmem:[%s314 + $0xc4] sm:$0xf]
        %v5391 = vld [vmem:[%s314 + $0xc8] sm:$0xf]
        %v5392 = vld [vmem:[%s314 + $0xcc] sm:$0xf]
        %v5393 = vld [vmem:[%s314 + $0xd0] sm:$0xf]
        %v5394 = vld [vmem:[%s314 + $0xd4] sm:$0xf]
        %v5395 = vld [vmem:[%s314 + $0xd8] sm:$0xf]
        %v5396 = vld [vmem:[%s314 + $0xdc] sm:$0xf]
        %v5397 = vld [vmem:[%s314 + $0xe0] sm:$0xf]
        %v5398 = vld [vmem:[%s314 + $0xe4] sm:$0xf]
        %v5399 = vld [vmem:[%s314 + $0xe8] sm:$0xf]
        %v5400 = vld [vmem:[%s314 + $0xec] sm:$0xf]
        %v5401 = vld [vmem:[%s314 + $0xf0] sm:$0xf]
        %v5402 = vld [vmem:[%s314 + $0xf4] sm:$0xf]
        %v5403 = vld [vmem:[%s314 + $0xf8] sm:$0xf]
        %v5404 = vld [vmem:[%s314 + $0xfc] sm:$0xf]
        %v5469 = vunpack.c.l.b16 %v5341
        %v5470 = vunpack.c.l.b16 %v5342
        %v5471 = vunpack.c.l.b16 %v5343
        %v5472 = vunpack.c.l.b16 %v5344
        %v5473 = vunpack.c.l.b16 %v5345
        %v5474 = vunpack.c.l.b16 %v5346
        %v5475 = vunpack.c.l.b16 %v5347
        %v5476 = vunpack.c.l.b16 %v5348
        %v5477 = vunpack.c.l.b16 %v5349
        %v5478 = vunpack.c.l.b16 %v5350
        %v5479 = vunpack.c.l.b16 %v5351
        %v5480 = vunpack.c.l.b16 %v5352
        %v5481 = vunpack.c.l.b16 %v5353
        %v5482 = vunpack.c.l.b16 %v5354
        %v5483 = vunpack.c.l.b16 %v5355
        %v5484 = vunpack.c.l.b16 %v5356
        %v5485 = vunpack.c.l.b16 %v5357
        %v5486 = vunpack.c.l.b16 %v5358
        %v5487 = vunpack.c.l.b16 %v5359
        %v5488 = vunpack.c.l.b16 %v5360
        %v5489 = vunpack.c.l.b16 %v5361
        %v5490 = vunpack.c.l.b16 %v5362
        %v5491 = vunpack.c.l.b16 %v5363
        %v5492 = vunpack.c.l.b16 %v5364
        %v5493 = vunpack.c.l.b16 %v5365
        %v5494 = vunpack.c.l.b16 %v5366
        %v5495 = vunpack.c.l.b16 %v5367
        %v5496 = vunpack.c.l.b16 %v5368
        %v5497 = vunpack.c.l.b16 %v5369
        %v5498 = vunpack.c.l.b16 %v5370
        %v5499 = vunpack.c.l.b16 %v5371
        %v5500 = vunpack.c.l.b16 %v5372
        %v5501 = vunpack.c.l.b16 %v5373
        %v5502 = vunpack.c.l.b16 %v5374
        %v5503 = vunpack.c.l.b16 %v5375
        %v5504 = vunpack.c.l.b16 %v5376
        %v5505 = vunpack.c.l.b16 %v5377
        %v5506 = vunpack.c.l.b16 %v5378
        %v5507 = vunpack.c.l.b16 %v5379
        %v5508 = vunpack.c.l.b16 %v5380
        %v5509 = vunpack.c.l.b16 %v5381
        %v5510 = vunpack.c.l.b16 %v5382
        %v5511 = vunpack.c.l.b16 %v5383
        %v5512 = vunpack.c.l.b16 %v5384
        %v5513 = vunpack.c.l.b16 %v5385
        %v5514 = vunpack.c.l.b16 %v5386
        %v5515 = vunpack.c.l.b16 %v5387
        %v5516 = vunpack.c.l.b16 %v5388
        %v5517 = vunpack.c.l.b16 %v5389
        %v5518 = vunpack.c.l.b16 %v5390
        %v5519 = vunpack.c.l.b16 %v5391
        %v5520 = vunpack.c.l.b16 %v5392
        %v5521 = vunpack.c.l.b16 %v5393
        %v5522 = vunpack.c.l.b16 %v5394
        %v5523 = vunpack.c.l.b16 %v5395
        %v5524 = vunpack.c.l.b16 %v5396
        %v5525 = vunpack.c.l.b16 %v5397
        %v5526 = vunpack.c.l.b16 %v5398
        %v5527 = vunpack.c.l.b16 %v5399
        %v5528 = vunpack.c.l.b16 %v5400
        %v5529 = vunpack.c.l.b16 %v5401
        %v5530 = vunpack.c.l.b16 %v5402
        %v5531 = vunpack.c.l.b16 %v5403
        %v5532 = vunpack.c.l.b16 %v5404
        %v5533 = vpack.c.b16 %v5470, %v5469
        %v5534 = vpack.c.b16 %v5472, %v5471
        %v5535 = vpack.c.b16 %v5474, %v5473
        %v5536 = vpack.c.b16 %v5476, %v5475
        %v5537 = vpack.c.b16 %v5478, %v5477
        %v5538 = vpack.c.b16 %v5480, %v5479
        %v5539 = vpack.c.b16 %v5482, %v5481
        %v5540 = vpack.c.b16 %v5484, %v5483
        %v5541 = vpack.c.b16 %v5486, %v5485
        %v5542 = vpack.c.b16 %v5488, %v5487
        %v5543 = vpack.c.b16 %v5490, %v5489
        %v5544 = vpack.c.b16 %v5492, %v5491
        %v5545 = vpack.c.b16 %v5494, %v5493
        %v5546 = vpack.c.b16 %v5496, %v5495
        %v5547 = vpack.c.b16 %v5498, %v5497
        %v5548 = vpack.c.b16 %v5500, %v5499
        %v5549 = vpack.c.b16 %v5502, %v5501
        %v5550 = vpack.c.b16 %v5504, %v5503
        %v5551 = vpack.c.b16 %v5506, %v5505
        %v5552 = vpack.c.b16 %v5508, %v5507
        %v5553 = vpack.c.b16 %v5510, %v5509
        %v5554 = vpack.c.b16 %v5512, %v5511
        %v5555 = vpack.c.b16 %v5514, %v5513
        %v5556 = vpack.c.b16 %v5516, %v5515
        %v5557 = vpack.c.b16 %v5518, %v5517
        %v5558 = vpack.c.b16 %v5520, %v5519
        %v5559 = vpack.c.b16 %v5522, %v5521
        %v5560 = vpack.c.b16 %v5524, %v5523
        %v5561 = vpack.c.b16 %v5526, %v5525
        %v5562 = vpack.c.b16 %v5528, %v5527
        %v5563 = vpack.c.b16 %v5530, %v5529
        %v5564 = vpack.c.b16 %v5532, %v5531
        %5597 = vmatprep.subr.bf16.mxu0 0
        %5598 = vmatpush1.bf16.msra.mxu0 %v5533
        %5599 = vmatprep.subr.bf16.mxu0 0
        %5600 = vmatpush1.bf16.msra.mxu0 %v5534
        %5601 = vmatprep.subr.bf16.mxu0 0
        %5602 = vmatpush1.bf16.msra.mxu0 %v5535
        %5603 = vmatprep.subr.bf16.mxu0 0
        %5604 = vmatpush1.bf16.msra.mxu0 %v5536
        %5605 = vmatprep.subr.bf16.mxu0 0
        %5606 = vmatpush1.bf16.msra.mxu0 %v5537
        %5607 = vmatprep.subr.bf16.mxu0 0
        %5608 = vmatpush1.bf16.msra.mxu0 %v5538
        %5609 = vmatprep.subr.bf16.mxu0 0
        %5610 = vmatpush1.bf16.msra.mxu0 %v5539
        %5611 = vmatprep.subr.bf16.mxu0 0
        %5612 = vmatpush1.bf16.msra.mxu0 %v5540
        %5613 = vmatprep.subr.bf16.mxu0 0
        %5614 = vmatpush1.bf16.msra.mxu0 %v5541
        %5615 = vmatprep.subr.bf16.mxu0 0
        %5616 = vmatpush1.bf16.msra.mxu0 %v5542
        %5617 = vmatprep.subr.bf16.mxu0 0
        %5618 = vmatpush1.bf16.msra.mxu0 %v5543
        %5619 = vmatprep.subr.bf16.mxu0 0
        %5620 = vmatpush1.bf16.msra.mxu0 %v5544
        %5621 = vmatprep.subr.bf16.mxu0 0
        %5622 = vmatpush1.bf16.msra.mxu0 %v5545
        %5623 = vmatprep.subr.bf16.mxu0 0
        %5624 = vmatpush1.bf16.msra.mxu0 %v5546
        %5625 = vmatprep.subr.bf16.mxu0 0
        %5626 = vmatpush1.bf16.msra.mxu0 %v5547
        %5627 = vmatprep.subr.bf16.mxu0 0
        %5628 = vmatpush1.bf16.msra.mxu0 %v5548
        %5629 = vmatprep.mubr.bf16.mxu0 %v5294
        %5630 = vmatmul.mubr.bf16.gmra.mrb[0].mxu0 %v5293
        %v5631 = vpop.f32.mrb[0].mxu0
        %v5632 = vadd.f32 0.0, %v5631
        %v5633 = vpop.f32.mrb[0].mxu0
        %v5634 = vpop.f32.mrb[0].mxu0
        %v5635 = vadd.f32 0.0, %v5634
        %v5636 = vpop.f32.mrb[0].mxu0
        %5637 = vmatprep.mubr.bf16.mxu0 %v5298
        %5638 = vmatmul.mubr.bf16.gmra.mrb[0].mxu0 %v5297
        %v5639 = vpop.f32.mrb[0].mxu0
        %v5640 = vadd.f32 0.0, %v5639
        %v5641 = vpop.f32.mrb[0].mxu0
        %v5642 = vpop.f32.mrb[0].mxu0
        %v5643 = vadd.f32 0.0, %v5642
        %v5644 = vpop.f32.mrb[0].mxu0
        %5645 = vmatprep.mubr.bf16.mxu0 %v5302
        %5646 = vmatmul.mubr.bf16.gmra.mrb[0].mxu0 %v5301
        %v5647 = vpop.f32.mrb[0].mxu0
        %v5648 = vadd.f32 0.0, %v5647
        %v5649 = vpop.f32.mrb[0].mxu0
        %v5650 = vpop.f32.mrb[0].mxu0
        %v5651 = vadd.f32 0.0, %v5650
        %v5652 = vpop.f32.mrb[0].mxu0
        %5653 = vmatprep.mubr.bf16.mxu0 %v5306
        %5654 = vmatmul.mubr.bf16.gmra.mrb[0].mxu0 %v5305
        %v5655 = vpop.f32.mrb[0].mxu0
        %v5656 = vadd.f32 0.0, %v5655
        %v5657 = vpop.f32.mrb[0].mxu0
        %v5658 = vpop.f32.mrb[0].mxu0
        %v5659 = vadd.f32 0.0, %v5658
        %v5660 = vpop.f32.mrb[0].mxu0
        %5661 = vmatprep.mubr.bf16.mxu0 %v5310
        %5662 = vmatmul.mubr.bf16.gmra.mrb[0].mxu0 %v5309
        %v5663 = vpop.f32.mrb[0].mxu0
        %v5664 = vadd.f32 0.0, %v5663
        %v5665 = vpop.f32.mrb[0].mxu0
        %v5666 = vpop.f32.mrb[0].mxu0
        %v5667 = vadd.f32 0.0, %v5666
        %v5668 = vpop.f32.mrb[0].mxu0
        %5669 = vmatprep.mubr.bf16.mxu0 %v5314
        %5670 = vmatmul.mubr.bf16.gmra.mrb[0].mxu0 %v5313
        %v5671 = vpop.f32.mrb[0].mxu0
        %v5672 = vadd.f32 0.0, %v5671
        %v5673 = vpop.f32.mrb[0].mxu0
        %v5674 = vpop.f32.mrb[0].mxu0
        %v5675 = vadd.f32 0.0, %v5674
        %v5676 = vpop.f32.mrb[0].mxu0
        %5677 = vmatprep.mubr.bf16.mxu0 %v5318
        %5678 = vmatmul.mubr.bf16.gmra.mrb[0].mxu0 %v5317
        %v5679 = vpop.f32.mrb[0].mxu0
        %v5680 = vadd.f32 0.0, %v5679
        %v5681 = vpop.f32.mrb[0].mxu0
        %v5682 = vpop.f32.mrb[0].mxu0
        %v5683 = vadd.f32 0.0, %v5682
        %v5684 = vpop.f32.mrb[0].mxu0
        %5685 = vmatprep.mubr.bf16.mxu0 %v5322
        %5686 = vmatmul.mubr.bf16.gmra.mrb[0].mxu0 %v5321
        %v5687 = vpop.f32.mrb[0].mxu0
        %v5688 = vadd.f32 0.0, %v5687
        %v5689 = vpop.f32.mrb[0].mxu0
        %v5690 = vpop.f32.mrb[0].mxu0
        %v5691 = vadd.f32 0.0, %v5690
        %v5692 = vpop.f32.mrb[0].mxu0
        %5693 = vdwg.mxu0
        %5694 = vmatprep.subr.bf16.mxu0 0
        %5695 = vmatpush1.bf16.msra.mxu0 %v5549
        %5696 = vmatprep.subr.bf16.mxu0 0
        %5697 = vmatpush1.bf16.msra.mxu0 %v5550
        %5698 = vmatprep.subr.bf16.mxu0 0
        %5699 = vmatpush1.bf16.msra.mxu0 %v5551
        %5700 = vmatprep.subr.bf16.mxu0 0
        %5701 = vmatpush1.bf16.msra.mxu0 %v5552
        %5702 = vmatprep.subr.bf16.mxu0 0
        %5703 = vmatpush1.bf16.msra.mxu0 %v5553
        %5704 = vmatprep.subr.bf16.mxu0 0
        %5705 = vmatpush1.bf16.msra.mxu0 %v5554
        %5706 = vmatprep.subr.bf16.mxu0 0
        %5707 = vmatpush1.bf16.msra.mxu0 %v5555
        %5708 = vmatprep.subr.bf16.mxu0 0
        %5709 = vmatpush1.bf16.msra.mxu0 %v5556
        %5710 = vmatprep.subr.bf16.mxu0 0
        %5711 = vmatpush1.bf16.msra.mxu0 %v5557
        %5712 = vmatprep.subr.bf16.mxu0 0
        %5713 = vmatpush1.bf16.msra.mxu0 %v5558
        %5714 = vmatprep.subr.bf16.mxu0 0
        %5715 = vmatpush1.bf16.msra.mxu0 %v5559
        %5716 = vmatprep.subr.bf16.mxu0 0
        %5717 = vmatpush1.bf16.msra.mxu0 %v5560
        %5718 = vmatprep.subr.bf16.mxu0 0
        %5719 = vmatpush1.bf16.msra.mxu0 %v5561
        %5720 = vmatprep.subr.bf16.mxu0 0
        %5721 = vmatpush1.bf16.msra.mxu0 %v5562
        %5722 = vmatprep.subr.bf16.mxu0 0
        %5723 = vmatpush1.bf16.msra.mxu0 %v5563
        %5724 = vmatprep.subr.bf16.mxu0 0
        %5725 = vmatpush1.bf16.msra.mxu0 %v5564
        %5726 = vmatprep.mubr.bf16.mxu0 %v5296
        %5727 = vmatmul.mubr.bf16.gmra.mrb[0].mxu0 %v5295
        %v5728 = vpop.f32.mrb[0].mxu0
        %v5729 = vadd.f32 %v5632, %v5728
        %v5730 = vpop.f32.mrb[0].mxu0
        %v5731 = vpop.f32.mrb[0].mxu0
        %v5732 = vadd.f32 %v5635, %v5731
        %v5733 = vpop.f32.mrb[0].mxu0
        %5734 = vmatprep.mubr.bf16.mxu0 %v5300
        %5735 = vmatmul.mubr.bf16.gmra.mrb[0].mxu0 %v5299
        %v5736 = vpop.f32.mrb[0].mxu0
        %v5737 = vadd.f32 %v5640, %v5736
        %v5738 = vpop.f32.mrb[0].mxu0
        %v5739 = vpop.f32.mrb[0].mxu0
        %v5740 = vadd.f32 %v5643, %v5739
        %v5741 = vpop.f32.mrb[0].mxu0
        %5742 = vmatprep.mubr.bf16.mxu0 %v5304
        %5743 = vmatmul.mubr.bf16.gmra.mrb[0].mxu0 %v5303
        %v5744 = vpop.f32.mrb[0].mxu0
        %v5745 = vadd.f32 %v5648, %v5744
        %v5746 = vpop.f32.mrb[0].mxu0
        %v5747 = vpop.f32.mrb[0].mxu0
        %v5748 = vadd.f32 %v5651, %v5747
        %v5749 = vpop.f32.mrb[0].mxu0
        %5750 = vmatprep.mubr.bf16.mxu0 %v5308
        %5751 = vmatmul.mubr.bf16.gmra.mrb[0].mxu0 %v5307
        %v5752 = vpop.f32.mrb[0].mxu0
        %v5753 = vadd.f32 %v5656, %v5752
        %v5754 = vpop.f32.mrb[0].mxu0
        %v5755 = vpop.f32.mrb[0].mxu0
        %v5756 = vadd.f32 %v5659, %v5755
        %v5757 = vpop.f32.mrb[0].mxu0
        %5758 = vmatprep.mubr.bf16.mxu0 %v5312
        %5759 = vmatmul.mubr.bf16.gmra.mrb[0].mxu0 %v5311
        %v5760 = vpop.f32.mrb[0].mxu0
        %v5761 = vadd.f32 %v5664, %v5760
        %v5762 = vpop.f32.mrb[0].mxu0
        %v5763 = vpop.f32.mrb[0].mxu0
        %v5764 = vadd.f32 %v5667, %v5763
        %v5765 = vpop.f32.mrb[0].mxu0
        %5766 = vmatprep.mubr.bf16.mxu0 %v5316
        %5767 = vmatmul.mubr.bf16.gmra.mrb[0].mxu0 %v5315
        %v5768 = vpop.f32.mrb[0].mxu0
        %v5769 = vadd.f32 %v5672, %v5768
        %v5770 = vpop.f32.mrb[0].mxu0
        %v5771 = vpop.f32.mrb[0].mxu0
        %v5772 = vadd.f32 %v5675, %v5771
        %v5773 = vpop.f32.mrb[0].mxu0
        %5774 = vmatprep.mubr.bf16.mxu0 %v5320
        %5775 = vmatmul.mubr.bf16.gmra.mrb[0].mxu0 %v5319
        %v5776 = vpop.f32.mrb[0].mxu0
        %v5777 = vadd.f32 %v5680, %v5776
        %v5778 = vpop.f32.mrb[0].mxu0
        %v5779 = vpop.f32.mrb[0].mxu0
        %v5780 = vadd.f32 %v5683, %v5779
        %v5781 = vpop.f32.mrb[0].mxu0
        %5782 = vmatprep.mubr.bf16.mxu0 %v5324
        %5783 = vmatmul.mubr.bf16.gmra.mrb[0].mxu0 %v5323
        %v5784 = vpop.f32.mrb[0].mxu0
        %v5785 = vadd.f32 %v5688, %v5784
        %v5786 = vpop.f32.mrb[0].mxu0
        %v5787 = vpop.f32.mrb[0].mxu0
        %v5788 = vadd.f32 %v5691, %v5787
        %v5789 = vpop.f32.mrb[0].mxu0
        %5790 = vdwg.mxu0
        %v5791 = vadd.f32 %v5325, %v5729
        %v5792 = vadd.f32 %v5326, %v5732
        %v5793 = vadd.f32 %v5327, %v5737
        %v5794 = vadd.f32 %v5328, %v5740
        %v5795 = vadd.f32 %v5329, %v5745
        %v5796 = vadd.f32 %v5330, %v5748
        %v5797 = vadd.f32 %v5331, %v5753
        %v5798 = vadd.f32 %v5332, %v5756
        %v5799 = vadd.f32 %v5333, %v5761
        %v5800 = vadd.f32 %v5334, %v5764
        %v5801 = vadd.f32 %v5335, %v5769
        %v5802 = vadd.f32 %v5336, %v5772
        %v5803 = vadd.f32 %v5337, %v5777
        %v5804 = vadd.f32 %v5338, %v5780
        %v5805 = vadd.f32 %v5339, %v5785
        %v5806 = vadd.f32 %v5340, %v5788
        %5807 = vst [vmem:[#allocation2] sm:$0xff] %v5791
        %5808 = vst [vmem:[#allocation2 + $0x8] sm:$0xff] %v5792
        %5809 = vst [vmem:[#allocation2 + $0x10] sm:$0xff] %v5793
        %5810 = vst [vmem:[#allocation2 + $0x18] sm:$0xff] %v5794
        %5811 = vst [vmem:[#allocation2 + $0x20] sm:$0xff] %v5795
        %5812 = vst [vmem:[#allocation2 + $0x28] sm:$0xff] %v5796
        %5813 = vst [vmem:[#allocation2 + $0x30] sm:$0xff] %v5797
        %5814 = vst [vmem:[#allocation2 + $0x38] sm:$0xff] %v5798
        %5815 = vst [vmem:[#allocation2 + $0x40] sm:$0xff] %v5799
        %5816 = vst [vmem:[#allocation2 + $0x48] sm:$0xff] %v5800
        %5817 = vst [vmem:[#allocation2 + $0x50] sm:$0xff] %v5801
        %5818 = vst [vmem:[#allocation2 + $0x58] sm:$0xff] %v5802
        %5819 = vst [vmem:[#allocation2 + $0x60] sm:$0xff] %v5803
        %5820 = vst [vmem:[#allocation2 + $0x68] sm:$0xff] %v5804
        %5821 = vst [vmem:[#allocation2 + $0x70] sm:$0xff] %v5805
        %5822 = vst [vmem:[#allocation2 + $0x78] sm:$0xff] %v5806
        // Predicated region
        $region57: #{tpu_custom_call.1} parent=43 // pred_check
          %p5823 = pneg %p318
        $region58: #{tpu_custom_call.1} parent=43 // pred_check_branch
          %5825 = sbr.rel (%p5823) target = $region60
        $region59: #{tpu_custom_call.1} parent=43 // pred_region
          %v5826 = vld [vmem:[#allocation2] sm:$0xff]
          %v5827 = vld [vmem:[#allocation2 + $0x8] sm:$0xff]
          %v5828 = vld [vmem:[#allocation2 + $0x10] sm:$0xff]
          %v5829 = vld [vmem:[#allocation2 + $0x18] sm:$0xff]
          %v5830 = vld [vmem:[#allocation2 + $0x20] sm:$0xff]
          %v5831 = vld [vmem:[#allocation2 + $0x28] sm:$0xff]
          %v5832 = vld [vmem:[#allocation2 + $0x30] sm:$0xff]
          %v5833 = vld [vmem:[#allocation2 + $0x38] sm:$0xff]
          %v5834 = vld [vmem:[#allocation2 + $0x40] sm:$0xff]
          %v5835 = vld [vmem:[#allocation2 + $0x48] sm:$0xff]
          %v5836 = vld [vmem:[#allocation2 + $0x50] sm:$0xff]
          %v5837 = vld [vmem:[#allocation2 + $0x58] sm:$0xff]
          %v5838 = vld [vmem:[#allocation2 + $0x60] sm:$0xff]
          %v5839 = vld [vmem:[#allocation2 + $0x68] sm:$0xff]
          %v5840 = vld [vmem:[#allocation2 + $0x70] sm:$0xff]
          %v5841 = vld [vmem:[#allocation2 + $0x78] sm:$0xff]
          %v5842 = vpack.c.bf16 %v5827, %v5826
          %v5843 = vpack.c.bf16 %v5829, %v5828
          %v5844 = vpack.c.bf16 %v5831, %v5830
          %v5845 = vpack.c.bf16 %v5833, %v5832
          %v5846 = vpack.c.bf16 %v5835, %v5834
          %v5847 = vpack.c.bf16 %v5837, %v5836
          %v5848 = vpack.c.bf16 %v5839, %v5838
          %v5849 = vpack.c.bf16 %v5841, %v5840
          %v5850 = vld [vmem:[#allocation3] sm:$0xf]
          %v5851 = vld [vmem:[#allocation3 + $0x4] sm:$0xf]
          %v5852 = vld [vmem:[#allocation3 + $0x8] sm:$0xf]
          %v5853 = vld [vmem:[#allocation3 + $0xc] sm:$0xf]
          %v5854 = vld [vmem:[#allocation3 + $0x10] sm:$0xf]
          %v5855 = vld [vmem:[#allocation3 + $0x14] sm:$0xf]
          %v5856 = vld [vmem:[#allocation3 + $0x18] sm:$0xf]
          %v5857 = vld [vmem:[#allocation3 + $0x1c] sm:$0xf]
          %v5858 = vld [vmem:[#allocation3 + $0x20] sm:$0xf]
          %v5859 = vld [vmem:[#allocation3 + $0x24] sm:$0xf]
          %v5860 = vld [vmem:[#allocation3 + $0x28] sm:$0xf]
          %v5861 = vld [vmem:[#allocation3 + $0x2c] sm:$0xf]
          %v5862 = vld [vmem:[#allocation3 + $0x30] sm:$0xf]
          %v5863 = vld [vmem:[#allocation3 + $0x34] sm:$0xf]
          %v5864 = vld [vmem:[#allocation3 + $0x38] sm:$0xf]
          %v5865 = vld [vmem:[#allocation3 + $0x3c] sm:$0xf]
          %v5866 = vld [vmem:[%s3] sm:$0x1]
          %v5868 = vlaneseq
          %v5869 = vshrl.u32 %v5868, 7
          %v5870 = vsub.s32 0, %v5869
          %v5871 = vrot.slane %v5866, %v5870
          %v5889 = vunpack.c.l.b16 %v5850
          %v5890 = vunpack.c.l.b16 %v5851
          %v5891 = vunpack.c.l.b16 %v5852
          %v5892 = vunpack.c.l.b16 %v5853
          %v5893 = vunpack.c.l.b16 %v5854
          %v5894 = vunpack.c.l.b16 %v5855
          %v5895 = vunpack.c.l.b16 %v5856
          %v5896 = vunpack.c.l.b16 %v5857
          %v5897 = vunpack.c.l.b16 %v5858
          %v5898 = vunpack.c.l.b16 %v5859
          %v5899 = vunpack.c.l.b16 %v5860
          %v5900 = vunpack.c.l.b16 %v5861
          %v5901 = vunpack.c.l.b16 %v5862
          %v5902 = vunpack.c.l.b16 %v5863
          %v5903 = vunpack.c.l.b16 %v5864
          %v5904 = vunpack.c.l.b16 %v5865
          %v5905 = vpack.c.b16 %v5890, %v5889
          %v5906 = vpack.c.b16 %v5892, %v5891
          %v5907 = vpack.c.b16 %v5894, %v5893
          %v5908 = vpack.c.b16 %v5896, %v5895
          %v5909 = vpack.c.b16 %v5898, %v5897
          %v5910 = vpack.c.b16 %v5900, %v5899
          %v5911 = vpack.c.b16 %v5902, %v5901
          %v5912 = vpack.c.b16 %v5904, %v5903
          %5921 = vmatprep.subr.bf16.mxu0 0
          %5922 = vmatpush1.bf16.msra.mxu0 %v5905
          %5923 = vmatprep.subr.bf16.mxu0 0
          %5924 = vmatpush1.bf16.msra.mxu0 %v5906
          %5925 = vmatprep.subr.bf16.mxu0 0
          %5926 = vmatpush1.bf16.msra.mxu0 %v5907
          %5927 = vmatprep.subr.bf16.mxu0 0
          %5928 = vmatpush1.bf16.msra.mxu0 %v5908
          %5929 = vmatprep.subr.bf16.mxu0 0
          %5930 = vmatpush1.bf16.msra.mxu0 %v5909
          %5931 = vmatprep.subr.bf16.mxu0 0
          %5932 = vmatpush1.bf16.msra.mxu0 %v5910
          %5933 = vmatprep.subr.bf16.mxu0 0
          %5934 = vmatpush1.bf16.msra.mxu0 %v5911
          %5935 = vmatprep.subr.bf16.mxu0 0
          %5936 = vmatpush1.bf16.msra.mxu0 %v5912
          %5937 = vmatprep.subr.bf16.mxu0 0
          %5938 = vmatpush1.bf16.msra.mxu0 0
          %5939 = vmatprep.subr.bf16.mxu0 0
          %5940 = vmatpush1.bf16.msra.mxu0 0
          %5941 = vmatprep.subr.bf16.mxu0 0
          %5942 = vmatpush1.bf16.msra.mxu0 0
          %5943 = vmatprep.subr.bf16.mxu0 0
          %5944 = vmatpush1.bf16.msra.mxu0 0
          %5945 = vmatprep.subr.bf16.mxu0 0
          %5946 = vmatpush1.bf16.msra.mxu0 0
          %5947 = vmatprep.subr.bf16.mxu0 0
          %5948 = vmatpush1.bf16.msra.mxu0 0
          %5949 = vmatprep.subr.bf16.mxu0 0
          %5950 = vmatpush1.bf16.msra.mxu0 0
          %5951 = vmatprep.subr.bf16.mxu0 0
          %5952 = vmatpush1.bf16.msra.mxu0 0
          %5953 = vmatprep.mubr.bf16.mxu0 0
          %5954 = vmatmul.mubr.bf16.gmra.mrb[0].mxu0 %v5842
          %v5955 = vpop.f32.mrb[0].mxu0
          %v5956 = vadd.f32 %v5871, %v5955
          %v5957 = vpop.f32.mrb[0].mxu0
          %v5958 = vpop.f32.mrb[0].mxu0
          %v5959 = vadd.f32 %v5871, %v5958
          %v5960 = vpop.f32.mrb[0].mxu0
          %5961 = vmatprep.mubr.bf16.mxu0 0
          %5962 = vmatmul.mubr.bf16.gmra.mrb[0].mxu0 %v5843
          %v5963 = vpop.f32.mrb[0].mxu0
          %v5964 = vadd.f32 %v5871, %v5963
          %v5965 = vpop.f32.mrb[0].mxu0
          %v5966 = vpop.f32.mrb[0].mxu0
          %v5967 = vadd.f32 %v5871, %v5966
          %v5968 = vpop.f32.mrb[0].mxu0
          %5969 = vmatprep.mubr.bf16.mxu0 0
          %5970 = vmatmul.mubr.bf16.gmra.mrb[0].mxu0 %v5844
          %v5971 = vpop.f32.mrb[0].mxu0
          %v5972 = vadd.f32 %v5871, %v5971
          %v5973 = vpop.f32.mrb[0].mxu0
          %v5974 = vpop.f32.mrb[0].mxu0
          %v5975 = vadd.f32 %v5871, %v5974
          %v5976 = vpop.f32.mrb[0].mxu0
          %5977 = vmatprep.mubr.bf16.mxu0 0
          %5978 = vmatmul.mubr.bf16.gmra.mrb[0].mxu0 %v5845
          %v5979 = vpop.f32.mrb[0].mxu0
          %v5980 = vadd.f32 %v5871, %v5979
          %v5981 = vpop.f32.mrb[0].mxu0
          %v5982 = vpop.f32.mrb[0].mxu0
          %v5983 = vadd.f32 %v5871, %v5982
          %v5984 = vpop.f32.mrb[0].mxu0
          %5985 = vmatprep.mubr.bf16.mxu0 0
          %5986 = vmatmul.mubr.bf16.gmra.mrb[0].mxu0 %v5846
          %v5987 = vpop.f32.mrb[0].mxu0
          %v5988 = vadd.f32 %v5871, %v5987
          %v5989 = vpop.f32.mrb[0].mxu0
          %v5990 = vpop.f32.mrb[0].mxu0
          %v5991 = vadd.f32 %v5871, %v5990
          %v5992 = vpop.f32.mrb[0].mxu0
          %5993 = vmatprep.mubr.bf16.mxu0 0
          %5994 = vmatmul.mubr.bf16.gmra.mrb[0].mxu0 %v5847
          %v5995 = vpop.f32.mrb[0].mxu0
          %v5996 = vadd.f32 %v5871, %v5995
          %v5997 = vpop.f32.mrb[0].mxu0
          %v5998 = vpop.f32.mrb[0].mxu0
          %v5999 = vadd.f32 %v5871, %v5998
          %v6000 = vpop.f32.mrb[0].mxu0
          %6001 = vmatprep.mubr.bf16.mxu0 0
          %6002 = vmatmul.mubr.bf16.gmra.mrb[0].mxu0 %v5848
          %v6003 = vpop.f32.mrb[0].mxu0
          %v6004 = vadd.f32 %v5871, %v6003
          %v6005 = vpop.f32.mrb[0].mxu0
          %v6006 = vpop.f32.mrb[0].mxu0
          %v6007 = vadd.f32 %v5871, %v6006
          %v6008 = vpop.f32.mrb[0].mxu0
          %6009 = vmatprep.mubr.bf16.mxu0 0
          %6010 = vmatmul.mubr.bf16.gmra.mrb[0].mxu0 %v5849
          %v6011 = vpop.f32.mrb[0].mxu0
          %v6012 = vadd.f32 %v5871, %v6011
          %v6013 = vpop.f32.mrb[0].mxu0
          %v6014 = vpop.f32.mrb[0].mxu0
          %v6015 = vadd.f32 %v5871, %v6014
          %v6016 = vpop.f32.mrb[0].mxu0
          %6017 = vdwg.mxu0
          %v6018 = vmax.f32 %v5956, 0.0
          %v6019 = vmax.f32 %v5959, 0.0
          %v6020 = vmax.f32 %v5964, 0.0
          %v6021 = vmax.f32 %v5967, 0.0
          %v6022 = vmax.f32 %v5972, 0.0
          %v6023 = vmax.f32 %v5975, 0.0
          %v6024 = vmax.f32 %v5980, 0.0
          %v6025 = vmax.f32 %v5983, 0.0
          %v6026 = vmax.f32 %v5988, 0.0
          %v6027 = vmax.f32 %v5991, 0.0
          %v6028 = vmax.f32 %v5996, 0.0
          %v6029 = vmax.f32 %v5999, 0.0
          %v6030 = vmax.f32 %v6004, 0.0
          %v6031 = vmax.f32 %v6007, 0.0
          %v6032 = vmax.f32 %v6012, 0.0
          %v6033 = vmax.f32 %v6015, 0.0
          %v6034 = vpack.c.bf16 %v6019, %v6018
          %v6035 = vpack.c.bf16 %v6021, %v6020
          %v6036 = vpack.c.bf16 %v6023, %v6022
          %v6037 = vpack.c.bf16 %v6025, %v6024
          %v6038 = vpack.c.bf16 %v6027, %v6026
          %v6039 = vpack.c.bf16 %v6029, %v6028
          %v6040 = vpack.c.bf16 %v6031, %v6030
          %v6041 = vpack.c.bf16 %v6033, %v6032
          %v6042 = vld [vmem:[#allocation6] sm:$0xf]
          %v6043 = vld [vmem:[#allocation6 + $0x4] sm:$0xf]
          %v6044 = vld [vmem:[#allocation6 + $0x8] sm:$0xf]
          %v6045 = vld [vmem:[#allocation6 + $0xc] sm:$0xf]
          %v6046 = vld [vmem:[#allocation6 + $0x10] sm:$0xf]
          %v6047 = vld [vmem:[#allocation6 + $0x14] sm:$0xf]
          %v6048 = vld [vmem:[#allocation6 + $0x18] sm:$0xf]
          %v6049 = vld [vmem:[#allocation6 + $0x1c] sm:$0xf]
          %v6050 = vld [vmem:[#allocation6 + $0x20] sm:$0xf]
          %v6051 = vld [vmem:[#allocation6 + $0x24] sm:$0xf]
          %v6052 = vld [vmem:[#allocation6 + $0x28] sm:$0xf]
          %v6053 = vld [vmem:[#allocation6 + $0x2c] sm:$0xf]
          %v6054 = vld [vmem:[#allocation6 + $0x30] sm:$0xf]
          %v6055 = vld [vmem:[#allocation6 + $0x34] sm:$0xf]
          %v6056 = vld [vmem:[#allocation6 + $0x38] sm:$0xf]
          %v6057 = vld [vmem:[#allocation6 + $0x3c] sm:$0xf]
          %v6058 = vld [vmem:[%s5] sm:$0x1]
          %v6060 = vlaneseq
          %v6061 = vshrl.u32 %v6060, 7
          %v6062 = vsub.s32 0, %v6061
          %v6063 = vrot.slane %v6058, %v6062
          %v6081 = vunpack.c.l.b16 %v6042
          %v6082 = vunpack.c.l.b16 %v6043
          %v6083 = vunpack.c.l.b16 %v6044
          %v6084 = vunpack.c.l.b16 %v6045
          %v6085 = vunpack.c.l.b16 %v6046
          %v6086 = vunpack.c.l.b16 %v6047
          %v6087 = vunpack.c.l.b16 %v6048
          %v6088 = vunpack.c.l.b16 %v6049
          %v6089 = vunpack.c.l.b16 %v6050
          %v6090 = vunpack.c.l.b16 %v6051
          %v6091 = vunpack.c.l.b16 %v6052
          %v6092 = vunpack.c.l.b16 %v6053
          %v6093 = vunpack.c.l.b16 %v6054
          %v6094 = vunpack.c.l.b16 %v6055
          %v6095 = vunpack.c.l.b16 %v6056
          %v6096 = vunpack.c.l.b16 %v6057
          %v6097 = vpack.c.b16 %v6082, %v6081
          %v6098 = vpack.c.b16 %v6084, %v6083
          %v6099 = vpack.c.b16 %v6086, %v6085
          %v6100 = vpack.c.b16 %v6088, %v6087
          %v6101 = vpack.c.b16 %v6090, %v6089
          %v6102 = vpack.c.b16 %v6092, %v6091
          %v6103 = vpack.c.b16 %v6094, %v6093
          %v6104 = vpack.c.b16 %v6096, %v6095
          %6113 = vmatprep.subr.bf16.mxu0 0
          %6114 = vmatpush1.bf16.msra.mxu0 %v6097
          %6115 = vmatprep.subr.bf16.mxu0 0
          %6116 = vmatpush1.bf16.msra.mxu0 %v6098
          %6117 = vmatprep.subr.bf16.mxu0 0
          %6118 = vmatpush1.bf16.msra.mxu0 %v6099
          %6119 = vmatprep.subr.bf16.mxu0 0
          %6120 = vmatpush1.bf16.msra.mxu0 %v6100
          %6121 = vmatprep.subr.bf16.mxu0 0
          %6122 = vmatpush1.bf16.msra.mxu0 %v6101
          %6123 = vmatprep.subr.bf16.mxu0 0
          %6124 = vmatpush1.bf16.msra.mxu0 %v6102
          %6125 = vmatprep.subr.bf16.mxu0 0
          %6126 = vmatpush1.bf16.msra.mxu0 %v6103
          %6127 = vmatprep.subr.bf16.mxu0 0
          %6128 = vmatpush1.bf16.msra.mxu0 %v6104
          %6129 = vmatprep.subr.bf16.mxu0 0
          %6130 = vmatpush1.bf16.msra.mxu0 0
          %6131 = vmatprep.subr.bf16.mxu0 0
          %6132 = vmatpush1.bf16.msra.mxu0 0
          %6133 = vmatprep.subr.bf16.mxu0 0
          %6134 = vmatpush1.bf16.msra.mxu0 0
          %6135 = vmatprep.subr.bf16.mxu0 0
          %6136 = vmatpush1.bf16.msra.mxu0 0
          %6137 = vmatprep.subr.bf16.mxu0 0
          %6138 = vmatpush1.bf16.msra.mxu0 0
          %6139 = vmatprep.subr.bf16.mxu0 0
          %6140 = vmatpush1.bf16.msra.mxu0 0
          %6141 = vmatprep.subr.bf16.mxu0 0
          %6142 = vmatpush1.bf16.msra.mxu0 0
          %6143 = vmatprep.subr.bf16.mxu0 0
          %6144 = vmatpush1.bf16.msra.mxu0 0
          %6145 = vmatprep.mubr.bf16.mxu0 0
          %6146 = vmatmul.mubr.bf16.gmra.mrb[0].mxu0 %v6034
          %v6147 = vpop.f32.mrb[0].mxu0
          %v6148 = vadd.f32 %v6063, %v6147
          %v6149 = vpop.f32.mrb[0].mxu0
          %v6150 = vpop.f32.mrb[0].mxu0
          %v6151 = vadd.f32 %v6063, %v6150
          %v6152 = vpop.f32.mrb[0].mxu0
          %6153 = vmatprep.mubr.bf16.mxu0 0
          %6154 = vmatmul.mubr.bf16.gmra.mrb[0].mxu0 %v6035
          %v6155 = vpop.f32.mrb[0].mxu0
          %v6156 = vadd.f32 %v6063, %v6155
          %v6157 = vpop.f32.mrb[0].mxu0
          %v6158 = vpop.f32.mrb[0].mxu0
          %v6159 = vadd.f32 %v6063, %v6158
          %v6160 = vpop.f32.mrb[0].mxu0
          %6161 = vmatprep.mubr.bf16.mxu0 0
          %6162 = vmatmul.mubr.bf16.gmra.mrb[0].mxu0 %v6036
          %v6163 = vpop.f32.mrb[0].mxu0
          %v6164 = vadd.f32 %v6063, %v6163
          %v6165 = vpop.f32.mrb[0].mxu0
          %v6166 = vpop.f32.mrb[0].mxu0
          %v6167 = vadd.f32 %v6063, %v6166
          %v6168 = vpop.f32.mrb[0].mxu0
          %6169 = vmatprep.mubr.bf16.mxu0 0
          %6170 = vmatmul.mubr.bf16.gmra.mrb[0].mxu0 %v6037
          %v6171 = vpop.f32.mrb[0].mxu0
          %v6172 = vadd.f32 %v6063, %v6171
          %v6173 = vpop.f32.mrb[0].mxu0
          %v6174 = vpop.f32.mrb[0].mxu0
          %v6175 = vadd.f32 %v6063, %v6174
          %v6176 = vpop.f32.mrb[0].mxu0
          %6177 = vmatprep.mubr.bf16.mxu0 0
          %6178 = vmatmul.mubr.bf16.gmra.mrb[0].mxu0 %v6038
          %v6179 = vpop.f32.mrb[0].mxu0
          %v6180 = vadd.f32 %v6063, %v6179
          %v6181 = vpop.f32.mrb[0].mxu0
          %v6182 = vpop.f32.mrb[0].mxu0
          %v6183 = vadd.f32 %v6063, %v6182
          %v6184 = vpop.f32.mrb[0].mxu0
          %6185 = vmatprep.mubr.bf16.mxu0 0
          %6186 = vmatmul.mubr.bf16.gmra.mrb[0].mxu0 %v6039
          %v6187 = vpop.f32.mrb[0].mxu0
          %v6188 = vadd.f32 %v6063, %v6187
          %v6189 = vpop.f32.mrb[0].mxu0
          %v6190 = vpop.f32.mrb[0].mxu0
          %v6191 = vadd.f32 %v6063, %v6190
          %v6192 = vpop.f32.mrb[0].mxu0
          %6193 = vmatprep.mubr.bf16.mxu0 0
          %6194 = vmatmul.mubr.bf16.gmra.mrb[0].mxu0 %v6040
          %v6195 = vpop.f32.mrb[0].mxu0
          %v6196 = vadd.f32 %v6063, %v6195
          %v6197 = vpop.f32.mrb[0].mxu0
          %v6198 = vpop.f32.mrb[0].mxu0
          %v6199 = vadd.f32 %v6063, %v6198
          %v6200 = vpop.f32.mrb[0].mxu0
          %6201 = vmatprep.mubr.bf16.mxu0 0
          %6202 = vmatmul.mubr.bf16.gmra.mrb[0].mxu0 %v6041
          %v6203 = vpop.f32.mrb[0].mxu0
          %v6204 = vadd.f32 %v6063, %v6203
          %v6205 = vpop.f32.mrb[0].mxu0
          %v6206 = vpop.f32.mrb[0].mxu0
          %v6207 = vadd.f32 %v6063, %v6206
          %v6208 = vpop.f32.mrb[0].mxu0
          %6209 = vdwg.mxu0
          %6210 = vst [vmem:[%s303] sm:$0xff] %v6148
          %6211 = vst [vmem:[%s303 + $0x8] sm:$0xff] %v6151
          %6212 = vst [vmem:[%s303 + $0x10] sm:$0xff] %v6156
          %6213 = vst [vmem:[%s303 + $0x18] sm:$0xff] %v6159
          %6214 = vst [vmem:[%s303 + $0x20] sm:$0xff] %v6164
          %6215 = vst [vmem:[%s303 + $0x28] sm:$0xff] %v6167
          %6216 = vst [vmem:[%s303 + $0x30] sm:$0xff] %v6172
          %6217 = vst [vmem:[%s303 + $0x38] sm:$0xff] %v6175
          %6218 = vst [vmem:[%s303 + $0x40] sm:$0xff] %v6180
          %6219 = vst [vmem:[%s303 + $0x48] sm:$0xff] %v6183
          %6220 = vst [vmem:[%s303 + $0x50] sm:$0xff] %v6188
          %6221 = vst [vmem:[%s303 + $0x58] sm:$0xff] %v6191
          %6222 = vst [vmem:[%s303 + $0x60] sm:$0xff] %v6196
          %6223 = vst [vmem:[%s303 + $0x68] sm:$0xff] %v6199
          %6224 = vst [vmem:[%s303 + $0x70] sm:$0xff] %v6204
          %6225 = vst [vmem:[%s303 + $0x78] sm:$0xff] %v6207
        $region60: #{tpu_custom_call.1} parent=43 // pred_fallthru
          _
        %s6226 = sand.u32 %s178, 1
        %s6227 = scalar_lea.sflag [#allocation5], %s6226
        %s6228 = sand.u32 %s178, 1
        %s6229 = smul.addr %s6228, 128
        %s6230 = scalar_lea.vmem [#allocation8], %s6229
        // Predicated region
        $region61: #{tpu_custom_call.1} parent=43 // pred_check
          %p6231 = pneg %p188
        $region62: #{tpu_custom_call.1} parent=43 // pred_check_branch
          %6233 = sbr.rel (%p6231) target = $region64
        $region63: #{tpu_custom_call.1} parent=43 // pred_region
          %s6234 = smul.u32 16, %s26
          %s6236 = ssub.s32 2048, 2048
          %6237 = vsyncadd %s6227, %s6236
          %s6238 = smul.addr %s6234, 128
          %s6239 = scalar_lea.hbm %s6, %s6238
          %s6240 = sshll.u32 %s6230, 4
          %s6241 = int_to_ptr.vmem [resolvable:$true] %s6240
          %6246 = dma.vmem_to_hbm [thread:$0]  %s6241, 2048, %s6239, %s6227, 128, 128, 8
        $region64: #{tpu_custom_call.1} parent=43 // pred_fallthru
          _
      $region44: #{tpu_custom_call.1} parent=5 // pred_fallthru
        _
      %p6247 = scmp.le.s32.totalorder 2, %s17
      // Predicated region
      $region65: #{tpu_custom_call.1} parent=5 // pred_check
        %p6248 = pneg %p6247
      $region66: #{tpu_custom_call.1} parent=5 // pred_check_branch
        %6250 = sbr.rel (%p6248) target = $region68
      $region67: #{tpu_custom_call.1} parent=5 // pred_region
        %s6251 = ssub.s32 %s17, 2
        // Predicated region
        $region69: #{tpu_custom_call.1} parent=67 // pred_check
          %p6252 = pneg %p194
        $region70: #{tpu_custom_call.1} parent=67 // pred_check_branch
          %6254 = sbr.rel (%p6252) target = $region72
        $region71: #{tpu_custom_call.1} parent=67 // pred_region
          %s6255 = sand.u32 %s179, 1
          %s6256 = scalar_lea.sflag [#allocation5], %s6255
          %s6257 = sand.u32 %s179, 1
          %s6258 = smul.addr %s6257, 128
          %s6259 = scalar_lea.vmem [#allocation8], %s6258
          %6260 = dma.done %s6256, 2048
        $region72: #{tpu_custom_call.1} parent=67 // pred_fallthru
          _
      $region68: #{tpu_custom_call.1} parent=5 // pred_fallthru
        _
    $region6: #{tpu_custom_call.1} parent=1 // loop_footer
      %s21 = sadd.s32 1, %s17
    $region7: #{tpu_custom_call.1} parent=1 // loop_footer_branch
      %16 = sbr.rel target = $region3
    $region8: #{tpu_custom_call.1} parent=1 // loop_exit
      _
    %6261 = vsyncpa [#allocation4], 1
    %s6262 = scalar_lea.sflag [#allocation4], 1
    %6263 = vsyncpa %s6262, 1
    %6264 = vsyncpa [#allocation7], 1
    %6265 = vsyncpa [#allocation5], 1
    %s6266 = scalar_lea.sflag [#allocation5], 1
    %6267 = vsyncpa %s6266, 1

</llo_original>
